<compile_context>
chip_gen: v5e
topology: v5e:2x2
jax: 0.10.0
libtpu: 0.0.40
codegen_flags: <defaults>
</compile_context>

<pallas_src>
import functools

import jax
import jax.numpy as jnp
from jax.experimental import pallas as pl
from jax.experimental.pallas import tpu as pltpu


def _round_up(x, m):
    return ((x + m - 1) // m) * m


def _pick_tk(kp):
    for cand in (512, 384, 256, 128):
        if kp % cand == 0:
            return cand
    return 128


# ----------------------------------------------------------------------------
# Tiled matmul kernel: out = x @ w (+ bias), bf16 operands, f32 accumulation
# ----------------------------------------------------------------------------
def _mm_kernel(x_ref, w_ref, o_ref, acc_ref):
    @pl.when(pl.program_id(2) == 0)
    def _():
        acc_ref[...] = jnp.zeros_like(acc_ref)

    acc_ref[...] += jnp.dot(x_ref[...], w_ref[...],
                            preferred_element_type=jnp.float32)

    @pl.when(pl.program_id(2) == pl.num_programs(2) - 1)
    def _():
        o_ref[...] = acc_ref[...]


def _mm_bias_kernel(x_ref, w_ref, b_ref, o_ref, acc_ref):
    @pl.when(pl.program_id(2) == 0)
    def _():
        acc_ref[...] = jnp.zeros_like(acc_ref)

    acc_ref[...] += jnp.dot(x_ref[...], w_ref[...],
                            preferred_element_type=jnp.float32)

    @pl.when(pl.program_id(2) == pl.num_programs(2) - 1)
    def _():
        o_ref[...] = acc_ref[...] + b_ref[...]


def matmul_f32(x, w, bias=None, *, tm_max=256, tn_max=256):
    """[M,K] @ [K,N] (+bias) -> [M,N] f32.  bf16 MXU operands, f32 accumulator."""
    M, K = x.shape
    K2, N = w.shape
    assert K == K2

    # K must be a multiple of 128 (partial K blocks would read garbage into the
    # contraction); pad with explicit zeros only when needed.
    Kp = _round_up(max(K, 128), 128)
    tk = _pick_tk(Kp)
    xb = x.astype(jnp.bfloat16)
    wb = w.astype(jnp.bfloat16)
    if Kp != K:
        xb = jnp.pad(xb, ((0, 0), (0, Kp - K)))
        wb = jnp.pad(wb, ((0, Kp - K), (0, 0)))

    # M / N edge tiles are handled as partial blocks (only invalid rows/cols are
    # touched and they are clipped on writeback) -> no host-side zero-pad copies.
    tm = min(tm_max, _round_up(M, 8))
    # tn must be a multiple of 128 or the full N. (On v5e, tn_max=128 matches the
    # native 128x128 MXU tile better; 256 is right for v6e/v7x.)
    tn = N if N <= tn_max else tn_max

    grid = (pl.cdiv(M, tm), pl.cdiv(N, tn), Kp // tk)

    in_specs = [
        pl.BlockSpec((tm, tk), lambda i, j, k: (i, k)),
        pl.BlockSpec((tk, tn), lambda i, j, k: (k, j)),
    ]
    args = [xb, wb]
    if bias is not None:
        in_specs.append(pl.BlockSpec((1, tn), lambda i, j, k: (0, j)))
        args.append(bias.astype(jnp.float32).reshape(1, N))
        kernel = _mm_bias_kernel
    else:
        kernel = _mm_kernel

    return pl.pallas_call(
        kernel,
        out_shape=jax.ShapeDtypeStruct((M, N), jnp.float32),
        grid_spec=pltpu.PrefetchScalarGridSpec(
            num_scalar_prefetch=0,
            grid=grid,
            in_specs=in_specs,
            out_specs=pl.BlockSpec((tm, tn), lambda i, j, k: (i, j)),
            scratch_shapes=[pltpu.VMEM((tm, tn), jnp.float32)],
        ),
        compiler_params=pltpu.CompilerParams(
            dimension_semantics=("parallel", "parallel", "arbitrary")),
        cost_estimate=pl.CostEstimate(
            flops=2 * M * Kp * N,
            transcendentals=0,
            bytes_accessed=(M * Kp + Kp * N) * 2 + M * N * 4),
    )(*args)


# ----------------------------------------------------------------------------
# Two-pass BatchNorm statistics (mean, biased var) over the M rows, M-tiled
# ----------------------------------------------------------------------------
def _bn_stats_kernel(y_ref, mean_ref, var_ref, *, m_valid, tm):
    p = pl.program_id(0)            # 0: mean pass, 1: centered variance pass
    i = pl.program_id(1)
    last = pl.num_programs(1) - 1

    @pl.when((p == 0) & (i == 0))
    def _():
        mean_ref[...] = jnp.zeros_like(mean_ref)
        var_ref[...] = jnp.zeros_like(var_ref)

    y = y_ref[...]
    rows = jax.lax.broadcasted_iota(jnp.int32, y.shape, 0) + i * tm
    mask = (rows < m_valid).astype(jnp.float32)   # partial edge blocks never count

    @pl.when(p == 0)
    def _():
        mean_ref[...] += jnp.sum(y * mask, axis=0, keepdims=True)

    @pl.when((p == 0) & (i == last))
    def _():
        mean_ref[...] = mean_ref[...] * (1.0 / m_valid)

    @pl.when(p == 1)
    def _():
        d = (y - mean_ref[...]) * mask
        var_ref[...] += jnp.sum(d * d, axis=0, keepdims=True)

    @pl.when((p == 1) & (i == last))
    def _():
        var_ref[...] = var_ref[...] * (1.0 / m_valid)


def batch_stats(y):
    """Per-channel mean and biased variance over the rows of y:[M,N] (f32)."""
    M, N = y.shape
    tm = min(512, _round_up(M, 8))
    mean, var = pl.pallas_call(
        functools.partial(_bn_stats_kernel, m_valid=M, tm=tm),
        out_shape=(jax.ShapeDtypeStruct((1, N), jnp.float32),
                   jax.ShapeDtypeStruct((1, N), jnp.float32)),
        grid_spec=pltpu.PrefetchScalarGridSpec(
            num_scalar_prefetch=0,
            grid=(2, pl.cdiv(M, tm)),
            in_specs=[pl.BlockSpec((tm, N), lambda p, i: (i, 0))],
            out_specs=(pl.BlockSpec((1, N), lambda p, i: (0, 0)),
                       pl.BlockSpec((1, N), lambda p, i: (0, 0))),
        ),
        compiler_params=pltpu.CompilerParams(
            dimension_semantics=("arbitrary", "arbitrary")),
    )(y)
    return mean, var


def bn_scale_shift(mean, var, gamma, beta, eps=1e-5):
    scale = (gamma * jax.lax.rsqrt(var + eps)).reshape(1, -1)
    shift = (beta - mean * scale).reshape(1, -1)
    return scale, shift


# ----------------------------------------------------------------------------
# Fused BN-apply (+ReLU) and BN-apply + skip-combine elementwise kernels
# ----------------------------------------------------------------------------
def _affine_act_kernel(y_ref, s_ref, t_ref, o_ref, *, relu):
    v = y_ref[...] * s_ref[...] + t_ref[...]
    if relu:
        v = jnp.maximum(v, 0.0)
    o_ref[...] = v


def _affine_combine_kernel(y_ref, sy_ref, ty_ref, z_ref, sz_ref, tz_ref, o_ref, *, op):
    a = jnp.maximum(y_ref[...] * sy_ref[...] + ty_ref[...], 0.0)   # relu(bn(conv2))
    b = z_ref[...] * sz_ref[...] + tz_ref[...]                     # bn(down(x))
    o_ref[...] = (a + b) if op == "sum" else (a * b)


def affine_act(y, scale, shift, *, relu):
    M, N = y.shape
    tm = min(512, _round_up(M, 8))
    return pl.pallas_call(
        functools.partial(_affine_act_kernel, relu=relu),
        out_shape=jax.ShapeDtypeStruct((M, N), jnp.float32),
        grid_spec=pltpu.PrefetchScalarGridSpec(
            num_scalar_prefetch=0,
            grid=(pl.cdiv(M, tm),),
            in_specs=[pl.BlockSpec((tm, N), lambda i: (i, 0)),
                      pl.BlockSpec((1, N), lambda i: (0, 0)),
                      pl.BlockSpec((1, N), lambda i: (0, 0))],
            out_specs=pl.BlockSpec((tm, N), lambda i: (i, 0)),
        ),
        compiler_params=pltpu.CompilerParams(dimension_semantics=("parallel",)),
    )(y, scale, shift)


def affine_combine(y, sy, ty, z, sz, tz, *, op):
    M, N = y.shape
    tm = min(512, _round_up(M, 8))
    return pl.pallas_call(
        functools.partial(_affine_combine_kernel, op=op),
        out_shape=jax.ShapeDtypeStruct((M, N), jnp.float32),
        grid_spec=pltpu.PrefetchScalarGridSpec(
            num_scalar_prefetch=0,
            grid=(pl.cdiv(M, tm),),
            in_specs=[pl.BlockSpec((tm, N), lambda i: (i, 0)),
                      pl.BlockSpec((1, N), lambda i: (0, 0)),
                      pl.BlockSpec((1, N), lambda i: (0, 0)),
                      pl.BlockSpec((tm, N), lambda i: (i, 0)),
                      pl.BlockSpec((1, N), lambda i: (0, 0)),
                      pl.BlockSpec((1, N), lambda i: (0, 0))],
            out_specs=pl.BlockSpec((tm, N), lambda i: (i, 0)),
        ),
        compiler_params=pltpu.CompilerParams(dimension_semantics=("parallel",)),
    )(y, sy, ty, z, sz, tz)


# ----------------------------------------------------------------------------
# Layer glue (NHWC)
# ----------------------------------------------------------------------------
def conv3x3(x_nhwc, w_oihw, padding):
    """3x3 conv, stride 1, NHWC activations, PyTorch OIHW weights, no bias
    (the bias cancels under the BatchNorm that always follows it)."""
    B, H, W, C = x_nhwc.shape
    Cout = w_oihw.shape[0]
    Ho, Wo = H + 2 * padding - 2, W + 2 * padding - 2
    xp = jnp.pad(x_nhwc, ((0, 0), (padding, padding), (padding, padding), (0, 0)))
    taps = [xp[:, kh:kh + Ho, kw:kw + Wo, :] for kh in range(3) for kw in range(3)]
    cols = jnp.stack(taps, axis=3).reshape(B * Ho * Wo, 9 * C)        # (tap, cin) minor
    wm = jnp.transpose(w_oihw, (2, 3, 1, 0)).reshape(9 * C, Cout)     # same ordering
    return matmul_f32(cols, wm), (B, Ho, Wo, Cout)


def maxpool2_nhwc(x):
    B, H, W, C = x.shape
    return x.reshape(B, H // 2, 2, W // 2, 2, C).max(axis=(2, 4))


# ----------------------------------------------------------------------------
# StackEncoder_skip forward
# ----------------------------------------------------------------------------
def stack_encoder_skip_forward(x_nchw, params, *, padding, calculate):
    if calculate not in ("sum", "multiple", "concat"):
        raise ValueError(f"unknown calculate mode: {calculate}")
    B, Cin, H, W = x_nchw.shape
    Cout = params["down_w"].shape[0]
    eps = 1e-5

    x_nhwc = jnp.transpose(x_nchw, (0, 2, 3, 1))      # NCHW -> NHWC once
    x_flat = x_nhwc.reshape(B * H * W, Cin)

    # identity = down_Bn(down(x))   (1x1 conv; its bias cancels under BN)
    y_id = matmul_f32(x_flat, params["down_w"].reshape(Cout, Cin).T)
    m_id, v_id = batch_stats(y_id)
    s_id, t_id = bn_scale_shift(m_id, v_id,
                                params["down_bn_gamma"], params["down_bn_beta"], eps)

    # convr1 = ReLU(BN(conv3x3(x)))
    y1, (_, H1, W1, _) = conv3x3(x_nhwc, params["convr1"]["w"], padding)
    m1, v1 = batch_stats(y1)
    s1, t1 = bn_scale_shift(m1, v1, params["convr1"]["gamma"], params["convr1"]["beta"], eps)
    a1 = affine_act(y1, s1, t1, relu=True).reshape(B, H1, W1, Cout)

    # convr2 = ReLU(BN(conv3x3(a1))), fused with the skip combine
    y2, (_, H2, W2, _) = conv3x3(a1, params["convr2"]["w"], padding)
    m2, v2 = batch_stats(y2)
    s2, t2 = bn_scale_shift(m2, v2, params["convr2"]["gamma"], params["convr2"]["beta"], eps)

    assert y2.shape == y_id.shape, (
        "skip merge requires padding=1 so the conv output matches the identity")

    if calculate in ("sum", "multiple"):
        xt_flat = affine_combine(y2, s2, t2, y_id, s_id, t_id,
                                 op=("sum" if calculate == "sum" else "mul"))
    else:  # concat -> 1x1 re-projection with bias
        a2 = affine_act(y2, s2, t2, relu=True)
        idn = affine_act(y_id, s_id, t_id, relu=False)
        cat = jnp.concatenate([a2, idn], axis=1)                       # [M, 2*Cout]
        xt_flat = matmul_f32(cat, params["useconcat_w"].reshape(Cout, 2 * Cout).T,
                             bias=params["useconcat_b"])

    x_trace = xt_flat.reshape(B, H2, W2, Cout)
    x_pool = maxpool2_nhwc(x_trace)
    return (jnp.transpose(x_pool, (0, 3, 1, 2)),       # back to NCHW like PyTorch
            jnp.transpose(x_trace, (0, 3, 1, 2)))


# ----------------------------------------------------------------------------
# Parameters (same shapes / roles as the PyTorch module; BN in training mode)
# ----------------------------------------------------------------------------
def init_params(key, cin, cout):
    ks = jax.random.split(key, 11)

    def conv_bn(kw, kg, kb, ci, co, ksz):
        fan_in = ci * ksz * ksz
        return {
            "w": (2.0 / fan_in) ** 0.5 * jax.random.normal(kw, (co, ci, ksz, ksz), jnp.float32),
            "gamma": 1.0 + 0.1 * jax.random.normal(kg, (co,), jnp.float32),
            "beta": 0.1 * jax.random.normal(kb, (co,), jnp.float32),
        }

    return {
        "down_w": (1.0 / cin) ** 0.5 * jax.random.normal(ks[0], (cout, cin, 1, 1), jnp.float32),
        "down_bn_gamma": 1.0 + 0.1 * jax.random.normal(ks[1], (cout,), jnp.float32),
        "down_bn_beta": 0.1 * jax.random.normal(ks[2], (cout,), jnp.float32),
        "convr1": conv_bn(ks[3], ks[4], ks[5], cin, cout, 3),
        "convr2": conv_bn(ks[6], ks[7], ks[8], cout, cout, 3),
        "useconcat_w": (1.0 / (2 * cout)) ** 0.5
                        * jax.random.normal(ks[9], (cout, 2 * cout, 1, 1), jnp.float32),
        "useconcat_b": 0.01 * jax.random.normal(ks[10], (cout,), jnp.float32),
    }


# ----------------------------------------------------------------------------
# Pure-JAX reference (XLA convs, f32) for a tolerance check
# ----------------------------------------------------------------------------
@functools.partial(jax.jit, static_argnames=("padding", "calculate"))
def _ref_forward(x, params, padding, calculate):
    def conv(x, w, b=None, pad=0):
        y = jax.lax.conv_general_dilated(x, w, (1, 1), [(pad, pad), (pad, pad)],
                                         dimension_numbers=("NCHW", "OIHW", "NCHW"))
        return y if b is None else y + b[None, :, None, None]

    def bn(y, gamma, beta, eps=1e-5):
        mean = y.mean(axis=(0, 2, 3), keepdims=True)
        var = ((y - mean) ** 2).mean(axis=(0, 2, 3), keepdims=True)
        return (gamma[None, :, None, None] * (y - mean) * jax.lax.rsqrt(var + eps)
                + beta[None, :, None, None])

    identity = bn(conv(x, params["down_w"]), params["down_bn_gamma"], params["down_bn_beta"])
    a1 = jax.nn.relu(bn(conv(x, params["convr1"]["w"], pad=padding),
                        params["convr1"]["gamma"], params["convr1"]["beta"]))
    a2 = jax.nn.relu(bn(conv(a1, params["convr2"]["w"], pad=padding),
                        params["convr2"]["gamma"], params["convr2"]["beta"]))
    if calculate == "sum":
        xt = a2 + identity
    elif calculate == "multiple":
        xt = a2 * identity
    else:
        xt = conv(jnp.concatenate([a2, identity], axis=1),
                  params["useconcat_w"], params["useconcat_b"])
    B, C, H, W = xt.shape
    pooled = xt.reshape(B, C, H // 2, 2, W // 2, 2).max(axis=(3, 5))
    return pooled, xt


if __name__ == "__main__":
    key = jax.random.PRNGKey(0)
    kx, kp = jax.random.split(key)

    batch, cin, height, width = 2, 4, 16, 16
    cout = 64
    padding = 1      # required so the skip merge shape-matches (as in the PyTorch module)

    x = jax.random.normal(kx, (batch, cin, height, width), dtype=jnp.float32)
    params = init_params(kp, cin, cout)

    @functools.partial(jax.jit, static_argnames=("padding", "calculate"))
    def fwd(x, params, padding, calculate):
        return stack_encoder_skip_forward(x, params, padding=padding, calculate=calculate)

    for calc in ("sum", "multiple", "concat"):
        pooled, trace = fwd(x, params, padding=padding, calculate=calc)
        pooled = jax.block_until_ready(pooled)
        trace = jax.block_until_ready(trace)
        assert pooled.shape == (batch, cout, height // 2, width // 2), pooled.shape
        assert trace.shape == (batch, cout, height, width), trace.shape
        assert bool(jnp.all(jnp.isfinite(pooled))) and bool(jnp.all(jnp.isfinite(trace)))

        ref_pool, ref_trace = _ref_forward(x, params, padding=padding, calculate=calc)
        # bf16 MXU operands -> ~1% relative error; generous tolerance still catches bugs.
        assert bool(jnp.allclose(trace, ref_trace, rtol=0.1, atol=0.1)), (
            calc, float(jnp.max(jnp.abs(trace - ref_trace))))
        assert bool(jnp.allclose(pooled, ref_pool, rtol=0.1, atol=0.1)), (
            calc, float(jnp.max(jnp.abs(pooled - ref_pool))))

    print("KERNEL_OK")
</pallas_src>

<mosaic_0001>
module attributes {stable_mosaic.version = 11 : i64} {
  func.func @_mm_kernel(%arg0: i32, %arg1: i32, %arg2: i32, %arg3: memref<256x128xbf16, #tpu.memory_space<vmem>>, %arg4: memref<128x64xbf16, #tpu.memory_space<vmem>>, %arg5: memref<256x64xf32, #tpu.memory_space<vmem>>, %arg6: memref<256x64xf32, #tpu.memory_space<vmem>>) attributes {dimension_semantics = [#tpu.dimension_semantics<parallel>, #tpu.dimension_semantics<parallel>, #tpu.dimension_semantics<arbitrary>], iteration_bounds = array<i64: 2, 1, 1>, scalar_prefetch = 0 : i64, scratch_operands = 1 : i64, tpu.core_type = #tpu.core_type<tc>, window_params = [{transform_indices = @transform_0, window_bounds = array<i64: 256, 128>}, {transform_indices = @transform_1, window_bounds = array<i64: 128, 64>}, {transform_indices = @transform_2, window_bounds = array<i64: 256, 64>}]} {
    %c0_i32 = arith.constant 0 : i32
    %0 = arith.cmpi eq, %arg2, %c0_i32 : i32
    %1 = arith.extui %0 : i1 to i32
    %c0_i32_0 = arith.constant 0 : i32
    %2 = arith.cmpi ne, %1, %c0_i32_0 : i32
    scf.if %2 {
      %cst_10 = arith.constant 0.000000e+00 : f32
      %12 = vector.broadcast %cst_10 : f32 to vector<256x64xf32>
      %c0_11 = arith.constant 0 : index
      %c0_12 = arith.constant 0 : index
      %13 = vector.load %arg6[%c0_11, %c0_12] : memref<256x64xf32, #tpu.memory_space<vmem>>, vector<256x64xf32>
      tpu.vector_store %arg6[%c0_11, %c0_12], %12 {strides = array<i32>} : memref<256x64xf32, #tpu.memory_space<vmem>>, vector<256x64xf32>,
    } else {
    }
    %c0 = arith.constant 0 : index
    %c0_1 = arith.constant 0 : index
    %3 = vector.load %arg6[%c0, %c0_1] : memref<256x64xf32, #tpu.memory_space<vmem>>, vector<256x64xf32>
    %c0_2 = arith.constant 0 : index
    %c0_3 = arith.constant 0 : index
    %4 = vector.load %arg3[%c0_2, %c0_3] : memref<256x128xbf16, #tpu.memory_space<vmem>>, vector<256x128xbf16>
    %c0_4 = arith.constant 0 : index
    %c0_5 = arith.constant 0 : index
    %5 = vector.load %arg4[%c0_4, %c0_5] : memref<128x64xbf16, #tpu.memory_space<vmem>>, vector<128x64xbf16>
    %cst = arith.constant dense<0.000000e+00> : vector<256x64xf32>
    %6 = tpu.matmul %4, %5, %cst {dimension_numbers = #tpu.dot_dimension_numbers<[1], [0], [0], [1], [0, 0, 1, 1], [], []>} : vector<256x128xbf16>, vector<128x64xbf16>, vector<256x64xf32> -> vector<256x64xf32>
    %7 = arith.addf %3, %6 : vector<256x64xf32>
    %c0_6 = arith.constant 0 : index
    %c0_7 = arith.constant 0 : index
    %8 = vector.load %arg6[%c0_6, %c0_7] : memref<256x64xf32, #tpu.memory_space<vmem>>, vector<256x64xf32>
    tpu.vector_store %arg6[%c0_6, %c0_7], %7 {strides = array<i32>} : memref<256x64xf32, #tpu.memory_space<vmem>>, vector<256x64xf32>,
    %c0_i32_8 = arith.constant 0 : i32
    %9 = arith.cmpi eq, %arg2, %c0_i32_8 : i32
    %10 = arith.extui %9 : i1 to i32
    %c0_i32_9 = arith.constant 0 : i32
    %11 = arith.cmpi ne, %10, %c0_i32_9 : i32
    scf.if %11 {
      %c0_10 = arith.constant 0 : index
      %c0_11 = arith.constant 0 : index
      %12 = vector.load %arg6[%c0_10, %c0_11] : memref<256x64xf32, #tpu.memory_space<vmem>>, vector<256x64xf32>
      %c0_12 = arith.constant 0 : index
      %c0_13 = arith.constant 0 : index
      %13 = vector.load %arg5[%c0_12, %c0_13] : memref<256x64xf32, #tpu.memory_space<vmem>>, vector<256x64xf32>
      tpu.vector_store %arg5[%c0_12, %c0_13], %12 {strides = array<i32>} : memref<256x64xf32, #tpu.memory_space<vmem>>, vector<256x64xf32>,
    } else {
    }
    return
  }
  func.func @transform_0(%arg0: i32, %arg1: i32, %arg2: i32) -> (i32, i32) {
    %c0_i32 = arith.constant 0 : i32
    return %arg0, %arg2 : i32, i32
  }
  func.func @transform_1(%arg0: i32, %arg1: i32, %arg2: i32) -> (i32, i32) {
    %c0_i32 = arith.constant 0 : i32
    return %arg2, %arg1 : i32, i32
  }
  func.func @transform_2(%arg0: i32, %arg1: i32, %arg2: i32) -> (i32, i32) {
    %c0_i32 = arith.constant 0 : i32
    return %arg0, %arg1 : i32, i32
  }
}

module attributes {stable_mosaic.version = 11 : i64} {
  func.func @_affine_act_kernel(%arg0: i32, %arg1: memref<512x64xf32, #tpu.memory_space<vmem>>, %arg2: memref<1x64xf32, #tpu.memory_space<vmem>>, %arg3: memref<1x64xf32, #tpu.memory_space<vmem>>, %arg4: memref<512x64xf32, #tpu.memory_space<vmem>>) attributes {dimension_semantics = [#tpu.dimension_semantics<parallel>], iteration_bounds = array<i64: 1>, scalar_prefetch = 0 : i64, scratch_operands = 0 : i64, tpu.core_type = #tpu.core_type<tc>, window_params = [{transform_indices = @transform_0, window_bounds = array<i64: 512, 64>}, {pipeline_mode = #tpu.pipeline_mode<synchronous>, transform_indices = @transform_1, window_bounds = array<i64: 1, 64>}, {pipeline_mode = #tpu.pipeline_mode<synchronous>, transform_indices = @transform_2, window_bounds = array<i64: 1, 64>}, {transform_indices = @transform_3, window_bounds = array<i64: 512, 64>}]} {
    %c0 = arith.constant 0 : index
    %c0_0 = arith.constant 0 : index
    %0 = vector.load %arg1[%c0, %c0_0] : memref<512x64xf32, #tpu.memory_space<vmem>>, vector<512x64xf32>
    %c0_1 = arith.constant 0 : index
    %c0_2 = arith.constant 0 : index
    %1 = vector.load %arg2[%c0_1, %c0_2] : memref<1x64xf32, #tpu.memory_space<vmem>>, vector<1x64xf32>
    %2 = vector.broadcast %1 : vector<1x64xf32> to vector<512x64xf32>
    %3 = arith.mulf %0, %2 : vector<512x64xf32>
    %c0_3 = arith.constant 0 : index
    %c0_4 = arith.constant 0 : index
    %4 = vector.load %arg3[%c0_3, %c0_4] : memref<1x64xf32, #tpu.memory_space<vmem>>, vector<1x64xf32>
    %5 = vector.broadcast %4 : vector<1x64xf32> to vector<512x64xf32>
    %6 = arith.addf %3, %5 : vector<512x64xf32>
    %cst = arith.constant 0.000000e+00 : f32
    %7 = vector.broadcast %cst : f32 to vector<512x64xf32>
    %8 = arith.maximumf %6, %7 : vector<512x64xf32>
    %c0_5 = arith.constant 0 : index
    %c0_6 = arith.constant 0 : index
    %9 = vector.load %arg4[%c0_5, %c0_6] : memref<512x64xf32, #tpu.memory_space<vmem>>, vector<512x64xf32>
    tpu.vector_store %arg4[%c0_5, %c0_6], %8 {strides = array<i32>} : memref<512x64xf32, #tpu.memory_space<vmem>>, vector<512x64xf32>,
    return
  }
  func.func @transform_0(%arg0: i32) -> (i32, i32) {
    %c0_i32 = arith.constant 0 : i32
    %c0_i32_0 = arith.constant 0 : i32
    return %arg0, %c0_i32 : i32, i32
  }
  func.func @transform_1(%arg0: i32) -> (i32, i32) {
    %c0_i32 = arith.constant 0 : i32
    %c0_i32_0 = arith.constant 0 : i32
    %c0_i32_1 = arith.constant 0 : i32
    return %c0_i32, %c0_i32_0 : i32, i32
  }
  func.func @transform_2(%arg0: i32) -> (i32, i32) {
    %c0_i32 = arith.constant 0 : i32
    %c0_i32_0 = arith.constant 0 : i32
    %c0_i32_1 = arith.constant 0 : i32
    return %c0_i32, %c0_i32_0 : i32, i32
  }
  func.func @transform_3(%arg0: i32) -> (i32, i32) {
    %c0_i32 = arith.constant 0 : i32
    %c0_i32_0 = arith.constant 0 : i32
    return %arg0, %c0_i32 : i32, i32
  }
}

module attributes {stable_mosaic.version = 11 : i64} {
  func.func @_bn_stats_kernel(%arg0: i32, %arg1: i32, %arg2: memref<512x64xf32, #tpu.memory_space<vmem>>, %arg3: memref<1x64xf32, #tpu.memory_space<vmem>>, %arg4: memref<1x64xf32, #tpu.memory_space<vmem>>) attributes {dimension_semantics = [#tpu.dimension_semantics<arbitrary>, #tpu.dimension_semantics<arbitrary>], iteration_bounds = array<i64: 2, 1>, scalar_prefetch = 0 : i64, scratch_operands = 0 : i64, tpu.core_type = #tpu.core_type<tc>, window_params = [{transform_indices = @transform_0, window_bounds = array<i64: 512, 64>}, {pipeline_mode = #tpu.pipeline_mode<synchronous>, transform_indices = @transform_1, window_bounds = array<i64: 1, 64>}, {pipeline_mode = #tpu.pipeline_mode<synchronous>, transform_indices = @transform_2, window_bounds = array<i64: 1, 64>}]} {
    %c0_i32 = arith.constant 0 : i32
    %0 = arith.cmpi eq, %arg0, %c0_i32 : i32
    %c0_i32_0 = arith.constant 0 : i32
    %1 = arith.cmpi eq, %arg1, %c0_i32_0 : i32
    %2 = arith.andi %0, %1 : i1
    %3 = arith.extui %2 : i1 to i32
    %c0_i32_1 = arith.constant 0 : i32
    %4 = arith.cmpi ne, %3, %c0_i32_1 : i32
    scf.if %4 {
      %cst = arith.constant 0.000000e+00 : f32
      %30 = vector.broadcast %cst : f32 to vector<1x64xf32>
      %c0_13 = arith.constant 0 : index
      %c0_14 = arith.constant 0 : index
      %31 = vector.load %arg3[%c0_13, %c0_14] : memref<1x64xf32, #tpu.memory_space<vmem>>, vector<1x64xf32>
      tpu.vector_store %arg3[%c0_13, %c0_14], %30 {strides = array<i32>} : memref<1x64xf32, #tpu.memory_space<vmem>>, vector<1x64xf32>,
      %cst_15 = arith.constant 0.000000e+00 : f32
      %32 = vector.broadcast %cst_15 : f32 to vector<1x64xf32>
      %c0_16 = arith.constant 0 : index
      %c0_17 = arith.constant 0 : index
      %33 = vector.load %arg4[%c0_16, %c0_17] : memref<1x64xf32, #tpu.memory_space<vmem>>, vector<1x64xf32>
      tpu.vector_store %arg4[%c0_16, %c0_17], %32 {strides = array<i32>} : memref<1x64xf32, #tpu.memory_space<vmem>>, vector<1x64xf32>,
    } else {
    }
    %c0 = arith.constant 0 : index
    %c0_2 = arith.constant 0 : index
    %5 = vector.load %arg2[%c0, %c0_2] : memref<512x64xf32, #tpu.memory_space<vmem>>, vector<512x64xf32>
    %6 = tpu.iota {dimensions = array<i32: 0>} : vector<512x64xi32>
    %c512_i32 = arith.constant 512 : i32
    %7 = arith.muli %arg1, %c512_i32 : i32
    %8 = vector.broadcast %7 : i32 to vector<512x64xi32>
    %9 = arith.addi %6, %8 : vector<512x64xi32>
    %c512_i32_3 = arith.constant 512 : i32
    %10 = vector.broadcast %c512_i32_3 : i32 to vector<512x64xi32>
    %11 = arith.cmpi slt, %9, %10 : vector<512x64xi32>
    %12 = arith.extui %11 : vector<512x64xi1> to vector<512x64xi32>
    %13 = arith.sitofp %12 : vector<512x64xi32> to vector<512x64xf32>
    %c0_i32_4 = arith.constant 0 : i32
    %14 = arith.cmpi eq, %arg0, %c0_i32_4 : i32
    %15 = arith.extui %14 : i1 to i32
    %c0_i32_5 = arith.constant 0 : i32
    %16 = arith.cmpi ne, %15, %c0_i32_5 : i32
    scf.if %16 {
      %c0_13 = arith.constant 0 : index
      %c0_14 = arith.constant 0 : index
      %30 = vector.load %arg3[%c0_13, %c0_14] : memref<1x64xf32, #tpu.memory_space<vmem>>, vector<1x64xf32>
      %31 = arith.mulf %5, %13 : vector<512x64xf32>
      %cst = arith.constant dense<0.000000e+00> : vector<64xf32>
      %32 = vector.multi_reduction <add>, %31, %cst [0] : vector<512x64xf32> to vector<64xf32>
      %33 = vector.shape_cast %32 : vector<64xf32> to vector<1x64xf32>
      %34 = arith.addf %30, %33 : vector<1x64xf32>
      %c0_15 = arith.constant 0 : index
      %c0_16 = arith.constant 0 : index
      %35 = vector.load %arg3[%c0_15, %c0_16] : memref<1x64xf32, #tpu.memory_space<vmem>>, vector<1x64xf32>
      tpu.vector_store %arg3[%c0_15, %c0_16], %34 {strides = array<i32>} : memref<1x64xf32, #tpu.memory_space<vmem>>, vector<1x64xf32>,
    } else {
    }
    %c0_i32_6 = arith.constant 0 : i32
    %17 = arith.cmpi eq, %arg0, %c0_i32_6 : i32
    %c0_i32_7 = arith.constant 0 : i32
    %18 = arith.cmpi eq, %arg1, %c0_i32_7 : i32
    %19 = arith.andi %17, %18 : i1
    %20 = arith.extui %19 : i1 to i32
    %c0_i32_8 = arith.constant 0 : i32
    %21 = arith.cmpi ne, %20, %c0_i32_8 : i32
    scf.if %21 {
      %c0_13 = arith.constant 0 : index
      %c0_14 = arith.constant 0 : index
      %30 = vector.load %arg3[%c0_13, %c0_14] : memref<1x64xf32, #tpu.memory_space<vmem>>, vector<1x64xf32>
      %cst = arith.constant 0.001953125 : f32
      %31 = vector.broadcast %cst : f32 to vector<1x64xf32>
      %32 = arith.mulf %30, %31 : vector<1x64xf32>
      %c0_15 = arith.constant 0 : index
      %c0_16 = arith.constant 0 : index
      %33 = vector.load %arg3[%c0_15, %c0_16] : memref<1x64xf32, #tpu.memory_space<vmem>>, vector<1x64xf32>
      tpu.vector_store %arg3[%c0_15, %c0_16], %32 {strides = array<i32>} : memref<1x64xf32, #tpu.memory_space<vmem>>, vector<1x64xf32>,
    } else {
    }
    %c1_i32 = arith.constant 1 : i32
    %22 = arith.cmpi eq, %arg0, %c1_i32 : i32
    %23 = arith.extui %22 : i1 to i32
    %c0_i32_9 = arith.constant 0 : i32
    %24 = arith.cmpi ne, %23, %c0_i32_9 : i32
    scf.if %24 {
      %c0_13 = arith.constant 0 : index
      %c0_14 = arith.constant 0 : index
      %30 = vector.load %arg3[%c0_13, %c0_14] : memref<1x64xf32, #tpu.memory_space<vmem>>, vector<1x64xf32>
      %31 = vector.broadcast %30 : vector<1x64xf32> to vector<512x64xf32>
      %32 = arith.subf %5, %31 : vector<512x64xf32>
      %33 = arith.mulf %32, %13 : vector<512x64xf32>
      %c0_15 = arith.constant 0 : index
      %c0_16 = arith.constant 0 : index
      %34 = vector.load %arg4[%c0_15, %c0_16] : memref<1x64xf32, #tpu.memory_space<vmem>>, vector<1x64xf32>
      %35 = arith.mulf %33, %33 : vector<512x64xf32>
      %cst = arith.constant dense<0.000000e+00> : vector<64xf32>
      %36 = vector.multi_reduction <add>, %35, %cst [0] : vector<512x64xf32> to vector<64xf32>
      %37 = vector.shape_cast %36 : vector<64xf32> to vector<1x64xf32>
      %38 = arith.addf %34, %37 : vector<1x64xf32>
      %c0_17 = arith.constant 0 : index
      %c0_18 = arith.constant 0 : index
      %39 = vector.load %arg4[%c0_17, %c0_18] : memref<1x64xf32, #tpu.memory_space<vmem>>, vector<1x64xf32>
      tpu.vector_store %arg4[%c0_17, %c0_18], %38 {strides = array<i32>} : memref<1x64xf32, #tpu.memory_space<vmem>>, vector<1x64xf32>,
    } else {
    }
    %c1_i32_10 = arith.constant 1 : i32
    %25 = arith.cmpi eq, %arg0, %c1_i32_10 : i32
    %c0_i32_11 = arith.constant 0 : i32
    %26 = arith.cmpi eq, %arg1, %c0_i32_11 : i32
    %27 = arith.andi %25, %26 : i1
    %28 = arith.extui %27 : i1 to i32
    %c0_i32_12 = arith.constant 0 : i32
    %29 = arith.cmpi ne, %28, %c0_i32_12 : i32
    scf.if %29 {
      %c0_13 = arith.constant 0 : index
      %c0_14 = arith.constant 0 : index
      %30 = vector.load %arg4[%c0_13, %c0_14] : memref<1x64xf32, #tpu.memory_space<vmem>>, vector<1x64xf32>
      %cst = arith.constant 0.001953125 : f32
      %31 = vector.broadcast %cst : f32 to vector<1x64xf32>
      %32 = arith.mulf %30, %31 : vector<1x64xf32>
      %c0_15 = arith.constant 0 : index
      %c0_16 = arith.constant 0 : index
      %33 = vector.load %arg4[%c0_15, %c0_16] : memref<1x64xf32, #tpu.memory_space<vmem>>, vector<1x64xf32>
      tpu.vector_store %arg4[%c0_15, %c0_16], %32 {strides = array<i32>} : memref<1x64xf32, #tpu.memory_space<vmem>>, vector<1x64xf32>,
    } else {
    }
    return
  }
  func.func @transform_0(%arg0: i32, %arg1: i32) -> (i32, i32) {
    %c0_i32 = arith.constant 0 : i32
    %c0_i32_0 = arith.constant 0 : i32
    return %arg1, %c0_i32 : i32, i32
  }
  func.func @transform_1(%arg0: i32, %arg1: i32) -> (i32, i32) {
    %c0_i32 = arith.constant 0 : i32
    %c0_i32_0 = arith.constant 0 : i32
    %c0_i32_1 = arith.constant 0 : i32
    return %c0_i32, %c0_i32_0 : i32, i32
  }
  func.func @transform_2(%arg0: i32, %arg1: i32) -> (i32, i32) {
    %c0_i32 = arith.constant 0 : i32
    %c0_i32_0 = arith.constant 0 : i32
    %c0_i32_1 = arith.constant 0 : i32
    return %c0_i32, %c0_i32_0 : i32, i32
  }
}

module attributes {stable_mosaic.version = 11 : i64} {
  func.func @_mm_kernel(%arg0: i32, %arg1: i32, %arg2: i32, %arg3: memref<256x128xbf16, #tpu.memory_space<vmem>>, %arg4: memref<128x64xbf16, #tpu.memory_space<vmem>>, %arg5: memref<256x64xf32, #tpu.memory_space<vmem>>, %arg6: memref<256x64xf32, #tpu.memory_space<vmem>>) attributes {dimension_semantics = [#tpu.dimension_semantics<parallel>, #tpu.dimension_semantics<parallel>, #tpu.dimension_semantics<arbitrary>], iteration_bounds = array<i64: 2, 1, 5>, scalar_prefetch = 0 : i64, scratch_operands = 1 : i64, tpu.core_type = #tpu.core_type<tc>, window_params = [{transform_indices = @transform_0, window_bounds = array<i64: 256, 128>}, {transform_indices = @transform_1, window_bounds = array<i64: 128, 64>}, {transform_indices = @transform_2, window_bounds = array<i64: 256, 64>}]} {
    %c0_i32 = arith.constant 0 : i32
    %0 = arith.cmpi eq, %arg2, %c0_i32 : i32
    %1 = arith.extui %0 : i1 to i32
    %c0_i32_0 = arith.constant 0 : i32
    %2 = arith.cmpi ne, %1, %c0_i32_0 : i32
    scf.if %2 {
      %cst_9 = arith.constant 0.000000e+00 : f32
      %12 = vector.broadcast %cst_9 : f32 to vector<256x64xf32>
      %c0_10 = arith.constant 0 : index
      %c0_11 = arith.constant 0 : index
      %13 = vector.load %arg6[%c0_10, %c0_11] : memref<256x64xf32, #tpu.memory_space<vmem>>, vector<256x64xf32>
      tpu.vector_store %arg6[%c0_10, %c0_11], %12 {strides = array<i32>} : memref<256x64xf32, #tpu.memory_space<vmem>>, vector<256x64xf32>,
    } else {
    }
    %c0 = arith.constant 0 : index
    %c0_1 = arith.constant 0 : index
    %3 = vector.load %arg6[%c0, %c0_1] : memref<256x64xf32, #tpu.memory_space<vmem>>, vector<256x64xf32>
    %c0_2 = arith.constant 0 : index
    %c0_3 = arith.constant 0 : index
    %4 = vector.load %arg3[%c0_2, %c0_3] : memref<256x128xbf16, #tpu.memory_space<vmem>>, vector<256x128xbf16>
    %c0_4 = arith.constant 0 : index
    %c0_5 = arith.constant 0 : index
    %5 = vector.load %arg4[%c0_4, %c0_5] : memref<128x64xbf16, #tpu.memory_space<vmem>>, vector<128x64xbf16>
    %cst = arith.constant dense<0.000000e+00> : vector<256x64xf32>
    %6 = tpu.matmul %4, %5, %cst {dimension_numbers = #tpu.dot_dimension_numbers<[1], [0], [0], [1], [0, 0, 1, 1], [], []>} : vector<256x128xbf16>, vector<128x64xbf16>, vector<256x64xf32> -> vector<256x64xf32>
    %7 = arith.addf %3, %6 : vector<256x64xf32>
    %c0_6 = arith.constant 0 : index
    %c0_7 = arith.constant 0 : index
    %8 = vector.load %arg6[%c0_6, %c0_7] : memref<256x64xf32, #tpu.memory_space<vmem>>, vector<256x64xf32>
    tpu.vector_store %arg6[%c0_6, %c0_7], %7 {strides = array<i32>} : memref<256x64xf32, #tpu.memory_space<vmem>>, vector<256x64xf32>,
    %c4_i32 = arith.constant 4 : i32
    %9 = arith.cmpi eq, %arg2, %c4_i32 : i32
    %10 = arith.extui %9 : i1 to i32
    %c0_i32_8 = arith.constant 0 : i32
    %11 = arith.cmpi ne, %10, %c0_i32_8 : i32
    scf.if %11 {
      %c0_9 = arith.constant 0 : index
      %c0_10 = arith.constant 0 : index
      %12 = vector.load %arg6[%c0_9, %c0_10] : memref<256x64xf32, #tpu.memory_space<vmem>>, vector<256x64xf32>
      %c0_11 = arith.constant 0 : index
      %c0_12 = arith.constant 0 : index
      %13 = vector.load %arg5[%c0_11, %c0_12] : memref<256x64xf32, #tpu.memory_space<vmem>>, vector<256x64xf32>
      tpu.vector_store %arg5[%c0_11, %c0_12], %12 {strides = array<i32>} : memref<256x64xf32, #tpu.memory_space<vmem>>, vector<256x64xf32>,
    } else {
    }
    return
  }
  func.func @transform_0(%arg0: i32, %arg1: i32, %arg2: i32) -> (i32, i32) {
    %c0_i32 = arith.constant 0 : i32
    return %arg0, %arg2 : i32, i32
  }
  func.func @transform_1(%arg0: i32, %arg1: i32, %arg2: i32) -> (i32, i32) {
    %c0_i32 = arith.constant 0 : i32
    return %arg2, %arg1 : i32, i32
  }
  func.func @transform_2(%arg0: i32, %arg1: i32, %arg2: i32) -> (i32, i32) {
    %c0_i32 = arith.constant 0 : i32
    return %arg0, %arg1 : i32, i32
  }
}

module attributes {stable_mosaic.version = 11 : i64} {
  func.func @_affine_combine_kernel(%arg0: i32, %arg1: memref<512x64xf32, #tpu.memory_space<vmem>>, %arg2: memref<1x64xf32, #tpu.memory_space<vmem>>, %arg3: memref<1x64xf32, #tpu.memory_space<vmem>>, %arg4: memref<512x64xf32, #tpu.memory_space<vmem>>, %arg5: memref<1x64xf32, #tpu.memory_space<vmem>>, %arg6: memref<1x64xf32, #tpu.memory_space<vmem>>, %arg7: memref<512x64xf32, #tpu.memory_space<vmem>>) attributes {dimension_semantics = [#tpu.dimension_semantics<parallel>], iteration_bounds = array<i64: 1>, scalar_prefetch = 0 : i64, scratch_operands = 0 : i64, tpu.core_type = #tpu.core_type<tc>, window_params = [{transform_indices = @transform_0, window_bounds = array<i64: 512, 64>}, {pipeline_mode = #tpu.pipeline_mode<synchronous>, transform_indices = @transform_1, window_bounds = array<i64: 1, 64>}, {pipeline_mode = #tpu.pipeline_mode<synchronous>, transform_indices = @transform_2, window_bounds = array<i64: 1, 64>}, {transform_indices = @transform_3, window_bounds = array<i64: 512, 64>}, {pipeline_mode = #tpu.pipeline_mode<synchronous>, transform_indices = @transform_4, window_bounds = array<i64: 1, 64>}, {pipeline_mode = #tpu.pipeline_mode<synchronous>, transform_indices = @transform_5, window_bounds = array<i64: 1, 64>}, {transform_indices = @transform_6, window_bounds = array<i64: 512, 64>}]} {
    %c0 = arith.constant 0 : index
    %c0_0 = arith.constant 0 : index
    %0 = vector.load %arg1[%c0, %c0_0] : memref<512x64xf32, #tpu.memory_space<vmem>>, vector<512x64xf32>
    %c0_1 = arith.constant 0 : index
    %c0_2 = arith.constant 0 : index
    %1 = vector.load %arg2[%c0_1, %c0_2] : memref<1x64xf32, #tpu.memory_space<vmem>>, vector<1x64xf32>
    %2 = vector.broadcast %1 : vector<1x64xf32> to vector<512x64xf32>
    %3 = arith.mulf %0, %2 : vector<512x64xf32>
    %c0_3 = arith.constant 0 : index
    %c0_4 = arith.constant 0 : index
    %4 = vector.load %arg3[%c0_3, %c0_4] : memref<1x64xf32, #tpu.memory_space<vmem>>, vector<1x64xf32>
    %5 = vector.broadcast %4 : vector<1x64xf32> to vector<512x64xf32>
    %6 = arith.addf %3, %5 : vector<512x64xf32>
    %cst = arith.constant 0.000000e+00 : f32
    %7 = vector.broadcast %cst : f32 to vector<512x64xf32>
    %8 = arith.maximumf %6, %7 : vector<512x64xf32>
    %c0_5 = arith.constant 0 : index
    %c0_6 = arith.constant 0 : index
    %9 = vector.load %arg4[%c0_5, %c0_6] : memref<512x64xf32, #tpu.memory_space<vmem>>, vector<512x64xf32>
    %c0_7 = arith.constant 0 : index
    %c0_8 = arith.constant 0 : index
    %10 = vector.load %arg5[%c0_7, %c0_8] : memref<1x64xf32, #tpu.memory_space<vmem>>, vector<1x64xf32>
    %11 = vector.broadcast %10 : vector<1x64xf32> to vector<512x64xf32>
    %12 = arith.mulf %9, %11 : vector<512x64xf32>
    %c0_9 = arith.constant 0 : index
    %c0_10 = arith.constant 0 : index
    %13 = vector.load %arg6[%c0_9, %c0_10] : memref<1x64xf32, #tpu.memory_space<vmem>>, vector<1x64xf32>
    %14 = vector.broadcast %13 : vector<1x64xf32> to vector<512x64xf32>
    %15 = arith.addf %12, %14 : vector<512x64xf32>
    %16 = arith.addf %8, %15 : vector<512x64xf32>
    %c0_11 = arith.constant 0 : index
    %c0_12 = arith.constant 0 : index
    %17 = vector.load %arg7[%c0_11, %c0_12] : memref<512x64xf32, #tpu.memory_space<vmem>>, vector<512x64xf32>
    tpu.vector_store %arg7[%c0_11, %c0_12], %16 {strides = array<i32>} : memref<512x64xf32, #tpu.memory_space<vmem>>, vector<512x64xf32>,
    return
  }
  func.func @transform_0(%arg0: i32) -> (i32, i32) {
    %c0_i32 = arith.constant 0 : i32
    %c0_i32_0 = arith.constant 0 : i32
    return %arg0, %c0_i32 : i32, i32
  }
  func.func @transform_1(%arg0: i32) -> (i32, i32) {
    %c0_i32 = arith.constant 0 : i32
    %c0_i32_0 = arith.constant 0 : i32
    %c0_i32_1 = arith.constant 0 : i32
    return %c0_i32, %c0_i32_0 : i32, i32
  }
  func.func @transform_2(%arg0: i32) -> (i32, i32) {
    %c0_i32 = arith.constant 0 : i32
    %c0_i32_0 = arith.constant 0 : i32
    %c0_i32_1 = arith.constant 0 : i32
    return %c0_i32, %c0_i32_0 : i32, i32
  }
  func.func @transform_3(%arg0: i32) -> (i32, i32) {
    %c0_i32 = arith.constant 0 : i32
    %c0_i32_0 = arith.constant 0 : i32
    return %arg0, %c0_i32 : i32, i32
  }
  func.func @transform_4(%arg0: i32) -> (i32, i32) {
    %c0_i32 = arith.constant 0 : i32
    %c0_i32_0 = arith.constant 0 : i32
    %c0_i32_1 = arith.constant 0 : i32
    return %c0_i32, %c0_i32_0 : i32, i32
  }
  func.func @transform_5(%arg0: i32) -> (i32, i32) {
    %c0_i32 = arith.constant 0 : i32
    %c0_i32_0 = arith.constant 0 : i32
    %c0_i32_1 = arith.constant 0 : i32
    return %c0_i32, %c0_i32_0 : i32, i32
  }
  func.func @transform_6(%arg0: i32) -> (i32, i32) {
    %c0_i32 = arith.constant 0 : i32
    %c0_i32_0 = arith.constant 0 : i32
    return %arg0, %c0_i32 : i32, i32
  }
}

</mosaic_0001>

<llo_original>
// kernel: fwd.12
$region0: #{fwd.12}
  #allocation0 [shape = 'u32[]', space=smem, size = 0x4, offset = 0x4, fixed_abs, tag = 'smem constant byte address 0x4 - core index']
  #allocation1 [shape = 'u32[72,128]{1,0:T(1,128)}', space=vmem, size = 0x9000, scoped, tag = 'internal scratch']
  %s0 = inlined_call_operand.vmem [shape: f32[512,64], index: 0, kind: input, shape index: {}]
  %s1 = inlined_call_operand.vmem [shape: f32[1,64], index: 1, kind: input, shape index: {}]
  %s2 = inlined_call_operand.vmem [shape: f32[1,64], index: 2, kind: input, shape index: {}]
  %s3 = inlined_call_operand.vmem [shape: f32[512,64], index: 3, kind: output, shape index: {}]
  %s4 = sld [smem:[#allocation0]]
  $region22: #{fwd.12} parent=0
    _
  %s6 = ssub.s32 1, %s4
  %s7 = scalar_select 0, %s6, %s4
  // Predicated region
  $region2: #{fwd.12} parent=0 // pred_check
    _
  $region3: #{fwd.12} parent=0 // pred_check_branch
    %9 = sbr.rel (0) target = $region5
  $region4: #{fwd.12} parent=0 // pred_region
    _
  $region5: #{fwd.12} parent=0 // pred_fallthru
    _
  // Predicated region
  $region6: #{fwd.12} parent=0 // pred_check
    _
  $region7: #{fwd.12} parent=0 // pred_check_branch
    %11 = sbr.rel (0) target = $region9
  $region8: #{fwd.12} parent=0 // pred_region
    _
  $region9: #{fwd.12} parent=0 // pred_fallthru
    _
  // Predicated region
  $region10: #{fwd.12} parent=0 // pred_check
    _
  $region11: #{fwd.12} parent=0 // pred_check_branch
    %13 = sbr.rel (0) target = $region13
  $region12: #{fwd.12} parent=0 // pred_region
    _
  $region13: #{fwd.12} parent=0 // pred_fallthru
    _
  %v14 = vld [vmem:[%s0] sm:$0xff]
  %v15 = vld [vmem:[%s0 + $0x8] sm:$0xff]
  %v16 = vld [vmem:[%s0 + $0x10] sm:$0xff]
  %v17 = vld [vmem:[%s0 + $0x18] sm:$0xff]
  %v18 = vld [vmem:[%s0 + $0x20] sm:$0xff]
  %v19 = vld [vmem:[%s0 + $0x28] sm:$0xff]
  %v20 = vld [vmem:[%s0 + $0x30] sm:$0xff]
  %v21 = vld [vmem:[%s0 + $0x38] sm:$0xff]
  %v22 = vld [vmem:[%s0 + $0x40] sm:$0xff]
  %v23 = vld [vmem:[%s0 + $0x48] sm:$0xff]
  %v24 = vld [vmem:[%s0 + $0x50] sm:$0xff]
  %v25 = vld [vmem:[%s0 + $0x58] sm:$0xff]
  %v26 = vld [vmem:[%s0 + $0x60] sm:$0xff]
  %v27 = vld [vmem:[%s0 + $0x68] sm:$0xff]
  %v28 = vld [vmem:[%s0 + $0x70] sm:$0xff]
  %v29 = vld [vmem:[%s0 + $0x78] sm:$0xff]
  %v30 = vld [vmem:[%s0 + $0x80] sm:$0xff]
  %v31 = vld [vmem:[%s0 + $0x88] sm:$0xff]
  %v32 = vld [vmem:[%s0 + $0x90] sm:$0xff]
  %v33 = vld [vmem:[%s0 + $0x98] sm:$0xff]
  %v34 = vld [vmem:[%s0 + $0xa0] sm:$0xff]
  %v35 = vld [vmem:[%s0 + $0xa8] sm:$0xff]
  %v36 = vld [vmem:[%s0 + $0xb0] sm:$0xff]
  %v37 = vld [vmem:[%s0 + $0xb8] sm:$0xff]
  %v38 = vld [vmem:[%s0 + $0xc0] sm:$0xff]
  %v39 = vld [vmem:[%s0 + $0xc8] sm:$0xff]
  %v40 = vld [vmem:[%s0 + $0xd0] sm:$0xff]
  %v41 = vld [vmem:[%s0 + $0xd8] sm:$0xff]
  %v42 = vld [vmem:[%s0 + $0xe0] sm:$0xff]
  %v43 = vld [vmem:[%s0 + $0xe8] sm:$0xff]
  %v44 = vld [vmem:[%s0 + $0xf0] sm:$0xff]
  %v45 = vld [vmem:[%s0 + $0xf8] sm:$0xff]
  %v46 = vld [vmem:[%s0 + $0x100] sm:$0xff]
  %v47 = vld [vmem:[%s0 + $0x108] sm:$0xff]
  %v48 = vld [vmem:[%s0 + $0x110] sm:$0xff]
  %v49 = vld [vmem:[%s0 + $0x118] sm:$0xff]
  %v50 = vld [vmem:[%s0 + $0x120] sm:$0xff]
  %v51 = vld [vmem:[%s0 + $0x128] sm:$0xff]
  %v52 = vld [vmem:[%s0 + $0x130] sm:$0xff]
  %v53 = vld [vmem:[%s0 + $0x138] sm:$0xff]
  %v54 = vld [vmem:[%s0 + $0x140] sm:$0xff]
  %v55 = vld [vmem:[%s0 + $0x148] sm:$0xff]
  %v56 = vld [vmem:[%s0 + $0x150] sm:$0xff]
  %v57 = vld [vmem:[%s0 + $0x158] sm:$0xff]
  %v58 = vld [vmem:[%s0 + $0x160] sm:$0xff]
  %v59 = vld [vmem:[%s0 + $0x168] sm:$0xff]
  %v60 = vld [vmem:[%s0 + $0x170] sm:$0xff]
  %v61 = vld [vmem:[%s0 + $0x178] sm:$0xff]
  %v62 = vld [vmem:[%s0 + $0x180] sm:$0xff]
  %v63 = vld [vmem:[%s0 + $0x188] sm:$0xff]
  %v64 = vld [vmem:[%s0 + $0x190] sm:$0xff]
  %v65 = vld [vmem:[%s0 + $0x198] sm:$0xff]
  %v66 = vld [vmem:[%s0 + $0x1a0] sm:$0xff]
  %v67 = vld [vmem:[%s0 + $0x1a8] sm:$0xff]
  %v68 = vld [vmem:[%s0 + $0x1b0] sm:$0xff]
  %v69 = vld [vmem:[%s0 + $0x1b8] sm:$0xff]
  %v70 = vld [vmem:[%s0 + $0x1c0] sm:$0xff]
  %v71 = vld [vmem:[%s0 + $0x1c8] sm:$0xff]
  %v72 = vld [vmem:[%s0 + $0x1d0] sm:$0xff]
  %v73 = vld [vmem:[%s0 + $0x1d8] sm:$0xff]
  %v74 = vld [vmem:[%s0 + $0x1e0] sm:$0xff]
  %v75 = vld [vmem:[%s0 + $0x1e8] sm:$0xff]
  %v76 = vld [vmem:[%s0 + $0x1f0] sm:$0xff]
  %v77 = vld [vmem:[%s0 + $0x1f8] sm:$0xff]
  %v78 = vld [vmem:[%s1] sm:$0x1]
  %v80 = vperm.slane %v78, 0
  %v82 = vmul.f32 %v14, %v80
  %v83 = vmul.f32 %v15, %v80
  %v84 = vmul.f32 %v16, %v80
  %v85 = vmul.f32 %v17, %v80
  %v86 = vmul.f32 %v18, %v80
  %v87 = vmul.f32 %v19, %v80
  %v88 = vmul.f32 %v20, %v80
  %v89 = vmul.f32 %v21, %v80
  %v90 = vmul.f32 %v22, %v80
  %v91 = vmul.f32 %v23, %v80
  %v92 = vmul.f32 %v24, %v80
  %v93 = vmul.f32 %v25, %v80
  %v94 = vmul.f32 %v26, %v80
  %v95 = vmul.f32 %v27, %v80
  %v96 = vmul.f32 %v28, %v80
  %v97 = vmul.f32 %v29, %v80
  %v98 = vmul.f32 %v30, %v80
  %v99 = vmul.f32 %v31, %v80
  %v100 = vmul.f32 %v32, %v80
  %v101 = vmul.f32 %v33, %v80
  %v102 = vmul.f32 %v34, %v80
  %v103 = vmul.f32 %v35, %v80
  %v104 = vmul.f32 %v36, %v80
  %v105 = vmul.f32 %v37, %v80
  %v106 = vmul.f32 %v38, %v80
  %v107 = vmul.f32 %v39, %v80
  %v108 = vmul.f32 %v40, %v80
  %v109 = vmul.f32 %v41, %v80
  %v110 = vmul.f32 %v42, %v80
  %v111 = vmul.f32 %v43, %v80
  %v112 = vmul.f32 %v44, %v80
  %v113 = vmul.f32 %v45, %v80
  %v114 = vmul.f32 %v46, %v80
  %v115 = vmul.f32 %v47, %v80
  %v116 = vmul.f32 %v48, %v80
  %v117 = vmul.f32 %v49, %v80
  %v118 = vmul.f32 %v50, %v80
  %v119 = vmul.f32 %v51, %v80
  %v120 = vmul.f32 %v52, %v80
  %v121 = vmul.f32 %v53, %v80
  %v122 = vmul.f32 %v54, %v80
  %v123 = vmul.f32 %v55, %v80
  %v124 = vmul.f32 %v56, %v80
  %v125 = vmul.f32 %v57, %v80
  %v126 = vmul.f32 %v58, %v80
  %v127 = vmul.f32 %v59, %v80
  %v128 = vmul.f32 %v60, %v80
  %v129 = vmul.f32 %v61, %v80
  %v130 = vmul.f32 %v62, %v80
  %v131 = vmul.f32 %v63, %v80
  %v132 = vmul.f32 %v64, %v80
  %v133 = vmul.f32 %v65, %v80
  %v134 = vmul.f32 %v66, %v80
  %v135 = vmul.f32 %v67, %v80
  %v136 = vmul.f32 %v68, %v80
  %v137 = vmul.f32 %v69, %v80
  %v138 = vmul.f32 %v70, %v80
  %v139 = vmul.f32 %v71, %v80
  %v140 = vmul.f32 %v72, %v80
  %v141 = vmul.f32 %v73, %v80
  %v142 = vmul.f32 %v74, %v80
  %v143 = vmul.f32 %v75, %v80
  %v144 = vmul.f32 %v76, %v80
  %v145 = vmul.f32 %v77, %v80
  %v146 = vld [vmem:[%s2] sm:$0x1]
  %v148 = vperm.slane %v146, 0
  %v150 = vadd.f32 %v82, %v148
  %v151 = vadd.f32 %v83, %v148
  %v152 = vadd.f32 %v84, %v148
  %v153 = vadd.f32 %v85, %v148
  %v154 = vadd.f32 %v86, %v148
  %v155 = vadd.f32 %v87, %v148
  %v156 = vadd.f32 %v88, %v148
  %v157 = vadd.f32 %v89, %v148
  %v158 = vadd.f32 %v90, %v148
  %v159 = vadd.f32 %v91, %v148
  %v160 = vadd.f32 %v92, %v148
  %v161 = vadd.f32 %v93, %v148
  %v162 = vadd.f32 %v94, %v148
  %v163 = vadd.f32 %v95, %v148
  %v164 = vadd.f32 %v96, %v148
  %v165 = vadd.f32 %v97, %v148
  %v166 = vadd.f32 %v98, %v148
  %v167 = vadd.f32 %v99, %v148
  %v168 = vadd.f32 %v100, %v148
  %v169 = vadd.f32 %v101, %v148
  %v170 = vadd.f32 %v102, %v148
  %v171 = vadd.f32 %v103, %v148
  %v172 = vadd.f32 %v104, %v148
  %v173 = vadd.f32 %v105, %v148
  %v174 = vadd.f32 %v106, %v148
  %v175 = vadd.f32 %v107, %v148
  %v176 = vadd.f32 %v108, %v148
  %v177 = vadd.f32 %v109, %v148
  %v178 = vadd.f32 %v110, %v148
  %v179 = vadd.f32 %v111, %v148
  %v180 = vadd.f32 %v112, %v148
  %v181 = vadd.f32 %v113, %v148
  %v182 = vadd.f32 %v114, %v148
  %v183 = vadd.f32 %v115, %v148
  %v184 = vadd.f32 %v116, %v148
  %v185 = vadd.f32 %v117, %v148
  %v186 = vadd.f32 %v118, %v148
  %v187 = vadd.f32 %v119, %v148
  %v188 = vadd.f32 %v120, %v148
  %v189 = vadd.f32 %v121, %v148
  %v190 = vadd.f32 %v122, %v148
  %v191 = vadd.f32 %v123, %v148
  %v192 = vadd.f32 %v124, %v148
  %v193 = vadd.f32 %v125, %v148
  %v194 = vadd.f32 %v126, %v148
  %v195 = vadd.f32 %v127, %v148
  %v196 = vadd.f32 %v128, %v148
  %v197 = vadd.f32 %v129, %v148
  %v198 = vadd.f32 %v130, %v148
  %v199 = vadd.f32 %v131, %v148
  %v200 = vadd.f32 %v132, %v148
  %v201 = vadd.f32 %v133, %v148
  %v202 = vadd.f32 %v134, %v148
  %v203 = vadd.f32 %v135, %v148
  %v204 = vadd.f32 %v136, %v148
  %v205 = vadd.f32 %v137, %v148
  %v206 = vadd.f32 %v138, %v148
  %v207 = vadd.f32 %v139, %v148
  %v208 = vadd.f32 %v140, %v148
  %v209 = vadd.f32 %v141, %v148
  %v210 = vadd.f32 %v142, %v148
  %v211 = vadd.f32 %v143, %v148
  %v212 = vadd.f32 %v144, %v148
  %v213 = vadd.f32 %v145, %v148
  %v214 = vmax.f32 %v150, 0.0
  %v215 = vmax.f32 %v151, 0.0
  %v216 = vmax.f32 %v152, 0.0
  %v217 = vmax.f32 %v153, 0.0
  %v218 = vmax.f32 %v154, 0.0
  %v219 = vmax.f32 %v155, 0.0
  %v220 = vmax.f32 %v156, 0.0
  %v221 = vmax.f32 %v157, 0.0
  %v222 = vmax.f32 %v158, 0.0
  %v223 = vmax.f32 %v159, 0.0
  %v224 = vmax.f32 %v160, 0.0
  %v225 = vmax.f32 %v161, 0.0
  %v226 = vmax.f32 %v162, 0.0
  %v227 = vmax.f32 %v163, 0.0
  %v228 = vmax.f32 %v164, 0.0
  %v229 = vmax.f32 %v165, 0.0
  %v230 = vmax.f32 %v166, 0.0
  %v231 = vmax.f32 %v167, 0.0
  %v232 = vmax.f32 %v168, 0.0
  %v233 = vmax.f32 %v169, 0.0
  %v234 = vmax.f32 %v170, 0.0
  %v235 = vmax.f32 %v171, 0.0
  %v236 = vmax.f32 %v172, 0.0
  %v237 = vmax.f32 %v173, 0.0
  %v238 = vmax.f32 %v174, 0.0
  %v239 = vmax.f32 %v175, 0.0
  %v240 = vmax.f32 %v176, 0.0
  %v241 = vmax.f32 %v177, 0.0
  %v242 = vmax.f32 %v178, 0.0
  %v243 = vmax.f32 %v179, 0.0
  %v244 = vmax.f32 %v180, 0.0
  %v245 = vmax.f32 %v181, 0.0
  %v246 = vmax.f32 %v182, 0.0
  %v247 = vmax.f32 %v183, 0.0
  %v248 = vmax.f32 %v184, 0.0
  %v249 = vmax.f32 %v185, 0.0
  %v250 = vmax.f32 %v186, 0.0
  %v251 = vmax.f32 %v187, 0.0
  %v252 = vmax.f32 %v188, 0.0
  %v253 = vmax.f32 %v189, 0.0
  %v254 = vmax.f32 %v190, 0.0
  %v255 = vmax.f32 %v191, 0.0
  %v256 = vmax.f32 %v192, 0.0
  %v257 = vmax.f32 %v193, 0.0
  %v258 = vmax.f32 %v194, 0.0
  %v259 = vmax.f32 %v195, 0.0
  %v260 = vmax.f32 %v196, 0.0
  %v261 = vmax.f32 %v197, 0.0
  %v262 = vmax.f32 %v198, 0.0
  %v263 = vmax.f32 %v199, 0.0
  %v264 = vmax.f32 %v200, 0.0
  %v265 = vmax.f32 %v201, 0.0
  %v266 = vmax.f32 %v202, 0.0
  %v267 = vmax.f32 %v203, 0.0
  %v268 = vmax.f32 %v204, 0.0
  %v269 = vmax.f32 %v205, 0.0
  %v270 = vmax.f32 %v206, 0.0
  %v271 = vmax.f32 %v207, 0.0
  %v272 = vmax.f32 %v208, 0.0
  %v273 = vmax.f32 %v209, 0.0
  %v274 = vmax.f32 %v210, 0.0
  %v275 = vmax.f32 %v211, 0.0
  %v276 = vmax.f32 %v212, 0.0
  %v277 = vmax.f32 %v213, 0.0
  %vm278 = vcmask 523264
  %279 = vst.msk [vmem:[%s3] sm:$0xff] %vm278, %v214
  %280 = vst.msk [vmem:[%s3 + $0x8] sm:$0xff] %vm278, %v215
  %281 = vst.msk [vmem:[%s3 + $0x10] sm:$0xff] %vm278, %v216
  %282 = vst.msk [vmem:[%s3 + $0x18] sm:$0xff] %vm278, %v217
  %283 = vst.msk [vmem:[%s3 + $0x20] sm:$0xff] %vm278, %v218
  %284 = vst.msk [vmem:[%s3 + $0x28] sm:$0xff] %vm278, %v219
  %285 = vst.msk [vmem:[%s3 + $0x30] sm:$0xff] %vm278, %v220
  %286 = vst.msk [vmem:[%s3 + $0x38] sm:$0xff] %vm278, %v221
  %287 = vst.msk [vmem:[%s3 + $0x40] sm:$0xff] %vm278, %v222
  %288 = vst.msk [vmem:[%s3 + $0x48] sm:$0xff] %vm278, %v223
  %289 = vst.msk [vmem:[%s3 + $0x50] sm:$0xff] %vm278, %v224
  %290 = vst.msk [vmem:[%s3 + $0x58] sm:$0xff] %vm278, %v225
  %291 = vst.msk [vmem:[%s3 + $0x60] sm:$0xff] %vm278, %v226
  %292 = vst.msk [vmem:[%s3 + $0x68] sm:$0xff] %vm278, %v227
  %293 = vst.msk [vmem:[%s3 + $0x70] sm:$0xff] %vm278, %v228
  %294 = vst.msk [vmem:[%s3 + $0x78] sm:$0xff] %vm278, %v229
  %295 = vst.msk [vmem:[%s3 + $0x80] sm:$0xff] %vm278, %v230
  %296 = vst.msk [vmem:[%s3 + $0x88] sm:$0xff] %vm278, %v231
  %297 = vst.msk [vmem:[%s3 + $0x90] sm:$0xff] %vm278, %v232
  %298 = vst.msk [vmem:[%s3 + $0x98] sm:$0xff] %vm278, %v233
  %299 = vst.msk [vmem:[%s3 + $0xa0] sm:$0xff] %vm278, %v234
  %300 = vst.msk [vmem:[%s3 + $0xa8] sm:$0xff] %vm278, %v235
  %301 = vst.msk [vmem:[%s3 + $0xb0] sm:$0xff] %vm278, %v236
  %302 = vst.msk [vmem:[%s3 + $0xb8] sm:$0xff] %vm278, %v237
  %303 = vst.msk [vmem:[%s3 + $0xc0] sm:$0xff] %vm278, %v238
  %304 = vst.msk [vmem:[%s3 + $0xc8] sm:$0xff] %vm278, %v239
  %305 = vst.msk [vmem:[%s3 + $0xd0] sm:$0xff] %vm278, %v240
  %306 = vst.msk [vmem:[%s3 + $0xd8] sm:$0xff] %vm278, %v241
  %307 = vst.msk [vmem:[%s3 + $0xe0] sm:$0xff] %vm278, %v242
  %308 = vst.msk [vmem:[%s3 + $0xe8] sm:$0xff] %vm278, %v243
  %309 = vst.msk [vmem:[%s3 + $0xf0] sm:$0xff] %vm278, %v244
  %310 = vst.msk [vmem:[%s3 + $0xf8] sm:$0xff] %vm278, %v245
  %311 = vst.msk [vmem:[%s3 + $0x100] sm:$0xff] %vm278, %v246
  %312 = vst.msk [vmem:[%s3 + $0x108] sm:$0xff] %vm278, %v247
  %313 = vst.msk [vmem:[%s3 + $0x110] sm:$0xff] %vm278, %v248
  %314 = vst.msk [vmem:[%s3 + $0x118] sm:$0xff] %vm278, %v249
  %315 = vst.msk [vmem:[%s3 + $0x120] sm:$0xff] %vm278, %v250
  %316 = vst.msk [vmem:[%s3 + $0x128] sm:$0xff] %vm278, %v251
  %317 = vst.msk [vmem:[%s3 + $0x130] sm:$0xff] %vm278, %v252
  %318 = vst.msk [vmem:[%s3 + $0x138] sm:$0xff] %vm278, %v253
  %319 = vst.msk [vmem:[%s3 + $0x140] sm:$0xff] %vm278, %v254
  %320 = vst.msk [vmem:[%s3 + $0x148] sm:$0xff] %vm278, %v255
  %321 = vst.msk [vmem:[%s3 + $0x150] sm:$0xff] %vm278, %v256
  %322 = vst.msk [vmem:[%s3 + $0x158] sm:$0xff] %vm278, %v257
  %323 = vst.msk [vmem:[%s3 + $0x160] sm:$0xff] %vm278, %v258
  %324 = vst.msk [vmem:[%s3 + $0x168] sm:$0xff] %vm278, %v259
  %325 = vst.msk [vmem:[%s3 + $0x170] sm:$0xff] %vm278, %v260
  %326 = vst.msk [vmem:[%s3 + $0x178] sm:$0xff] %vm278, %v261
  %327 = vst.msk [vmem:[%s3 + $0x180] sm:$0xff] %vm278, %v262
  %328 = vst.msk [vmem:[%s3 + $0x188] sm:$0xff] %vm278, %v263
  %329 = vst.msk [vmem:[%s3 + $0x190] sm:$0xff] %vm278, %v264
  %330 = vst.msk [vmem:[%s3 + $0x198] sm:$0xff] %vm278, %v265
  %331 = vst.msk [vmem:[%s3 + $0x1a0] sm:$0xff] %vm278, %v266
  %332 = vst.msk [vmem:[%s3 + $0x1a8] sm:$0xff] %vm278, %v267
  %333 = vst.msk [vmem:[%s3 + $0x1b0] sm:$0xff] %vm278, %v268
  %334 = vst.msk [vmem:[%s3 + $0x1b8] sm:$0xff] %vm278, %v269
  %335 = vst.msk [vmem:[%s3 + $0x1c0] sm:$0xff] %vm278, %v270
  %336 = vst.msk [vmem:[%s3 + $0x1c8] sm:$0xff] %vm278, %v271
  %337 = vst.msk [vmem:[%s3 + $0x1d0] sm:$0xff] %vm278, %v272
  %338 = vst.msk [vmem:[%s3 + $0x1d8] sm:$0xff] %vm278, %v273
  %339 = vst.msk [vmem:[%s3 + $0x1e0] sm:$0xff] %vm278, %v274
  %340 = vst.msk [vmem:[%s3 + $0x1e8] sm:$0xff] %vm278, %v275
  %341 = vst.msk [vmem:[%s3 + $0x1f0] sm:$0xff] %vm278, %v276
  %342 = vst.msk [vmem:[%s3 + $0x1f8] sm:$0xff] %vm278, %v277
  // Predicated region
  $region14: #{fwd.12} parent=0 // pred_check
    _
  $region15: #{fwd.12} parent=0 // pred_check_branch
    %344 = sbr.rel (0) target = $region17
  $region16: #{fwd.12} parent=0 // pred_region
    _
  $region17: #{fwd.12} parent=0 // pred_fallthru
    _
  // Predicated region
  $region18: #{fwd.12} parent=0 // pred_check
    _
  $region19: #{fwd.12} parent=0 // pred_check_branch
    %346 = sbr.rel (0) target = $region21
  $region20: #{fwd.12} parent=0 // pred_region
    _
  $region21: #{fwd.12} parent=0 // pred_fallthru
    _

// kernel: fwd.10
$region0: #{fwd.10}
  #allocation0 [shape = 'u32[]', space=smem, size = 0x4, offset = 0x4, fixed_abs, tag = 'smem constant byte address 0x4 - core index']
  #allocation1 [shape = 'u32[72,128]{1,0:T(1,128)}', space=vmem, size = 0x9000, scoped, tag = 'internal scratch']
  #allocation2 [shape = 'f32[256,64]{1,0:T(8,128)}', space=vmem, size = 0x20000, scoped, tag = 'scratch operand']
  %s0 = inlined_call_operand.vmem [shape: bf16[512,128], index: 0, kind: input, shape index: {}]
  %s1 = inlined_call_operand.vmem [shape: bf16[128,64], index: 1, kind: input, shape index: {}]
  %s2 = inlined_call_operand.vmem [shape: f32[512,64], index: 2, kind: output, shape index: {}]
  %s3 = sld [smem:[#allocation0]]
  $region49: #{fwd.10} parent=0
    _
  %s5 = ssub.s32 1, %s3
  %s6 = scalar_select 0, %s5, %s3
  loop: start=0, step=1, limit=4
  $region2: #{fwd.10} parent=0 // loop_pre_header
    _
  $region3: #{fwd.10} parent=0 // loop_header
    %s8 = sphi 0, %s12
    %p9 = scmp.ge.s32.totalorder %s8, 4
    %s15 = sphi 0, %s34
    %s16 = sphi 0, %s30
    %s17 = sphi 0, %s26
    %s18 = sphi 0, %s15
    %s19 = sphi 0, %s16
    %s20 = sphi 0, %s17
    %s21 = sphi 0, %s18
    %s22 = sphi 0, %s19
    %s23 = sphi 0, %s20
    %s39 = sphi 0, %s41
    %s42 = sphi 0, %s39
    %s43 = sphi 0, %s42
    %s59 = sphi 0, %s43
    %s67 = sphi 0, %s69
    %s70 = sphi 0, %s67
    %s71 = sphi 0, %s70
    %s87 = sphi 0, %s71
    %s95 = sphi 0, %s97
    %s98 = sphi 0, %s95
    %s99 = sphi 0, %s98
    %s115 = sphi 0, %s99
  $region4: #{fwd.10} parent=0 // loop_header_branch
    %11 = sbr.rel (%p9) target = $region8
  $region5: #{fwd.10} parent=0 // loop_body
    %s13 = ssub.s32 %s8, 1
    %s14 = ssub.s32 %s8, 2
    %s24 = sadd.s32 1, %s17
    %p25 = scmp.ge.s32.totalorder %s24, 1
    %s26 = scalar_select %p25, 0, %s24
    %s27 = sadd.s32 1, %s16
    %s28 = scalar_select %p25, %s27, %s16
    %p29 = scmp.ge.s32.totalorder %s28, 1
    %s30 = scalar_select %p29, 0, %s28
    %s31 = sadd.s32 1, %s15
    %s32 = scalar_select %p29, %s31, %s15
    %p33 = scmp.ge.s32.totalorder %s32, 2
    %s34 = scalar_select %p33, 0, %s32
    %s35 = ssub.s32 %s15, %s34
    %s36 = ssub.s32 %s17, %s26
    %s37 = sor.u32 %s35, %s36
    %p38 = scmp.eq.s32.totalorder %s37, 0
    %s40 = sadd.s32 %s39, 1
    %s41 = scalar_select %p38, %s39, %s40
    %p44 = pneg %p38
    %p45 = scmp.eq.s32.totalorder %s8, 1
    %p46 = por %p44, %p45
    %p47 = scmp.ne.s32.totalorder %s39, %s42
    %p48 = scmp.eq.s32.totalorder %s8, 0
    %p49 = por %p47, %p48
    %p50 = scmp.ne.s32.totalorder %s39, %s42
    %p51 = scmp.eq.s32.totalorder %s13, 1
    %p52 = por %p50, %p51
    %p53 = scmp.ne.s32.totalorder %s42, %s43
    %p54 = scmp.eq.s32.totalorder %s13, 0
    %p55 = por %p53, %p54
    %p56 = scmp.ne.s32.totalorder %s42, %s43
    %p57 = scmp.eq.s32.totalorder %s14, 1
    %p58 = por %p56, %p57
    %p60 = scmp.ne.s32.totalorder %s43, %s59
    %p61 = scmp.eq.s32.totalorder %s14, 0
    %p62 = por %p60, %p61
    %s63 = ssub.s32 %s17, %s26
    %s64 = ssub.s32 %s16, %s30
    %s65 = sor.u32 %s63, %s64
    %p66 = scmp.eq.s32.totalorder %s65, 0
    %s68 = sadd.s32 %s67, 1
    %s69 = scalar_select %p66, %s67, %s68
    %p72 = pneg %p66
    %p73 = scmp.eq.s32.totalorder %s8, 1
    %p74 = por %p72, %p73
    %p75 = scmp.ne.s32.totalorder %s67, %s70
    %p76 = scmp.eq.s32.totalorder %s8, 0
    %p77 = por %p75, %p76
    %p78 = scmp.ne.s32.totalorder %s67, %s70
    %p79 = scmp.eq.s32.totalorder %s13, 1
    %p80 = por %p78, %p79
    %p81 = scmp.ne.s32.totalorder %s70, %s71
    %p82 = scmp.eq.s32.totalorder %s13, 0
    %p83 = por %p81, %p82
    %p84 = scmp.ne.s32.totalorder %s70, %s71
    %p85 = scmp.eq.s32.totalorder %s14, 1
    %p86 = por %p84, %p85
    %p88 = scmp.ne.s32.totalorder %s71, %s87
    %p89 = scmp.eq.s32.totalorder %s14, 0
    %p90 = por %p88, %p89
    %s91 = ssub.s32 %s15, %s34
    %s92 = ssub.s32 %s16, %s30
    %s93 = sor.u32 %s91, %s92
    %p94 = scmp.eq.s32.totalorder %s93, 0
    %s96 = sadd.s32 %s95, 1
    %s97 = scalar_select %p94, %s95, %s96
    %p100 = pneg %p94
    %p101 = scmp.eq.s32.totalorder %s8, 1
    %p102 = por %p100, %p101
    %p103 = scmp.ne.s32.totalorder %s95, %s98
    %p104 = scmp.eq.s32.totalorder %s8, 0
    %p105 = por %p103, %p104
    %p106 = scmp.ne.s32.totalorder %s95, %s98
    %p107 = scmp.eq.s32.totalorder %s13, 1
    %p108 = por %p106, %p107
    %p109 = scmp.ne.s32.totalorder %s98, %s99
    %p110 = scmp.eq.s32.totalorder %s13, 0
    %p111 = por %p109, %p110
    %p112 = scmp.ne.s32.totalorder %s98, %s99
    %p113 = scmp.eq.s32.totalorder %s14, 1
    %p114 = por %p112, %p113
    %p116 = scmp.ne.s32.totalorder %s99, %s115
    %p117 = scmp.eq.s32.totalorder %s14, 0
    %p118 = por %p116, %p117
    %p119 = scmp.le.s32.totalorder 1, %s8
    %p120 = scmp.lt.s32.totalorder %s8, 3
    %p121 = pnand %p119, %p120
    %p122 = pneg %p121
    // Predicated region
    $region9: #{fwd.10} parent=5 // pred_check
      _
    $region10: #{fwd.10} parent=5 // pred_check_branch
      %124 = sbr.rel (%p121) target = $region12
    $region11: #{fwd.10} parent=5 // pred_region
      %s125 = ssub.s32 %s8, 1
      // Predicated region
      $region13: #{fwd.10} parent=11 // pred_check
        %p126 = pneg %p83
      $region14: #{fwd.10} parent=11 // pred_check_branch
        %128 = sbr.rel (%p126) target = $region16
      $region15: #{fwd.10} parent=11 // pred_region
        %s129 = smul.u32 16, %s20
        %p130 = scmp.lt.s32.totalorder %s129, 15
        %s131 = scalar_select %p130, %s129, 15
        %p132 = scmp.lt.s32.totalorder %s19, 0
        %s133 = scalar_select %p132, %s19, 0
        %s134 = sadd.s32 %s133, %s131
        %s135 = smul.addr %s134, 4
        %s136 = scalar_lea.vmem %s1, %s135
        %s137 = smul.u32 16, %s20
      $region16: #{fwd.10} parent=11 // pred_fallthru
        _
    $region12: #{fwd.10} parent=5 // pred_fallthru
      _
    %p138 = scmp.lt.s32.totalorder %s8, 2
    // Predicated region
    $region17: #{fwd.10} parent=5 // pred_check
      %p139 = pneg %p138
    $region18: #{fwd.10} parent=5 // pred_check_branch
      %141 = sbr.rel (%p139) target = $region20
    $region19: #{fwd.10} parent=5 // pred_region
      // Predicated region
      $region21: #{fwd.10} parent=19 // pred_check
        %p142 = pneg %p49
      $region22: #{fwd.10} parent=19 // pred_check_branch
        %144 = sbr.rel (%p142) target = $region24
      $region23: #{fwd.10} parent=19 // pred_region
        %s145 = smul.u32 32, %s15
        %p146 = scmp.lt.s32.totalorder %s145, 63
        %s147 = scalar_select %p146, %s145, 63
        %p148 = scmp.lt.s32.totalorder %s17, 0
        %s149 = scalar_select %p148, %s17, 0
        %s150 = sadd.s32 %s149, %s147
        %s151 = smul.addr %s150, 4
        %s152 = scalar_lea.vmem %s0, %s151
        %s153 = smul.u32 32, %s15
      $region24: #{fwd.10} parent=19 // pred_fallthru
        _
    $region20: #{fwd.10} parent=5 // pred_fallthru
      _
    %p154 = scmp.le.s32.totalorder 1, %s8
    %p155 = scmp.lt.s32.totalorder %s8, 3
    %p156 = pnand %p154, %p155
    %p157 = pneg %p156
    // Predicated region
    $region25: #{fwd.10} parent=5 // pred_check
      _
    $region26: #{fwd.10} parent=5 // pred_check_branch
      %159 = sbr.rel (%p156) target = $region28
    $region27: #{fwd.10} parent=5 // pred_region
      %s160 = ssub.s32 %s8, 1
      %s161 = smul.u32 32, %s18
      %p162 = scmp.lt.s32.totalorder %s161, 63
      %s163 = scalar_select %p162, %s161, 63
      %p164 = scmp.lt.s32.totalorder %s20, 0
      %s165 = scalar_select %p164, %s20, 0
      %s166 = sadd.s32 %s165, %s163
      %s167 = smul.addr %s166, 4
      %s168 = scalar_lea.vmem %s0, %s167
      %p169 = pneg %p55
      %p170 = pneg %p52
      %s171 = smul.u32 16, %s20
      %p172 = scmp.lt.s32.totalorder %s171, 15
      %s173 = scalar_select %p172, %s171, 15
      %p174 = scmp.lt.s32.totalorder %s19, 0
      %s175 = scalar_select %p174, %s19, 0
      %s176 = sadd.s32 %s175, %s173
      %s177 = smul.addr %s176, 4
      %s178 = scalar_lea.vmem %s1, %s177
      %p179 = pneg %p83
      %p180 = pneg %p80
      %p181 = pneg %p111
      %p182 = pneg %p108
      %s183 = smul.u32 32, %s18
      %p184 = scmp.lt.s32.totalorder %s183, 63
      %s185 = scalar_select %p184, %s183, 63
      %p186 = scmp.lt.s32.totalorder %s19, 0
      %s187 = scalar_select %p186, %s19, 0
      %s188 = sadd.s32 %s187, %s185
      %s189 = smul.addr %s188, 8
      %s190 = scalar_lea.vmem %s2, %s189
      %s191 = smul.u32 32, %s18
      %p192 = scmp.lt.s32.totalorder %s191, 63
      %s193 = scalar_select %p192, %s191, 63
      %p194 = scmp.lt.s32.totalorder %s20, 0
      %s195 = scalar_select %p194, %s20, 0
      %s196 = sadd.s32 %s195, %s193
      %s197 = smul.addr %s196, 4
      %s198 = scalar_lea.vmem %s0, %s197
      %s199 = smul.u32 32, %s18
      %s200 = smul.u32 16, %s20
      %p201 = scmp.lt.s32.totalorder %s200, 15
      %s202 = scalar_select %p201, %s200, 15
      %p203 = scmp.lt.s32.totalorder %s19, 0
      %s204 = scalar_select %p203, %s19, 0
      %s205 = sadd.s32 %s204, %s202
      %s206 = smul.addr %s205, 4
      %s207 = scalar_lea.vmem %s1, %s206
      %s208 = smul.u32 16, %s20
      %s209 = smul.u32 32, %s18
      %p210 = scmp.lt.s32.totalorder %s209, 63
      %s211 = scalar_select %p210, %s209, 63
      %p212 = scmp.lt.s32.totalorder %s19, 0
      %s213 = scalar_select %p212, %s19, 0
      %s214 = sadd.s32 %s213, %s211
      %s215 = smul.addr %s214, 8
      %s216 = scalar_lea.vmem %s2, %s215
      %s217 = smul.u32 32, %s18
      %p218 = scmp.eq.s32.totalorder %s20, 0
      // Predicated region
      $region29: #{fwd.10} parent=27 // pred_check
        %p219 = pneg %p218
      $region30: #{fwd.10} parent=27 // pred_check_branch
        %221 = sbr.rel (%p219) target = $region32
      $region31: #{fwd.10} parent=27 // pred_region
        %vm222 = vcmask 523264
        %223 = vst.msk [vmem:[#allocation2] sm:$0xff] %vm222, 0.0
        %224 = vst.msk [vmem:[#allocation2 + $0x8] sm:$0xff] %vm222, 0.0
        %225 = vst.msk [vmem:[#allocation2 + $0x10] sm:$0xff] %vm222, 0.0
        %226 = vst.msk [vmem:[#allocation2 + $0x18] sm:$0xff] %vm222, 0.0
        %227 = vst.msk [vmem:[#allocation2 + $0x20] sm:$0xff] %vm222, 0.0
        %228 = vst.msk [vmem:[#allocation2 + $0x28] sm:$0xff] %vm222, 0.0
        %229 = vst.msk [vmem:[#allocation2 + $0x30] sm:$0xff] %vm222, 0.0
        %230 = vst.msk [vmem:[#allocation2 + $0x38] sm:$0xff] %vm222, 0.0
        %231 = vst.msk [vmem:[#allocation2 + $0x40] sm:$0xff] %vm222, 0.0
        %232 = vst.msk [vmem:[#allocation2 + $0x48] sm:$0xff] %vm222, 0.0
        %233 = vst.msk [vmem:[#allocation2 + $0x50] sm:$0xff] %vm222, 0.0
        %234 = vst.msk [vmem:[#allocation2 + $0x58] sm:$0xff] %vm222, 0.0
        %235 = vst.msk [vmem:[#allocation2 + $0x60] sm:$0xff] %vm222, 0.0
        %236 = vst.msk [vmem:[#allocation2 + $0x68] sm:$0xff] %vm222, 0.0
        %237 = vst.msk [vmem:[#allocation2 + $0x70] sm:$0xff] %vm222, 0.0
        %238 = vst.msk [vmem:[#allocation2 + $0x78] sm:$0xff] %vm222, 0.0
        %239 = vst.msk [vmem:[#allocation2 + $0x80] sm:$0xff] %vm222, 0.0
        %240 = vst.msk [vmem:[#allocation2 + $0x88] sm:$0xff] %vm222, 0.0
        %241 = vst.msk [vmem:[#allocation2 + $0x90] sm:$0xff] %vm222, 0.0
        %242 = vst.msk [vmem:[#allocation2 + $0x98] sm:$0xff] %vm222, 0.0
        %243 = vst.msk [vmem:[#allocation2 + $0xa0] sm:$0xff] %vm222, 0.0
        %244 = vst.msk [vmem:[#allocation2 + $0xa8] sm:$0xff] %vm222, 0.0
        %245 = vst.msk [vmem:[#allocation2 + $0xb0] sm:$0xff] %vm222, 0.0
        %246 = vst.msk [vmem:[#allocation2 + $0xb8] sm:$0xff] %vm222, 0.0
        %247 = vst.msk [vmem:[#allocation2 + $0xc0] sm:$0xff] %vm222, 0.0
        %248 = vst.msk [vmem:[#allocation2 + $0xc8] sm:$0xff] %vm222, 0.0
        %249 = vst.msk [vmem:[#allocation2 + $0xd0] sm:$0xff] %vm222, 0.0
        %250 = vst.msk [vmem:[#allocation2 + $0xd8] sm:$0xff] %vm222, 0.0
        %251 = vst.msk [vmem:[#allocation2 + $0xe0] sm:$0xff] %vm222, 0.0
        %252 = vst.msk [vmem:[#allocation2 + $0xe8] sm:$0xff] %vm222, 0.0
        %253 = vst.msk [vmem:[#allocation2 + $0xf0] sm:$0xff] %vm222, 0.0
        %254 = vst.msk [vmem:[#allocation2 + $0xf8] sm:$0xff] %vm222, 0.0
      $region32: #{fwd.10} parent=27 // pred_fallthru
        _
      %v255 = vld [vmem:[#allocation2] sm:$0xff]
      %v256 = vld [vmem:[#allocation2 + $0x8] sm:$0xff]
      %v257 = vld [vmem:[#allocation2 + $0x10] sm:$0xff]
      %v258 = vld [vmem:[#allocation2 + $0x18] sm:$0xff]
      %v259 = vld [vmem:[#allocation2 + $0x20] sm:$0xff]
      %v260 = vld [vmem:[#allocation2 + $0x28] sm:$0xff]
      %v261 = vld [vmem:[#allocation2 + $0x30] sm:$0xff]
      %v262 = vld [vmem:[#allocation2 + $0x38] sm:$0xff]
      %v263 = vld [vmem:[#allocation2 + $0x40] sm:$0xff]
      %v264 = vld [vmem:[#allocation2 + $0x48] sm:$0xff]
      %v265 = vld [vmem:[#allocation2 + $0x50] sm:$0xff]
      %v266 = vld [vmem:[#allocation2 + $0x58] sm:$0xff]
      %v267 = vld [vmem:[#allocation2 + $0x60] sm:$0xff]
      %v268 = vld [vmem:[#allocation2 + $0x68] sm:$0xff]
      %v269 = vld [vmem:[#allocation2 + $0x70] sm:$0xff]
      %v270 = vld [vmem:[#allocation2 + $0x78] sm:$0xff]
      %v271 = vld [vmem:[#allocation2 + $0x80] sm:$0xff]
      %v272 = vld [vmem:[#allocation2 + $0x88] sm:$0xff]
      %v273 = vld [vmem:[#allocation2 + $0x90] sm:$0xff]
      %v274 = vld [vmem:[#allocation2 + $0x98] sm:$0xff]
      %v275 = vld [vmem:[#allocation2 + $0xa0] sm:$0xff]
      %v276 = vld [vmem:[#allocation2 + $0xa8] sm:$0xff]
      %v277 = vld [vmem:[#allocation2 + $0xb0] sm:$0xff]
      %v278 = vld [vmem:[#allocation2 + $0xb8] sm:$0xff]
      %v279 = vld [vmem:[#allocation2 + $0xc0] sm:$0xff]
      %v280 = vld [vmem:[#allocation2 + $0xc8] sm:$0xff]
      %v281 = vld [vmem:[#allocation2 + $0xd0] sm:$0xff]
      %v282 = vld [vmem:[#allocation2 + $0xd8] sm:$0xff]
      %v283 = vld [vmem:[#allocation2 + $0xe0] sm:$0xff]
      %v284 = vld [vmem:[#allocation2 + $0xe8] sm:$0xff]
      %v285 = vld [vmem:[#allocation2 + $0xf0] sm:$0xff]
      %v286 = vld [vmem:[#allocation2 + $0xf8] sm:$0xff]
      %v287 = vld [vmem:[%s198] sm:$0xf]
      %v288 = vld [vmem:[%s198 + $0x4] sm:$0xf]
      %v289 = vld [vmem:[%s198 + $0x8] sm:$0xf]
      %v290 = vld [vmem:[%s198 + $0xc] sm:$0xf]
      %v291 = vld [vmem:[%s198 + $0x10] sm:$0xf]
      %v292 = vld [vmem:[%s198 + $0x14] sm:$0xf]
      %v293 = vld [vmem:[%s198 + $0x18] sm:$0xf]
      %v294 = vld [vmem:[%s198 + $0x1c] sm:$0xf]
      %v295 = vld [vmem:[%s198 + $0x20] sm:$0xf]
      %v296 = vld [vmem:[%s198 + $0x24] sm:$0xf]
      %v297 = vld [vmem:[%s198 + $0x28] sm:$0xf]
      %v298 = vld [vmem:[%s198 + $0x2c] sm:$0xf]
      %v299 = vld [vmem:[%s198 + $0x30] sm:$0xf]
      %v300 = vld [vmem:[%s198 + $0x34] sm:$0xf]
      %v301 = vld [vmem:[%s198 + $0x38] sm:$0xf]
      %v302 = vld [vmem:[%s198 + $0x3c] sm:$0xf]
      %v303 = vld [vmem:[%s198 + $0x40] sm:$0xf]
      %v304 = vld [vmem:[%s198 + $0x44] sm:$0xf]
      %v305 = vld [vmem:[%s198 + $0x48] sm:$0xf]
      %v306 = vld [vmem:[%s198 + $0x4c] sm:$0xf]
      %v307 = vld [vmem:[%s198 + $0x50] sm:$0xf]
      %v308 = vld [vmem:[%s198 + $0x54] sm:$0xf]
      %v309 = vld [vmem:[%s198 + $0x58] sm:$0xf]
      %v310 = vld [vmem:[%s198 + $0x5c] sm:$0xf]
      %v311 = vld [vmem:[%s198 + $0x60] sm:$0xf]
      %v312 = vld [vmem:[%s198 + $0x64] sm:$0xf]
      %v313 = vld [vmem:[%s198 + $0x68] sm:$0xf]
      %v314 = vld [vmem:[%s198 + $0x6c] sm:$0xf]
      %v315 = vld [vmem:[%s198 + $0x70] sm:$0xf]
      %v316 = vld [vmem:[%s198 + $0x74] sm:$0xf]
      %v317 = vld [vmem:[%s198 + $0x78] sm:$0xf]
      %v318 = vld [vmem:[%s198 + $0x7c] sm:$0xf]
      %v319 = vld [vmem:[%s207] sm:$0xf]
      %v320 = vld [vmem:[%s207 + $0x4] sm:$0xf]
      %v321 = vld [vmem:[%s207 + $0x8] sm:$0xf]
      %v322 = vld [vmem:[%s207 + $0xc] sm:$0xf]
      %v323 = vld [vmem:[%s207 + $0x10] sm:$0xf]
      %v324 = vld [vmem:[%s207 + $0x14] sm:$0xf]
      %v325 = vld [vmem:[%s207 + $0x18] sm:$0xf]
      %v326 = vld [vmem:[%s207 + $0x1c] sm:$0xf]
      %v327 = vld [vmem:[%s207 + $0x20] sm:$0xf]
      %v328 = vld [vmem:[%s207 + $0x24] sm:$0xf]
      %v329 = vld [vmem:[%s207 + $0x28] sm:$0xf]
      %v330 = vld [vmem:[%s207 + $0x2c] sm:$0xf]
      %v331 = vld [vmem:[%s207 + $0x30] sm:$0xf]
      %v332 = vld [vmem:[%s207 + $0x34] sm:$0xf]
      %v333 = vld [vmem:[%s207 + $0x38] sm:$0xf]
      %v334 = vld [vmem:[%s207 + $0x3c] sm:$0xf]
      %v367 = vunpack.c.l.b16 %v287
      %v368 = vunpack.c.l.b16 %v288
      %v369 = vunpack.c.l.b16 %v289
      %v370 = vunpack.c.l.b16 %v290
      %v371 = vunpack.c.l.b16 %v291
      %v372 = vunpack.c.l.b16 %v292
      %v373 = vunpack.c.l.b16 %v293
      %v374 = vunpack.c.l.b16 %v294
      %v375 = vunpack.c.l.b16 %v295
      %v376 = vunpack.c.l.b16 %v296
      %v377 = vunpack.c.l.b16 %v297
      %v378 = vunpack.c.l.b16 %v298
      %v379 = vunpack.c.l.b16 %v299
      %v380 = vunpack.c.l.b16 %v300
      %v381 = vunpack.c.l.b16 %v301
      %v382 = vunpack.c.l.b16 %v302
      %v383 = vunpack.c.l.b16 %v303
      %v384 = vunpack.c.l.b16 %v304
      %v385 = vunpack.c.l.b16 %v305
      %v386 = vunpack.c.l.b16 %v306
      %v387 = vunpack.c.l.b16 %v307
      %v388 = vunpack.c.l.b16 %v308
      %v389 = vunpack.c.l.b16 %v309
      %v390 = vunpack.c.l.b16 %v310
      %v391 = vunpack.c.l.b16 %v311
      %v392 = vunpack.c.l.b16 %v312
      %v393 = vunpack.c.l.b16 %v313
      %v394 = vunpack.c.l.b16 %v314
      %v395 = vunpack.c.l.b16 %v315
      %v396 = vunpack.c.l.b16 %v316
      %v397 = vunpack.c.l.b16 %v317
      %v398 = vunpack.c.l.b16 %v318
      %v399 = vpack.c.b16 %v368, %v367
      %v400 = vpack.c.b16 %v370, %v369
      %v401 = vpack.c.b16 %v372, %v371
      %v402 = vpack.c.b16 %v374, %v373
      %v403 = vpack.c.b16 %v376, %v375
      %v404 = vpack.c.b16 %v378, %v377
      %v405 = vpack.c.b16 %v380, %v379
      %v406 = vpack.c.b16 %v382, %v381
      %v407 = vpack.c.b16 %v384, %v383
      %v408 = vpack.c.b16 %v386, %v385
      %v409 = vpack.c.b16 %v388, %v387
      %v410 = vpack.c.b16 %v390, %v389
      %v411 = vpack.c.b16 %v392, %v391
      %v412 = vpack.c.b16 %v394, %v393
      %v413 = vpack.c.b16 %v396, %v395
      %v414 = vpack.c.b16 %v398, %v397
      %v447 = vunpack.c.l.b16 %v319
      %v448 = vunpack.c.l.b16 %v320
      %v449 = vunpack.c.l.b16 %v321
      %v450 = vunpack.c.l.b16 %v322
      %v451 = vunpack.c.l.b16 %v323
      %v452 = vunpack.c.l.b16 %v324
      %v453 = vunpack.c.l.b16 %v325
      %v454 = vunpack.c.l.b16 %v326
      %v455 = vunpack.c.l.b16 %v327
      %v456 = vunpack.c.l.b16 %v328
      %v457 = vunpack.c.l.b16 %v329
      %v458 = vunpack.c.l.b16 %v330
      %v459 = vunpack.c.l.b16 %v331
      %v460 = vunpack.c.l.b16 %v332
      %v461 = vunpack.c.l.b16 %v333
      %v462 = vunpack.c.l.b16 %v334
      %v463 = vpack.c.b16 %v448, %v447
      %v464 = vpack.c.b16 %v450, %v449
      %v465 = vpack.c.b16 %v452, %v451
      %v466 = vpack.c.b16 %v454, %v453
      %v467 = vpack.c.b16 %v456, %v455
      %v468 = vpack.c.b16 %v458, %v457
      %v469 = vpack.c.b16 %v460, %v459
      %v470 = vpack.c.b16 %v462, %v461
      %479 = vmatpush.bf16.msra.mxu0 %v470
      %480 = vmatpush.bf16.msra.mxu0 %v469
      %481 = vmatpush.bf16.msra.mxu0 %v468
      %482 = vmatpush.bf16.msra.mxu0 %v467
      %483 = vmatpush.bf16.msra.mxu0 %v466
      %484 = vmatpush.bf16.msra.mxu0 %v465
      %485 = vmatpush.bf16.msra.mxu0 %v464
      %486 = vmatpush.bf16.msra.mxu0 %v463
      %487 = vmatmul.bf16.gmra.mxu0 %v399
      %v488 = vpop.f32.mrf.mxu0
      %v489 = vadd.f32 0.0, %v488
      %v490 = vpop.f32.mrf.mxu0
      %v491 = vadd.f32 0.0, %v490
      %492 = vmatmul.bf16.gmra.mxu0 %v400
      %v493 = vpop.f32.mrf.mxu0
      %v494 = vadd.f32 0.0, %v493
      %v495 = vpop.f32.mrf.mxu0
      %v496 = vadd.f32 0.0, %v495
      %497 = vmatmul.bf16.gmra.mxu0 %v401
      %v498 = vpop.f32.mrf.mxu0
      %v499 = vadd.f32 0.0, %v498
      %v500 = vpop.f32.mrf.mxu0
      %v501 = vadd.f32 0.0, %v500
      %502 = vmatmul.bf16.gmra.mxu0 %v402
      %v503 = vpop.f32.mrf.mxu0
      %v504 = vadd.f32 0.0, %v503
      %v505 = vpop.f32.mrf.mxu0
      %v506 = vadd.f32 0.0, %v505
      %507 = vmatmul.bf16.gmra.mxu0 %v403
      %v508 = vpop.f32.mrf.mxu0
      %v509 = vadd.f32 0.0, %v508
      %v510 = vpop.f32.mrf.mxu0
      %v511 = vadd.f32 0.0, %v510
      %512 = vmatmul.bf16.gmra.mxu0 %v404
      %v513 = vpop.f32.mrf.mxu0
      %v514 = vadd.f32 0.0, %v513
      %v515 = vpop.f32.mrf.mxu0
      %v516 = vadd.f32 0.0, %v515
      %517 = vmatmul.bf16.gmra.mxu0 %v405
      %v518 = vpop.f32.mrf.mxu0
      %v519 = vadd.f32 0.0, %v518
      %v520 = vpop.f32.mrf.mxu0
      %v521 = vadd.f32 0.0, %v520
      %522 = vmatmul.bf16.gmra.mxu0 %v406
      %v523 = vpop.f32.mrf.mxu0
      %v524 = vadd.f32 0.0, %v523
      %v525 = vpop.f32.mrf.mxu0
      %v526 = vadd.f32 0.0, %v525
      %527 = vmatmul.bf16.gmra.mxu0 %v407
      %v528 = vpop.f32.mrf.mxu0
      %v529 = vadd.f32 0.0, %v528
      %v530 = vpop.f32.mrf.mxu0
      %v531 = vadd.f32 0.0, %v530
      %532 = vmatmul.bf16.gmra.mxu0 %v408
      %v533 = vpop.f32.mrf.mxu0
      %v534 = vadd.f32 0.0, %v533
      %v535 = vpop.f32.mrf.mxu0
      %v536 = vadd.f32 0.0, %v535
      %537 = vmatmul.bf16.gmra.mxu0 %v409
      %v538 = vpop.f32.mrf.mxu0
      %v539 = vadd.f32 0.0, %v538
      %v540 = vpop.f32.mrf.mxu0
      %v541 = vadd.f32 0.0, %v540
      %542 = vmatmul.bf16.gmra.mxu0 %v410
      %v543 = vpop.f32.mrf.mxu0
      %v544 = vadd.f32 0.0, %v543
      %v545 = vpop.f32.mrf.mxu0
      %v546 = vadd.f32 0.0, %v545
      %547 = vmatmul.bf16.gmra.mxu0 %v411
      %v548 = vpop.f32.mrf.mxu0
      %v549 = vadd.f32 0.0, %v548
      %v550 = vpop.f32.mrf.mxu0
      %v551 = vadd.f32 0.0, %v550
      %552 = vmatmul.bf16.gmra.mxu0 %v412
      %v553 = vpop.f32.mrf.mxu0
      %v554 = vadd.f32 0.0, %v553
      %v555 = vpop.f32.mrf.mxu0
      %v556 = vadd.f32 0.0, %v555
      %557 = vmatmul.bf16.gmra.mxu0 %v413
      %v558 = vpop.f32.mrf.mxu0
      %v559 = vadd.f32 0.0, %v558
      %v560 = vpop.f32.mrf.mxu0
      %v561 = vadd.f32 0.0, %v560
      %562 = vmatmul.bf16.gmra.mxu0 %v414
      %v563 = vpop.f32.mrf.mxu0
      %v564 = vadd.f32 0.0, %v563
      %v565 = vpop.f32.mrf.mxu0
      %v566 = vadd.f32 0.0, %v565
      %567 = vdwg.mxu0
      %v568 = vadd.f32 %v255, %v489
      %v569 = vadd.f32 %v256, %v491
      %v570 = vadd.f32 %v257, %v494
      %v571 = vadd.f32 %v258, %v496
      %v572 = vadd.f32 %v259, %v499
      %v573 = vadd.f32 %v260, %v501
      %v574 = vadd.f32 %v261, %v504
      %v575 = vadd.f32 %v262, %v506
      %v576 = vadd.f32 %v263, %v509
      %v577 = vadd.f32 %v264, %v511
      %v578 = vadd.f32 %v265, %v514
      %v579 = vadd.f32 %v266, %v516
      %v580 = vadd.f32 %v267, %v519
      %v581 = vadd.f32 %v268, %v521
      %v582 = vadd.f32 %v269, %v524
      %v583 = vadd.f32 %v270, %v526
      %v584 = vadd.f32 %v271, %v529
      %v585 = vadd.f32 %v272, %v531
      %v586 = vadd.f32 %v273, %v534
      %v587 = vadd.f32 %v274, %v536
      %v588 = vadd.f32 %v275, %v539
      %v589 = vadd.f32 %v276, %v541
      %v590 = vadd.f32 %v277, %v544
      %v591 = vadd.f32 %v278, %v546
      %v592 = vadd.f32 %v279, %v549
      %v593 = vadd.f32 %v280, %v551
      %v594 = vadd.f32 %v281, %v554
      %v595 = vadd.f32 %v282, %v556
      %v596 = vadd.f32 %v283, %v559
      %v597 = vadd.f32 %v284, %v561
      %v598 = vadd.f32 %v285, %v564
      %v599 = vadd.f32 %v286, %v566
      %vm600 = vcmask 523264
      %601 = vst.msk [vmem:[#allocation2] sm:$0xff] %vm600, %v568
      %602 = vst.msk [vmem:[#allocation2 + $0x8] sm:$0xff] %vm600, %v569
      %603 = vst.msk [vmem:[#allocation2 + $0x10] sm:$0xff] %vm600, %v570
      %604 = vst.msk [vmem:[#allocation2 + $0x18] sm:$0xff] %vm600, %v571
      %605 = vst.msk [vmem:[#allocation2 + $0x20] sm:$0xff] %vm600, %v572
      %606 = vst.msk [vmem:[#allocation2 + $0x28] sm:$0xff] %vm600, %v573
      %607 = vst.msk [vmem:[#allocation2 + $0x30] sm:$0xff] %vm600, %v574
      %608 = vst.msk [vmem:[#allocation2 + $0x38] sm:$0xff] %vm600, %v575
      %609 = vst.msk [vmem:[#allocation2 + $0x40] sm:$0xff] %vm600, %v576
      %610 = vst.msk [vmem:[#allocation2 + $0x48] sm:$0xff] %vm600, %v577
      %611 = vst.msk [vmem:[#allocation2 + $0x50] sm:$0xff] %vm600, %v578
      %612 = vst.msk [vmem:[#allocation2 + $0x58] sm:$0xff] %vm600, %v579
      %613 = vst.msk [vmem:[#allocation2 + $0x60] sm:$0xff] %vm600, %v580
      %614 = vst.msk [vmem:[#allocation2 + $0x68] sm:$0xff] %vm600, %v581
      %615 = vst.msk [vmem:[#allocation2 + $0x70] sm:$0xff] %vm600, %v582
      %616 = vst.msk [vmem:[#allocation2 + $0x78] sm:$0xff] %vm600, %v583
      %617 = vst.msk [vmem:[#allocation2 + $0x80] sm:$0xff] %vm600, %v584
      %618 = vst.msk [vmem:[#allocation2 + $0x88] sm:$0xff] %vm600, %v585
      %619 = vst.msk [vmem:[#allocation2 + $0x90] sm:$0xff] %vm600, %v586
      %620 = vst.msk [vmem:[#allocation2 + $0x98] sm:$0xff] %vm600, %v587
      %621 = vst.msk [vmem:[#allocation2 + $0xa0] sm:$0xff] %vm600, %v588
      %622 = vst.msk [vmem:[#allocation2 + $0xa8] sm:$0xff] %vm600, %v589
      %623 = vst.msk [vmem:[#allocation2 + $0xb0] sm:$0xff] %vm600, %v590
      %624 = vst.msk [vmem:[#allocation2 + $0xb8] sm:$0xff] %vm600, %v591
      %625 = vst.msk [vmem:[#allocation2 + $0xc0] sm:$0xff] %vm600, %v592
      %626 = vst.msk [vmem:[#allocation2 + $0xc8] sm:$0xff] %vm600, %v593
      %627 = vst.msk [vmem:[#allocation2 + $0xd0] sm:$0xff] %vm600, %v594
      %628 = vst.msk [vmem:[#allocation2 + $0xd8] sm:$0xff] %vm600, %v595
      %629 = vst.msk [vmem:[#allocation2 + $0xe0] sm:$0xff] %vm600, %v596
      %630 = vst.msk [vmem:[#allocation2 + $0xe8] sm:$0xff] %vm600, %v597
      %631 = vst.msk [vmem:[#allocation2 + $0xf0] sm:$0xff] %vm600, %v598
      %632 = vst.msk [vmem:[#allocation2 + $0xf8] sm:$0xff] %vm600, %v599
      // Predicated region
      $region33: #{fwd.10} parent=27 // pred_check
        %p633 = pneg %p218
      $region34: #{fwd.10} parent=27 // pred_check_branch
        %635 = sbr.rel (%p633) target = $region36
      $region35: #{fwd.10} parent=27 // pred_region
        %v636 = vld [vmem:[#allocation2] sm:$0xff]
        %v637 = vld [vmem:[#allocation2 + $0x8] sm:$0xff]
        %v638 = vld [vmem:[#allocation2 + $0x10] sm:$0xff]
        %v639 = vld [vmem:[#allocation2 + $0x18] sm:$0xff]
        %v640 = vld [vmem:[#allocation2 + $0x20] sm:$0xff]
        %v641 = vld [vmem:[#allocation2 + $0x28] sm:$0xff]
        %v642 = vld [vmem:[#allocation2 + $0x30] sm:$0xff]
        %v643 = vld [vmem:[#allocation2 + $0x38] sm:$0xff]
        %v644 = vld [vmem:[#allocation2 + $0x40] sm:$0xff]
        %v645 = vld [vmem:[#allocation2 + $0x48] sm:$0xff]
        %v646 = vld [vmem:[#allocation2 + $0x50] sm:$0xff]
        %v647 = vld [vmem:[#allocation2 + $0x58] sm:$0xff]
        %v648 = vld [vmem:[#allocation2 + $0x60] sm:$0xff]
        %v649 = vld [vmem:[#allocation2 + $0x68] sm:$0xff]
        %v650 = vld [vmem:[#allocation2 + $0x70] sm:$0xff]
        %v651 = vld [vmem:[#allocation2 + $0x78] sm:$0xff]
        %v652 = vld [vmem:[#allocation2 + $0x80] sm:$0xff]
        %v653 = vld [vmem:[#allocation2 + $0x88] sm:$0xff]
        %v654 = vld [vmem:[#allocation2 + $0x90] sm:$0xff]
        %v655 = vld [vmem:[#allocation2 + $0x98] sm:$0xff]
        %v656 = vld [vmem:[#allocation2 + $0xa0] sm:$0xff]
        %v657 = vld [vmem:[#allocation2 + $0xa8] sm:$0xff]
        %v658 = vld [vmem:[#allocation2 + $0xb0] sm:$0xff]
        %v659 = vld [vmem:[#allocation2 + $0xb8] sm:$0xff]
        %v660 = vld [vmem:[#allocation2 + $0xc0] sm:$0xff]
        %v661 = vld [vmem:[#allocation2 + $0xc8] sm:$0xff]
        %v662 = vld [vmem:[#allocation2 + $0xd0] sm:$0xff]
        %v663 = vld [vmem:[#allocation2 + $0xd8] sm:$0xff]
        %v664 = vld [vmem:[#allocation2 + $0xe0] sm:$0xff]
        %v665 = vld [vmem:[#allocation2 + $0xe8] sm:$0xff]
        %v666 = vld [vmem:[#allocation2 + $0xf0] sm:$0xff]
        %v667 = vld [vmem:[#allocation2 + $0xf8] sm:$0xff]
        %668 = vst.msk [vmem:[%s216] sm:$0xff] %vm600, %v636
        %669 = vst.msk [vmem:[%s216 + $0x8] sm:$0xff] %vm600, %v637
        %670 = vst.msk [vmem:[%s216 + $0x10] sm:$0xff] %vm600, %v638
        %671 = vst.msk [vmem:[%s216 + $0x18] sm:$0xff] %vm600, %v639
        %672 = vst.msk [vmem:[%s216 + $0x20] sm:$0xff] %vm600, %v640
        %673 = vst.msk [vmem:[%s216 + $0x28] sm:$0xff] %vm600, %v641
        %674 = vst.msk [vmem:[%s216 + $0x30] sm:$0xff] %vm600, %v642
        %675 = vst.msk [vmem:[%s216 + $0x38] sm:$0xff] %vm600, %v643
        %676 = vst.msk [vmem:[%s216 + $0x40] sm:$0xff] %vm600, %v644
        %677 = vst.msk [vmem:[%s216 + $0x48] sm:$0xff] %vm600, %v645
        %678 = vst.msk [vmem:[%s216 + $0x50] sm:$0xff] %vm600, %v646
        %679 = vst.msk [vmem:[%s216 + $0x58] sm:$0xff] %vm600, %v647
        %680 = vst.msk [vmem:[%s216 + $0x60] sm:$0xff] %vm600, %v648
        %681 = vst.msk [vmem:[%s216 + $0x68] sm:$0xff] %vm600, %v649
        %682 = vst.msk [vmem:[%s216 + $0x70] sm:$0xff] %vm600, %v650
        %683 = vst.msk [vmem:[%s216 + $0x78] sm:$0xff] %vm600, %v651
        %684 = vst.msk [vmem:[%s216 + $0x80] sm:$0xff] %vm600, %v652
        %685 = vst.msk [vmem:[%s216 + $0x88] sm:$0xff] %vm600, %v653
        %686 = vst.msk [vmem:[%s216 + $0x90] sm:$0xff] %vm600, %v654
        %687 = vst.msk [vmem:[%s216 + $0x98] sm:$0xff] %vm600, %v655
        %688 = vst.msk [vmem:[%s216 + $0xa0] sm:$0xff] %vm600, %v656
        %689 = vst.msk [vmem:[%s216 + $0xa8] sm:$0xff] %vm600, %v657
        %690 = vst.msk [vmem:[%s216 + $0xb0] sm:$0xff] %vm600, %v658
        %691 = vst.msk [vmem:[%s216 + $0xb8] sm:$0xff] %vm600, %v659
        %692 = vst.msk [vmem:[%s216 + $0xc0] sm:$0xff] %vm600, %v660
        %693 = vst.msk [vmem:[%s216 + $0xc8] sm:$0xff] %vm600, %v661
        %694 = vst.msk [vmem:[%s216 + $0xd0] sm:$0xff] %vm600, %v662
        %695 = vst.msk [vmem:[%s216 + $0xd8] sm:$0xff] %vm600, %v663
        %696 = vst.msk [vmem:[%s216 + $0xe0] sm:$0xff] %vm600, %v664
        %697 = vst.msk [vmem:[%s216 + $0xe8] sm:$0xff] %vm600, %v665
        %698 = vst.msk [vmem:[%s216 + $0xf0] sm:$0xff] %vm600, %v666
        %699 = vst.msk [vmem:[%s216 + $0xf8] sm:$0xff] %vm600, %v667
      $region36: #{fwd.10} parent=27 // pred_fallthru
        _
      %s700 = smul.u32 32, %s18
      %p701 = scmp.lt.s32.totalorder %s700, 63
      %s702 = scalar_select %p701, %s700, 63
      %p703 = scmp.lt.s32.totalorder %s19, 0
      %s704 = scalar_select %p703, %s19, 0
      %s705 = sadd.s32 %s704, %s702
      %s706 = smul.addr %s705, 8
      %s707 = scalar_lea.vmem %s2, %s706
      // Predicated region
      $region37: #{fwd.10} parent=27 // pred_check
        %p708 = pneg %p108
      $region38: #{fwd.10} parent=27 // pred_check_branch
        %710 = sbr.rel (%p708) target = $region40
      $region39: #{fwd.10} parent=27 // pred_region
        %s711 = smul.u32 32, %s18
      $region40: #{fwd.10} parent=27 // pred_fallthru
        _
    $region28: #{fwd.10} parent=5 // pred_fallthru
      _
    %p712 = scmp.le.s32.totalorder 2, %s8
    // Predicated region
    $region41: #{fwd.10} parent=5 // pred_check
      %p713 = pneg %p712
    $region42: #{fwd.10} parent=5 // pred_check_branch
      %715 = sbr.rel (%p713) target = $region44
    $region43: #{fwd.10} parent=5 // pred_region
      %s716 = ssub.s32 %s8, 2
      // Predicated region
      $region45: #{fwd.10} parent=43 // pred_check
        %p717 = pneg %p114
      $region46: #{fwd.10} parent=43 // pred_check_branch
        %719 = sbr.rel (%p717) target = $region48
      $region47: #{fwd.10} parent=43 // pred_region
        %s720 = smul.u32 32, %s21
        %p721 = scmp.lt.s32.totalorder %s720, 63
        %s722 = scalar_select %p721, %s720, 63
        %p723 = scmp.lt.s32.totalorder %s22, 0
        %s724 = scalar_select %p723, %s22, 0
        %s725 = sadd.s32 %s724, %s722
        %s726 = smul.addr %s725, 8
        %s727 = scalar_lea.vmem %s2, %s726
      $region48: #{fwd.10} parent=43 // pred_fallthru
        _
    $region44: #{fwd.10} parent=5 // pred_fallthru
      _
  $region6: #{fwd.10} parent=0 // loop_footer
    %s12 = sadd.s32 1, %s8
  $region7: #{fwd.10} parent=0 // loop_footer_branch
    %7 = sbr.rel target = $region3
  $region8: #{fwd.10} parent=0 // loop_exit
    _

// kernel: fwd.11
$region0: #{fwd.11}
  #allocation0 [shape = 'u32[]', space=smem, size = 0x4, offset = 0x4, fixed_abs, tag = 'smem constant byte address 0x4 - core index']
  #allocation1 [shape = 'u32[72,128]{1,0:T(1,128)}', space=vmem, size = 0x9000, scoped, tag = 'internal scratch']
  %s0 = inlined_call_operand.vmem [shape: f32[512,64], index: 0, kind: input, shape index: {}]
  %s1 = inlined_call_operand.vmem [shape: f32[1,64], index: 1, kind: output, shape index: {0}]
  %s2 = inlined_call_operand.vmem [shape: f32[1,64], index: 2, kind: output, shape index: {1}]
  %3 = xla_tuple %s1, %s2
  %s4 = sld [smem:[#allocation0]]
  $region65: #{fwd.11} parent=0
    _
  %s6 = ssub.s32 1, %s4
  %s7 = scalar_select 0, %s6, %s4
  loop: start=0, step=1, limit=4
  $region2: #{fwd.11} parent=0 // loop_pre_header
    _
  $region3: #{fwd.11} parent=0 // loop_header
    %s9 = sphi 0, %s13
    %p10 = scmp.ge.s32.totalorder %s9, 4
    %s16 = sphi 0, %s28
    %s17 = sphi 0, %s24
    %s18 = sphi 0, %s16
    %s19 = sphi 0, %s17
    %s20 = sphi 0, %s18
    %s21 = sphi 0, %s19
    %s31 = sphi 0, %s33
    %s34 = sphi 0, %s31
    %s35 = sphi 0, %s34
    %s51 = sphi 0, %s35
    %s55 = sphi 0, %s55
    %s57 = sphi 0, %s55
    %s58 = sphi 0, %s57
    %s72 = sphi 0, %s58
    %s76 = sphi 0, %s76
    %s78 = sphi 0, %s76
    %s79 = sphi 0, %s78
    %s93 = sphi 0, %s79
  $region4: #{fwd.11} parent=0 // loop_header_branch
    %12 = sbr.rel (%p10) target = $region8
  $region5: #{fwd.11} parent=0 // loop_body
    %s14 = ssub.s32 %s9, 1
    %s15 = ssub.s32 %s9, 2
    %s22 = sadd.s32 1, %s17
    %p23 = scmp.ge.s32.totalorder %s22, 1
    %s24 = scalar_select %p23, 0, %s22
    %s25 = sadd.s32 1, %s16
    %s26 = scalar_select %p23, %s25, %s16
    %p27 = scmp.ge.s32.totalorder %s26, 2
    %s28 = scalar_select %p27, 0, %s26
    %s29 = ssub.s32 %s17, %s24
    %p30 = scmp.eq.s32.totalorder %s29, 0
    %s32 = sadd.s32 %s31, 1
    %s33 = scalar_select %p30, %s31, %s32
    %p36 = pneg %p30
    %p37 = scmp.eq.s32.totalorder %s9, 1
    %p38 = por %p36, %p37
    %p39 = scmp.ne.s32.totalorder %s31, %s34
    %p40 = scmp.eq.s32.totalorder %s9, 0
    %p41 = por %p39, %p40
    %p42 = scmp.ne.s32.totalorder %s31, %s34
    %p43 = scmp.eq.s32.totalorder %s14, 1
    %p44 = por %p42, %p43
    %p45 = scmp.ne.s32.totalorder %s34, %s35
    %p46 = scmp.eq.s32.totalorder %s14, 0
    %p47 = por %p45, %p46
    %p48 = scmp.ne.s32.totalorder %s34, %s35
    %p49 = scmp.eq.s32.totalorder %s15, 1
    %p50 = por %p48, %p49
    %p52 = scmp.ne.s32.totalorder %s35, %s51
    %p53 = scmp.eq.s32.totalorder %s15, 0
    %p54 = por %p52, %p53
    %s56 = sadd.s32 %s55, 1
    %p59 = scmp.eq.s32.totalorder %s9, 1
    %p60 = scmp.ne.s32.totalorder %s55, %s57
    %p61 = scmp.eq.s32.totalorder %s9, 0
    %p62 = por %p60, %p61
    %p63 = scmp.ne.s32.totalorder %s55, %s57
    %p64 = scmp.eq.s32.totalorder %s14, 1
    %p65 = por %p63, %p64
    %p66 = scmp.ne.s32.totalorder %s57, %s58
    %p67 = scmp.eq.s32.totalorder %s14, 0
    %p68 = por %p66, %p67
    %p69 = scmp.ne.s32.totalorder %s57, %s58
    %p70 = scmp.eq.s32.totalorder %s15, 1
    %p71 = por %p69, %p70
    %p73 = scmp.ne.s32.totalorder %s58, %s72
    %p74 = scmp.eq.s32.totalorder %s15, 0
    %p75 = por %p73, %p74
    %s77 = sadd.s32 %s76, 1
    %p80 = scmp.eq.s32.totalorder %s9, 1
    %p81 = scmp.ne.s32.totalorder %s76, %s78
    %p82 = scmp.eq.s32.totalorder %s9, 0
    %p83 = por %p81, %p82
    %p84 = scmp.ne.s32.totalorder %s76, %s78
    %p85 = scmp.eq.s32.totalorder %s14, 1
    %p86 = por %p84, %p85
    %p87 = scmp.ne.s32.totalorder %s78, %s79
    %p88 = scmp.eq.s32.totalorder %s14, 0
    %p89 = por %p87, %p88
    %p90 = scmp.ne.s32.totalorder %s78, %s79
    %p91 = scmp.eq.s32.totalorder %s15, 1
    %p92 = por %p90, %p91
    %p94 = scmp.ne.s32.totalorder %s79, %s93
    %p95 = scmp.eq.s32.totalorder %s15, 0
    %p96 = por %p94, %p95
    %p97 = scmp.le.s32.totalorder 1, %s9
    %p98 = scmp.lt.s32.totalorder %s9, 3
    %p99 = pnand %p97, %p98
    %p100 = pneg %p99
    // Predicated region
    $region9: #{fwd.11} parent=5 // pred_check
      _
    $region10: #{fwd.11} parent=5 // pred_check_branch
      %102 = sbr.rel (%p99) target = $region12
    $region11: #{fwd.11} parent=5 // pred_region
      %s103 = ssub.s32 %s9, 1
      // Predicated region
      $region13: #{fwd.11} parent=11 // pred_check
        %p104 = pneg %p47
      $region14: #{fwd.11} parent=11 // pred_check_branch
        %106 = sbr.rel (%p104) target = $region16
      $region15: #{fwd.11} parent=11 // pred_region
        %s107 = smul.u32 64, %s19
        %p108 = scmp.lt.s32.totalorder %s107, 63
        %s109 = scalar_select %p108, %s107, 63
        %s110 = smul.addr %s109, 8
        %s111 = scalar_lea.vmem %s0, %s110
        %s112 = smul.u32 64, %s19
      $region16: #{fwd.11} parent=11 // pred_fallthru
        _
    $region12: #{fwd.11} parent=5 // pred_fallthru
      _
    %p113 = scmp.lt.s32.totalorder %s9, 2
    // Predicated region
    $region17: #{fwd.11} parent=5 // pred_check
      %p114 = pneg %p113
    $region18: #{fwd.11} parent=5 // pred_check_branch
      %116 = sbr.rel (%p114) target = $region20
    $region19: #{fwd.11} parent=5 // pred_region
      _
    $region20: #{fwd.11} parent=5 // pred_fallthru
      _
    %p117 = scmp.le.s32.totalorder 1, %s9
    %p118 = scmp.lt.s32.totalorder %s9, 3
    %p119 = pnand %p117, %p118
    %p120 = pneg %p119
    // Predicated region
    $region21: #{fwd.11} parent=5 // pred_check
      _
    $region22: #{fwd.11} parent=5 // pred_check_branch
      %122 = sbr.rel (%p119) target = $region24
    $region23: #{fwd.11} parent=5 // pred_region
      %s123 = ssub.s32 %s9, 1
      %s124 = smul.u32 64, %s19
      %p125 = scmp.lt.s32.totalorder %s124, 63
      %s126 = scalar_select %p125, %s124, 63
      %s127 = smul.addr %s126, 8
      %s128 = scalar_lea.vmem %s0, %s127
      %p129 = pneg %p47
      %p130 = pneg %p44
      %p131 = pneg %p68
      %p132 = pneg %p65
      %p133 = pneg %p89
      %p134 = pneg %p86
      %s135 = smul.u32 64, %s19
      %p136 = scmp.lt.s32.totalorder %s135, 63
      %s137 = scalar_select %p136, %s135, 63
      %s138 = smul.addr %s137, 8
      %s139 = scalar_lea.vmem %s0, %s138
      %s140 = smul.u32 64, %s19
      %p141 = scmp.eq.s32.totalorder %s18, 0
      %p142 = scmp.eq.s32.totalorder %s19, 0
      %p143 = pnand %p141, %p142
      %p144 = pneg %p143
      // Predicated region
      $region25: #{fwd.11} parent=23 // pred_check
        _
      $region26: #{fwd.11} parent=23 // pred_check_branch
        %146 = sbr.rel (%p143) target = $region28
      $region27: #{fwd.11} parent=23 // pred_region
        %vm147 = vcmask 516096
        %148 = vst.msk [vmem:[%s1] sm:$0x1] %vm147, 0.0
        %149 = vst.msk [vmem:[%s2] sm:$0x1] %vm147, 0.0
      $region28: #{fwd.11} parent=23 // pred_fallthru
        _
      %v150 = vld [vmem:[%s139] sm:$0xff]
      %v151 = vld [vmem:[%s139 + $0x8] sm:$0xff]
      %v152 = vld [vmem:[%s139 + $0x10] sm:$0xff]
      %v153 = vld [vmem:[%s139 + $0x18] sm:$0xff]
      %v154 = vld [vmem:[%s139 + $0x20] sm:$0xff]
      %v155 = vld [vmem:[%s139 + $0x28] sm:$0xff]
      %v156 = vld [vmem:[%s139 + $0x30] sm:$0xff]
      %v157 = vld [vmem:[%s139 + $0x38] sm:$0xff]
      %v158 = vld [vmem:[%s139 + $0x40] sm:$0xff]
      %v159 = vld [vmem:[%s139 + $0x48] sm:$0xff]
      %v160 = vld [vmem:[%s139 + $0x50] sm:$0xff]
      %v161 = vld [vmem:[%s139 + $0x58] sm:$0xff]
      %v162 = vld [vmem:[%s139 + $0x60] sm:$0xff]
      %v163 = vld [vmem:[%s139 + $0x68] sm:$0xff]
      %v164 = vld [vmem:[%s139 + $0x70] sm:$0xff]
      %v165 = vld [vmem:[%s139 + $0x78] sm:$0xff]
      %v166 = vld [vmem:[%s139 + $0x80] sm:$0xff]
      %v167 = vld [vmem:[%s139 + $0x88] sm:$0xff]
      %v168 = vld [vmem:[%s139 + $0x90] sm:$0xff]
      %v169 = vld [vmem:[%s139 + $0x98] sm:$0xff]
      %v170 = vld [vmem:[%s139 + $0xa0] sm:$0xff]
      %v171 = vld [vmem:[%s139 + $0xa8] sm:$0xff]
      %v172 = vld [vmem:[%s139 + $0xb0] sm:$0xff]
      %v173 = vld [vmem:[%s139 + $0xb8] sm:$0xff]
      %v174 = vld [vmem:[%s139 + $0xc0] sm:$0xff]
      %v175 = vld [vmem:[%s139 + $0xc8] sm:$0xff]
      %v176 = vld [vmem:[%s139 + $0xd0] sm:$0xff]
      %v177 = vld [vmem:[%s139 + $0xd8] sm:$0xff]
      %v178 = vld [vmem:[%s139 + $0xe0] sm:$0xff]
      %v179 = vld [vmem:[%s139 + $0xe8] sm:$0xff]
      %v180 = vld [vmem:[%s139 + $0xf0] sm:$0xff]
      %v181 = vld [vmem:[%s139 + $0xf8] sm:$0xff]
      %v182 = vld [vmem:[%s139 + $0x100] sm:$0xff]
      %v183 = vld [vmem:[%s139 + $0x108] sm:$0xff]
      %v184 = vld [vmem:[%s139 + $0x110] sm:$0xff]
      %v185 = vld [vmem:[%s139 + $0x118] sm:$0xff]
      %v186 = vld [vmem:[%s139 + $0x120] sm:$0xff]
      %v187 = vld [vmem:[%s139 + $0x128] sm:$0xff]
      %v188 = vld [vmem:[%s139 + $0x130] sm:$0xff]
      %v189 = vld [vmem:[%s139 + $0x138] sm:$0xff]
      %v190 = vld [vmem:[%s139 + $0x140] sm:$0xff]
      %v191 = vld [vmem:[%s139 + $0x148] sm:$0xff]
      %v192 = vld [vmem:[%s139 + $0x150] sm:$0xff]
      %v193 = vld [vmem:[%s139 + $0x158] sm:$0xff]
      %v194 = vld [vmem:[%s139 + $0x160] sm:$0xff]
      %v195 = vld [vmem:[%s139 + $0x168] sm:$0xff]
      %v196 = vld [vmem:[%s139 + $0x170] sm:$0xff]
      %v197 = vld [vmem:[%s139 + $0x178] sm:$0xff]
      %v198 = vld [vmem:[%s139 + $0x180] sm:$0xff]
      %v199 = vld [vmem:[%s139 + $0x188] sm:$0xff]
      %v200 = vld [vmem:[%s139 + $0x190] sm:$0xff]
      %v201 = vld [vmem:[%s139 + $0x198] sm:$0xff]
      %v202 = vld [vmem:[%s139 + $0x1a0] sm:$0xff]
      %v203 = vld [vmem:[%s139 + $0x1a8] sm:$0xff]
      %v204 = vld [vmem:[%s139 + $0x1b0] sm:$0xff]
      %v205 = vld [vmem:[%s139 + $0x1b8] sm:$0xff]
      %v206 = vld [vmem:[%s139 + $0x1c0] sm:$0xff]
      %v207 = vld [vmem:[%s139 + $0x1c8] sm:$0xff]
      %v208 = vld [vmem:[%s139 + $0x1d0] sm:$0xff]
      %v209 = vld [vmem:[%s139 + $0x1d8] sm:$0xff]
      %v210 = vld [vmem:[%s139 + $0x1e0] sm:$0xff]
      %v211 = vld [vmem:[%s139 + $0x1e8] sm:$0xff]
      %v212 = vld [vmem:[%s139 + $0x1f0] sm:$0xff]
      %v213 = vld [vmem:[%s139 + $0x1f8] sm:$0xff]
      %v214 = vlaneseq
      %v215 = vshrl.u32 %v214, 7
      %v216 = vadd.s32 %v215, 8
      %v217 = vadd.s32 %v215, 16
      %v218 = vadd.s32 %v215, 24
      %v219 = vadd.s32 %v215, 32
      %v220 = vadd.s32 %v215, 40
      %v221 = vadd.s32 %v215, 48
      %v222 = vadd.s32 %v215, 56
      %v223 = vadd.s32 %v215, 64
      %v224 = vadd.s32 %v215, 72
      %v225 = vadd.s32 %v215, 80
      %v226 = vadd.s32 %v215, 88
      %v227 = vadd.s32 %v215, 96
      %v228 = vadd.s32 %v215, 104
      %v229 = vadd.s32 %v215, 112
      %v230 = vadd.s32 %v215, 120
      %v231 = vadd.s32 %v215, 128
      %v232 = vadd.s32 %v215, 136
      %v233 = vadd.s32 %v215, 144
      %v234 = vadd.s32 %v215, 152
      %v235 = vadd.s32 %v215, 160
      %v236 = vadd.s32 %v215, 168
      %v237 = vadd.s32 %v215, 176
      %v238 = vadd.s32 %v215, 184
      %v239 = vadd.s32 %v215, 192
      %v240 = vadd.s32 %v215, 200
      %v241 = vadd.s32 %v215, 208
      %v242 = vadd.s32 %v215, 216
      %v243 = vadd.s32 %v215, 224
      %v244 = vadd.s32 %v215, 232
      %v245 = vadd.s32 %v215, 240
      %v246 = vadd.s32 %v215, 248
      %v247 = vadd.s32 %v215, 256
      %v248 = vadd.s32 %v215, 264
      %v249 = vadd.s32 %v215, 272
      %v250 = vadd.s32 %v215, 280
      %v251 = vadd.s32 %v215, 288
      %v252 = vadd.s32 %v215, 296
      %v253 = vadd.s32 %v215, 304
      %v254 = vadd.s32 %v215, 312
      %v255 = vadd.s32 %v215, 320
      %v256 = vadd.s32 %v215, 328
      %v257 = vadd.s32 %v215, 336
      %v258 = vadd.s32 %v215, 344
      %v259 = vadd.s32 %v215, 352
      %v260 = vadd.s32 %v215, 360
      %v261 = vadd.s32 %v215, 368
      %v262 = vadd.s32 %v215, 376
      %v263 = vadd.s32 %v215, 384
      %v264 = vadd.s32 %v215, 392
      %v265 = vadd.s32 %v215, 400
      %v266 = vadd.s32 %v215, 408
      %v267 = vadd.s32 %v215, 416
      %v268 = vadd.s32 %v215, 424
      %v269 = vadd.s32 %v215, 432
      %v270 = vadd.s32 %v215, 440
      %v271 = vadd.s32 %v215, 448
      %v272 = vadd.s32 %v215, 456
      %v273 = vadd.s32 %v215, 464
      %v274 = vadd.s32 %v215, 472
      %v275 = vadd.s32 %v215, 480
      %v276 = vadd.s32 %v215, 488
      %v277 = vadd.s32 %v215, 496
      %v278 = vadd.s32 %v215, 504
      %s279 = smul.u32 %s19, 512
      %v280 = vstv %s279
      %v281 = vadd.s32 %v215, %v280
      %v282 = vadd.s32 %v216, %v280
      %v283 = vadd.s32 %v217, %v280
      %v284 = vadd.s32 %v218, %v280
      %v285 = vadd.s32 %v219, %v280
      %v286 = vadd.s32 %v220, %v280
      %v287 = vadd.s32 %v221, %v280
      %v288 = vadd.s32 %v222, %v280
      %v289 = vadd.s32 %v223, %v280
      %v290 = vadd.s32 %v224, %v280
      %v291 = vadd.s32 %v225, %v280
      %v292 = vadd.s32 %v226, %v280
      %v293 = vadd.s32 %v227, %v280
      %v294 = vadd.s32 %v228, %v280
      %v295 = vadd.s32 %v229, %v280
      %v296 = vadd.s32 %v230, %v280
      %v297 = vadd.s32 %v231, %v280
      %v298 = vadd.s32 %v232, %v280
      %v299 = vadd.s32 %v233, %v280
      %v300 = vadd.s32 %v234, %v280
      %v301 = vadd.s32 %v235, %v280
      %v302 = vadd.s32 %v236, %v280
      %v303 = vadd.s32 %v237, %v280
      %v304 = vadd.s32 %v238, %v280
      %v305 = vadd.s32 %v239, %v280
      %v306 = vadd.s32 %v240, %v280
      %v307 = vadd.s32 %v241, %v280
      %v308 = vadd.s32 %v242, %v280
      %v309 = vadd.s32 %v243, %v280
      %v310 = vadd.s32 %v244, %v280
      %v311 = vadd.s32 %v245, %v280
      %v312 = vadd.s32 %v246, %v280
      %v313 = vadd.s32 %v247, %v280
      %v314 = vadd.s32 %v248, %v280
      %v315 = vadd.s32 %v249, %v280
      %v316 = vadd.s32 %v250, %v280
      %v317 = vadd.s32 %v251, %v280
      %v318 = vadd.s32 %v252, %v280
      %v319 = vadd.s32 %v253, %v280
      %v320 = vadd.s32 %v254, %v280
      %v321 = vadd.s32 %v255, %v280
      %v322 = vadd.s32 %v256, %v280
      %v323 = vadd.s32 %v257, %v280
      %v324 = vadd.s32 %v258, %v280
      %v325 = vadd.s32 %v259, %v280
      %v326 = vadd.s32 %v260, %v280
      %v327 = vadd.s32 %v261, %v280
      %v328 = vadd.s32 %v262, %v280
      %v329 = vadd.s32 %v263, %v280
      %v330 = vadd.s32 %v264, %v280
      %v331 = vadd.s32 %v265, %v280
      %v332 = vadd.s32 %v266, %v280
      %v333 = vadd.s32 %v267, %v280
      %v334 = vadd.s32 %v268, %v280
      %v335 = vadd.s32 %v269, %v280
      %v336 = vadd.s32 %v270, %v280
      %v337 = vadd.s32 %v271, %v280
      %v338 = vadd.s32 %v272, %v280
      %v339 = vadd.s32 %v273, %v280
      %v340 = vadd.s32 %v274, %v280
      %v341 = vadd.s32 %v275, %v280
      %v342 = vadd.s32 %v276, %v280
      %v343 = vadd.s32 %v277, %v280
      %v344 = vadd.s32 %v278, %v280
      %vm345 = vcmp.lt.s32.totalorder %v281, 512
      %vm346 = vcmp.lt.s32.totalorder %v282, 512
      %vm347 = vcmp.lt.s32.totalorder %v283, 512
      %vm348 = vcmp.lt.s32.totalorder %v284, 512
      %vm349 = vcmp.lt.s32.totalorder %v285, 512
      %vm350 = vcmp.lt.s32.totalorder %v286, 512
      %vm351 = vcmp.lt.s32.totalorder %v287, 512
      %vm352 = vcmp.lt.s32.totalorder %v288, 512
      %vm353 = vcmp.lt.s32.totalorder %v289, 512
      %vm354 = vcmp.lt.s32.totalorder %v290, 512
      %vm355 = vcmp.lt.s32.totalorder %v291, 512
      %vm356 = vcmp.lt.s32.totalorder %v292, 512
      %vm357 = vcmp.lt.s32.totalorder %v293, 512
      %vm358 = vcmp.lt.s32.totalorder %v294, 512
      %vm359 = vcmp.lt.s32.totalorder %v295, 512
      %vm360 = vcmp.lt.s32.totalorder %v296, 512
      %vm361 = vcmp.lt.s32.totalorder %v297, 512
      %vm362 = vcmp.lt.s32.totalorder %v298, 512
      %vm363 = vcmp.lt.s32.totalorder %v299, 512
      %vm364 = vcmp.lt.s32.totalorder %v300, 512
      %vm365 = vcmp.lt.s32.totalorder %v301, 512
      %vm366 = vcmp.lt.s32.totalorder %v302, 512
      %vm367 = vcmp.lt.s32.totalorder %v303, 512
      %vm368 = vcmp.lt.s32.totalorder %v304, 512
      %vm369 = vcmp.lt.s32.totalorder %v305, 512
      %vm370 = vcmp.lt.s32.totalorder %v306, 512
      %vm371 = vcmp.lt.s32.totalorder %v307, 512
      %vm372 = vcmp.lt.s32.totalorder %v308, 512
      %vm373 = vcmp.lt.s32.totalorder %v309, 512
      %vm374 = vcmp.lt.s32.totalorder %v310, 512
      %vm375 = vcmp.lt.s32.totalorder %v311, 512
      %vm376 = vcmp.lt.s32.totalorder %v312, 512
      %vm377 = vcmp.lt.s32.totalorder %v313, 512
      %vm378 = vcmp.lt.s32.totalorder %v314, 512
      %vm379 = vcmp.lt.s32.totalorder %v315, 512
      %vm380 = vcmp.lt.s32.totalorder %v316, 512
      %vm381 = vcmp.lt.s32.totalorder %v317, 512
      %vm382 = vcmp.lt.s32.totalorder %v318, 512
      %vm383 = vcmp.lt.s32.totalorder %v319, 512
      %vm384 = vcmp.lt.s32.totalorder %v320, 512
      %vm385 = vcmp.lt.s32.totalorder %v321, 512
      %vm386 = vcmp.lt.s32.totalorder %v322, 512
      %vm387 = vcmp.lt.s32.totalorder %v323, 512
      %vm388 = vcmp.lt.s32.totalorder %v324, 512
      %vm389 = vcmp.lt.s32.totalorder %v325, 512
      %vm390 = vcmp.lt.s32.totalorder %v326, 512
      %vm391 = vcmp.lt.s32.totalorder %v327, 512
      %vm392 = vcmp.lt.s32.totalorder %v328, 512
      %vm393 = vcmp.lt.s32.totalorder %v329, 512
      %vm394 = vcmp.lt.s32.totalorder %v330, 512
      %vm395 = vcmp.lt.s32.totalorder %v331, 512
      %vm396 = vcmp.lt.s32.totalorder %v332, 512
      %vm397 = vcmp.lt.s32.totalorder %v333, 512
      %vm398 = vcmp.lt.s32.totalorder %v334, 512
      %vm399 = vcmp.lt.s32.totalorder %v335, 512
      %vm400 = vcmp.lt.s32.totalorder %v336, 512
      %vm401 = vcmp.lt.s32.totalorder %v337, 512
      %vm402 = vcmp.lt.s32.totalorder %v338, 512
      %vm403 = vcmp.lt.s32.totalorder %v339, 512
      %vm404 = vcmp.lt.s32.totalorder %v340, 512
      %vm405 = vcmp.lt.s32.totalorder %v341, 512
      %vm406 = vcmp.lt.s32.totalorder %v342, 512
      %vm407 = vcmp.lt.s32.totalorder %v343, 512
      %vm408 = vcmp.lt.s32.totalorder %v344, 512
      %v409 = vsel %vm345, 1, 0
      %v410 = vsel %vm346, 1, 0
      %v411 = vsel %vm347, 1, 0
      %v412 = vsel %vm348, 1, 0
      %v413 = vsel %vm349, 1, 0
      %v414 = vsel %vm350, 1, 0
      %v415 = vsel %vm351, 1, 0
      %v416 = vsel %vm352, 1, 0
      %v417 = vsel %vm353, 1, 0
      %v418 = vsel %vm354, 1, 0
      %v419 = vsel %vm355, 1, 0
      %v420 = vsel %vm356, 1, 0
      %v421 = vsel %vm357, 1, 0
      %v422 = vsel %vm358, 1, 0
      %v423 = vsel %vm359, 1, 0
      %v424 = vsel %vm360, 1, 0
      %v425 = vsel %vm361, 1, 0
      %v426 = vsel %vm362, 1, 0
      %v427 = vsel %vm363, 1, 0
      %v428 = vsel %vm364, 1, 0
      %v429 = vsel %vm365, 1, 0
      %v430 = vsel %vm366, 1, 0
      %v431 = vsel %vm367, 1, 0
      %v432 = vsel %vm368, 1, 0
      %v433 = vsel %vm369, 1, 0
      %v434 = vsel %vm370, 1, 0
      %v435 = vsel %vm371, 1, 0
      %v436 = vsel %vm372, 1, 0
      %v437 = vsel %vm373, 1, 0
      %v438 = vsel %vm374, 1, 0
      %v439 = vsel %vm375, 1, 0
      %v440 = vsel %vm376, 1, 0
      %v441 = vsel %vm377, 1, 0
      %v442 = vsel %vm378, 1, 0
      %v443 = vsel %vm379, 1, 0
      %v444 = vsel %vm380, 1, 0
      %v445 = vsel %vm381, 1, 0
      %v446 = vsel %vm382, 1, 0
      %v447 = vsel %vm383, 1, 0
      %v448 = vsel %vm384, 1, 0
      %v449 = vsel %vm385, 1, 0
      %v450 = vsel %vm386, 1, 0
      %v451 = vsel %vm387, 1, 0
      %v452 = vsel %vm388, 1, 0
      %v453 = vsel %vm389, 1, 0
      %v454 = vsel %vm390, 1, 0
      %v455 = vsel %vm391, 1, 0
      %v456 = vsel %vm392, 1, 0
      %v457 = vsel %vm393, 1, 0
      %v458 = vsel %vm394, 1, 0
      %v459 = vsel %vm395, 1, 0
      %v460 = vsel %vm396, 1, 0
      %v461 = vsel %vm397, 1, 0
      %v462 = vsel %vm398, 1, 0
      %v463 = vsel %vm399, 1, 0
      %v464 = vsel %vm400, 1, 0
      %v465 = vsel %vm401, 1, 0
      %v466 = vsel %vm402, 1, 0
      %v467 = vsel %vm403, 1, 0
      %v468 = vsel %vm404, 1, 0
      %v469 = vsel %vm405, 1, 0
      %v470 = vsel %vm406, 1, 0
      %v471 = vsel %vm407, 1, 0
      %v472 = vsel %vm408, 1, 0
      %v473 = vcvt.s32.f32 %v409
      %v474 = vcvt.s32.f32 %v410
      %v475 = vcvt.s32.f32 %v411
      %v476 = vcvt.s32.f32 %v412
      %v477 = vcvt.s32.f32 %v413
      %v478 = vcvt.s32.f32 %v414
      %v479 = vcvt.s32.f32 %v415
      %v480 = vcvt.s32.f32 %v416
      %v481 = vcvt.s32.f32 %v417
      %v482 = vcvt.s32.f32 %v418
      %v483 = vcvt.s32.f32 %v419
      %v484 = vcvt.s32.f32 %v420
      %v485 = vcvt.s32.f32 %v421
      %v486 = vcvt.s32.f32 %v422
      %v487 = vcvt.s32.f32 %v423
      %v488 = vcvt.s32.f32 %v424
      %v489 = vcvt.s32.f32 %v425
      %v490 = vcvt.s32.f32 %v426
      %v491 = vcvt.s32.f32 %v427
      %v492 = vcvt.s32.f32 %v428
      %v493 = vcvt.s32.f32 %v429
      %v494 = vcvt.s32.f32 %v430
      %v495 = vcvt.s32.f32 %v431
      %v496 = vcvt.s32.f32 %v432
      %v497 = vcvt.s32.f32 %v433
      %v498 = vcvt.s32.f32 %v434
      %v499 = vcvt.s32.f32 %v435
      %v500 = vcvt.s32.f32 %v436
      %v501 = vcvt.s32.f32 %v437
      %v502 = vcvt.s32.f32 %v438
      %v503 = vcvt.s32.f32 %v439
      %v504 = vcvt.s32.f32 %v440
      %v505 = vcvt.s32.f32 %v441
      %v506 = vcvt.s32.f32 %v442
      %v507 = vcvt.s32.f32 %v443
      %v508 = vcvt.s32.f32 %v444
      %v509 = vcvt.s32.f32 %v445
      %v510 = vcvt.s32.f32 %v446
      %v511 = vcvt.s32.f32 %v447
      %v512 = vcvt.s32.f32 %v448
      %v513 = vcvt.s32.f32 %v449
      %v514 = vcvt.s32.f32 %v450
      %v515 = vcvt.s32.f32 %v451
      %v516 = vcvt.s32.f32 %v452
      %v517 = vcvt.s32.f32 %v453
      %v518 = vcvt.s32.f32 %v454
      %v519 = vcvt.s32.f32 %v455
      %v520 = vcvt.s32.f32 %v456
      %v521 = vcvt.s32.f32 %v457
      %v522 = vcvt.s32.f32 %v458
      %v523 = vcvt.s32.f32 %v459
      %v524 = vcvt.s32.f32 %v460
      %v525 = vcvt.s32.f32 %v461
      %v526 = vcvt.s32.f32 %v462
      %v527 = vcvt.s32.f32 %v463
      %v528 = vcvt.s32.f32 %v464
      %v529 = vcvt.s32.f32 %v465
      %v530 = vcvt.s32.f32 %v466
      %v531 = vcvt.s32.f32 %v467
      %v532 = vcvt.s32.f32 %v468
      %v533 = vcvt.s32.f32 %v469
      %v534 = vcvt.s32.f32 %v470
      %v535 = vcvt.s32.f32 %v471
      %v536 = vcvt.s32.f32 %v472
      // Predicated region
      $region29: #{fwd.11} parent=23 // pred_check
        %p537 = pneg %p141
      $region30: #{fwd.11} parent=23 // pred_check_branch
        %539 = sbr.rel (%p537) target = $region32
      $region31: #{fwd.11} parent=23 // pred_region
        %v540 = vld [vmem:[%s1] sm:$0x1]
        %v541 = vmul.f32 %v150, %v473
        %v542 = vmul.f32 %v151, %v474
        %v543 = vmul.f32 %v152, %v475
        %v544 = vmul.f32 %v153, %v476
        %v545 = vmul.f32 %v154, %v477
        %v546 = vmul.f32 %v155, %v478
        %v547 = vmul.f32 %v156, %v479
        %v548 = vmul.f32 %v157, %v480
        %v549 = vmul.f32 %v158, %v481
        %v550 = vmul.f32 %v159, %v482
        %v551 = vmul.f32 %v160, %v483
        %v552 = vmul.f32 %v161, %v484
        %v553 = vmul.f32 %v162, %v485
        %v554 = vmul.f32 %v163, %v486
        %v555 = vmul.f32 %v164, %v487
        %v556 = vmul.f32 %v165, %v488
        %v557 = vmul.f32 %v166, %v489
        %v558 = vmul.f32 %v167, %v490
        %v559 = vmul.f32 %v168, %v491
        %v560 = vmul.f32 %v169, %v492
        %v561 = vmul.f32 %v170, %v493
        %v562 = vmul.f32 %v171, %v494
        %v563 = vmul.f32 %v172, %v495
        %v564 = vmul.f32 %v173, %v496
        %v565 = vmul.f32 %v174, %v497
        %v566 = vmul.f32 %v175, %v498
        %v567 = vmul.f32 %v176, %v499
        %v568 = vmul.f32 %v177, %v500
        %v569 = vmul.f32 %v178, %v501
        %v570 = vmul.f32 %v179, %v502
        %v571 = vmul.f32 %v180, %v503
        %v572 = vmul.f32 %v181, %v504
        %v573 = vmul.f32 %v182, %v505
        %v574 = vmul.f32 %v183, %v506
        %v575 = vmul.f32 %v184, %v507
        %v576 = vmul.f32 %v185, %v508
        %v577 = vmul.f32 %v186, %v509
        %v578 = vmul.f32 %v187, %v510
        %v579 = vmul.f32 %v188, %v511
        %v580 = vmul.f32 %v189, %v512
        %v581 = vmul.f32 %v190, %v513
        %v582 = vmul.f32 %v191, %v514
        %v583 = vmul.f32 %v192, %v515
        %v584 = vmul.f32 %v193, %v516
        %v585 = vmul.f32 %v194, %v517
        %v586 = vmul.f32 %v195, %v518
        %v587 = vmul.f32 %v196, %v519
        %v588 = vmul.f32 %v197, %v520
        %v589 = vmul.f32 %v198, %v521
        %v590 = vmul.f32 %v199, %v522
        %v591 = vmul.f32 %v200, %v523
        %v592 = vmul.f32 %v201, %v524
        %v593 = vmul.f32 %v202, %v525
        %v594 = vmul.f32 %v203, %v526
        %v595 = vmul.f32 %v204, %v527
        %v596 = vmul.f32 %v205, %v528
        %v597 = vmul.f32 %v206, %v529
        %v598 = vmul.f32 %v207, %v530
        %v599 = vmul.f32 %v208, %v531
        %v600 = vmul.f32 %v209, %v532
        %v601 = vmul.f32 %v210, %v533
        %v602 = vmul.f32 %v211, %v534
        %v603 = vmul.f32 %v212, %v535
        %v604 = vmul.f32 %v213, %v536
        %vm605 = vcmask 523264
        %v606 = vsel %vm605, %v541, 0.0
        %v607 = vsel %vm605, %v542, 0.0
        %v608 = vadd.f32 %v606, %v607
        %v609 = vsel %vm605, %v543, 0.0
        %v610 = vadd.f32 %v608, %v609
        %v611 = vsel %vm605, %v544, 0.0
        %v612 = vadd.f32 %v610, %v611
        %v613 = vsel %vm605, %v545, 0.0
        %v614 = vadd.f32 %v612, %v613
        %v615 = vsel %vm605, %v546, 0.0
        %v616 = vadd.f32 %v614, %v615
        %v617 = vsel %vm605, %v547, 0.0
        %v618 = vadd.f32 %v616, %v617
        %v619 = vsel %vm605, %v548, 0.0
        %v620 = vadd.f32 %v618, %v619
        %v621 = vsel %vm605, %v549, 0.0
        %v622 = vadd.f32 %v620, %v621
        %v623 = vsel %vm605, %v550, 0.0
        %v624 = vadd.f32 %v622, %v623
        %v625 = vsel %vm605, %v551, 0.0
        %v626 = vadd.f32 %v624, %v625
        %v627 = vsel %vm605, %v552, 0.0
        %v628 = vadd.f32 %v626, %v627
        %v629 = vsel %vm605, %v553, 0.0
        %v630 = vadd.f32 %v628, %v629
        %v631 = vsel %vm605, %v554, 0.0
        %v632 = vadd.f32 %v630, %v631
        %v633 = vsel %vm605, %v555, 0.0
        %v634 = vadd.f32 %v632, %v633
        %v635 = vsel %vm605, %v556, 0.0
        %v636 = vadd.f32 %v634, %v635
        %v637 = vsel %vm605, %v557, 0.0
        %v638 = vadd.f32 %v636, %v637
        %v639 = vsel %vm605, %v558, 0.0
        %v640 = vadd.f32 %v638, %v639
        %v641 = vsel %vm605, %v559, 0.0
        %v642 = vadd.f32 %v640, %v641
        %v643 = vsel %vm605, %v560, 0.0
        %v644 = vadd.f32 %v642, %v643
        %v645 = vsel %vm605, %v561, 0.0
        %v646 = vadd.f32 %v644, %v645
        %v647 = vsel %vm605, %v562, 0.0
        %v648 = vadd.f32 %v646, %v647
        %v649 = vsel %vm605, %v563, 0.0
        %v650 = vadd.f32 %v648, %v649
        %v651 = vsel %vm605, %v564, 0.0
        %v652 = vadd.f32 %v650, %v651
        %v653 = vsel %vm605, %v565, 0.0
        %v654 = vadd.f32 %v652, %v653
        %v655 = vsel %vm605, %v566, 0.0
        %v656 = vadd.f32 %v654, %v655
        %v657 = vsel %vm605, %v567, 0.0
        %v658 = vadd.f32 %v656, %v657
        %v659 = vsel %vm605, %v568, 0.0
        %v660 = vadd.f32 %v658, %v659
        %v661 = vsel %vm605, %v569, 0.0
        %v662 = vadd.f32 %v660, %v661
        %v663 = vsel %vm605, %v570, 0.0
        %v664 = vadd.f32 %v662, %v663
        %v665 = vsel %vm605, %v571, 0.0
        %v666 = vadd.f32 %v664, %v665
        %v667 = vsel %vm605, %v572, 0.0
        %v668 = vadd.f32 %v666, %v667
        %v669 = vsel %vm605, %v573, 0.0
        %v670 = vadd.f32 %v668, %v669
        %v671 = vsel %vm605, %v574, 0.0
        %v672 = vadd.f32 %v670, %v671
        %v673 = vsel %vm605, %v575, 0.0
        %v674 = vadd.f32 %v672, %v673
        %v675 = vsel %vm605, %v576, 0.0
        %v676 = vadd.f32 %v674, %v675
        %v677 = vsel %vm605, %v577, 0.0
        %v678 = vadd.f32 %v676, %v677
        %v679 = vsel %vm605, %v578, 0.0
        %v680 = vadd.f32 %v678, %v679
        %v681 = vsel %vm605, %v579, 0.0
        %v682 = vadd.f32 %v680, %v681
        %v683 = vsel %vm605, %v580, 0.0
        %v684 = vadd.f32 %v682, %v683
        %v685 = vsel %vm605, %v581, 0.0
        %v686 = vadd.f32 %v684, %v685
        %v687 = vsel %vm605, %v582, 0.0
        %v688 = vadd.f32 %v686, %v687
        %v689 = vsel %vm605, %v583, 0.0
        %v690 = vadd.f32 %v688, %v689
        %v691 = vsel %vm605, %v584, 0.0
        %v692 = vadd.f32 %v690, %v691
        %v693 = vsel %vm605, %v585, 0.0
        %v694 = vadd.f32 %v692, %v693
        %v695 = vsel %vm605, %v586, 0.0
        %v696 = vadd.f32 %v694, %v695
        %v697 = vsel %vm605, %v587, 0.0
        %v698 = vadd.f32 %v696, %v697
        %v699 = vsel %vm605, %v588, 0.0
        %v700 = vadd.f32 %v698, %v699
        %v701 = vsel %vm605, %v589, 0.0
        %v702 = vadd.f32 %v700, %v701
        %v703 = vsel %vm605, %v590, 0.0
        %v704 = vadd.f32 %v702, %v703
        %v705 = vsel %vm605, %v591, 0.0
        %v706 = vadd.f32 %v704, %v705
        %v707 = vsel %vm605, %v592, 0.0
        %v708 = vadd.f32 %v706, %v707
        %v709 = vsel %vm605, %v593, 0.0
        %v710 = vadd.f32 %v708, %v709
        %v711 = vsel %vm605, %v594, 0.0
        %v712 = vadd.f32 %v710, %v711
        %v713 = vsel %vm605, %v595, 0.0
        %v714 = vadd.f32 %v712, %v713
        %v715 = vsel %vm605, %v596, 0.0
        %v716 = vadd.f32 %v714, %v715
        %v717 = vsel %vm605, %v597, 0.0
        %v718 = vadd.f32 %v716, %v717
        %v719 = vsel %vm605, %v598, 0.0
        %v720 = vadd.f32 %v718, %v719
        %v721 = vsel %vm605, %v599, 0.0
        %v722 = vadd.f32 %v720, %v721
        %v723 = vsel %vm605, %v600, 0.0
        %v724 = vadd.f32 %v722, %v723
        %v725 = vsel %vm605, %v601, 0.0
        %v726 = vadd.f32 %v724, %v725
        %v727 = vsel %vm605, %v602, 0.0
        %v728 = vadd.f32 %v726, %v727
        %v729 = vsel %vm605, %v603, 0.0
        %v730 = vadd.f32 %v728, %v729
        %v731 = vsel %vm605, %v604, 0.0
        %v732 = vadd.f32 %v730, %v731
        %v733 = vrot.slane %v732, 4
        %v734 = vadd.f32 %v732, %v733
        %v735 = vrot.slane %v734, 2
        %v736 = vadd.f32 %v734, %v735
        %v737 = vrot.slane %v736, 1
        %v738 = vadd.f32 %v736, %v737
        %v739 = vadd.f32 %v540, %v738
        %vm740 = vcmask 516096
        %741 = vst.msk [vmem:[%s1] sm:$0x1] %vm740, %v739
      $region32: #{fwd.11} parent=23 // pred_fallthru
        _
      // Predicated region
      $region33: #{fwd.11} parent=23 // pred_check
        _
      $region34: #{fwd.11} parent=23 // pred_check_branch
        %743 = sbr.rel (%p143) target = $region36
      $region35: #{fwd.11} parent=23 // pred_region
        %v744 = vld [vmem:[%s1] sm:$0x1]
        %v745 = vmul.f32 %v744, 0.001953125
        %vm746 = vcmask 516096
        %747 = vst.msk [vmem:[%s1] sm:$0x1] %vm746, %v745
      $region36: #{fwd.11} parent=23 // pred_fallthru
        _
      %p748 = scmp.eq.s32.totalorder %s18, 1
      // Predicated region
      $region37: #{fwd.11} parent=23 // pred_check
        %p749 = pneg %p748
      $region38: #{fwd.11} parent=23 // pred_check_branch
        %751 = sbr.rel (%p749) target = $region40
      $region39: #{fwd.11} parent=23 // pred_region
        %v752 = vld [vmem:[%s1] sm:$0x1]
        %v754 = vperm.slane %v752, 0
        %v756 = vsub.f32 %v150, %v754
        %v757 = vsub.f32 %v151, %v754
        %v758 = vsub.f32 %v152, %v754
        %v759 = vsub.f32 %v153, %v754
        %v760 = vsub.f32 %v154, %v754
        %v761 = vsub.f32 %v155, %v754
        %v762 = vsub.f32 %v156, %v754
        %v763 = vsub.f32 %v157, %v754
        %v764 = vsub.f32 %v158, %v754
        %v765 = vsub.f32 %v159, %v754
        %v766 = vsub.f32 %v160, %v754
        %v767 = vsub.f32 %v161, %v754
        %v768 = vsub.f32 %v162, %v754
        %v769 = vsub.f32 %v163, %v754
        %v770 = vsub.f32 %v164, %v754
        %v771 = vsub.f32 %v165, %v754
        %v772 = vsub.f32 %v166, %v754
        %v773 = vsub.f32 %v167, %v754
        %v774 = vsub.f32 %v168, %v754
        %v775 = vsub.f32 %v169, %v754
        %v776 = vsub.f32 %v170, %v754
        %v777 = vsub.f32 %v171, %v754
        %v778 = vsub.f32 %v172, %v754
        %v779 = vsub.f32 %v173, %v754
        %v780 = vsub.f32 %v174, %v754
        %v781 = vsub.f32 %v175, %v754
        %v782 = vsub.f32 %v176, %v754
        %v783 = vsub.f32 %v177, %v754
        %v784 = vsub.f32 %v178, %v754
        %v785 = vsub.f32 %v179, %v754
        %v786 = vsub.f32 %v180, %v754
        %v787 = vsub.f32 %v181, %v754
        %v788 = vsub.f32 %v182, %v754
        %v789 = vsub.f32 %v183, %v754
        %v790 = vsub.f32 %v184, %v754
        %v791 = vsub.f32 %v185, %v754
        %v792 = vsub.f32 %v186, %v754
        %v793 = vsub.f32 %v187, %v754
        %v794 = vsub.f32 %v188, %v754
        %v795 = vsub.f32 %v189, %v754
        %v796 = vsub.f32 %v190, %v754
        %v797 = vsub.f32 %v191, %v754
        %v798 = vsub.f32 %v192, %v754
        %v799 = vsub.f32 %v193, %v754
        %v800 = vsub.f32 %v194, %v754
        %v801 = vsub.f32 %v195, %v754
        %v802 = vsub.f32 %v196, %v754
        %v803 = vsub.f32 %v197, %v754
        %v804 = vsub.f32 %v198, %v754
        %v805 = vsub.f32 %v199, %v754
        %v806 = vsub.f32 %v200, %v754
        %v807 = vsub.f32 %v201, %v754
        %v808 = vsub.f32 %v202, %v754
        %v809 = vsub.f32 %v203, %v754
        %v810 = vsub.f32 %v204, %v754
        %v811 = vsub.f32 %v205, %v754
        %v812 = vsub.f32 %v206, %v754
        %v813 = vsub.f32 %v207, %v754
        %v814 = vsub.f32 %v208, %v754
        %v815 = vsub.f32 %v209, %v754
        %v816 = vsub.f32 %v210, %v754
        %v817 = vsub.f32 %v211, %v754
        %v818 = vsub.f32 %v212, %v754
        %v819 = vsub.f32 %v213, %v754
        %v820 = vmul.f32 %v756, %v473
        %v821 = vmul.f32 %v757, %v474
        %v822 = vmul.f32 %v758, %v475
        %v823 = vmul.f32 %v759, %v476
        %v824 = vmul.f32 %v760, %v477
        %v825 = vmul.f32 %v761, %v478
        %v826 = vmul.f32 %v762, %v479
        %v827 = vmul.f32 %v763, %v480
        %v828 = vmul.f32 %v764, %v481
        %v829 = vmul.f32 %v765, %v482
        %v830 = vmul.f32 %v766, %v483
        %v831 = vmul.f32 %v767, %v484
        %v832 = vmul.f32 %v768, %v485
        %v833 = vmul.f32 %v769, %v486
        %v834 = vmul.f32 %v770, %v487
        %v835 = vmul.f32 %v771, %v488
        %v836 = vmul.f32 %v772, %v489
        %v837 = vmul.f32 %v773, %v490
        %v838 = vmul.f32 %v774, %v491
        %v839 = vmul.f32 %v775, %v492
        %v840 = vmul.f32 %v776, %v493
        %v841 = vmul.f32 %v777, %v494
        %v842 = vmul.f32 %v778, %v495
        %v843 = vmul.f32 %v779, %v496
        %v844 = vmul.f32 %v780, %v497
        %v845 = vmul.f32 %v781, %v498
        %v846 = vmul.f32 %v782, %v499
        %v847 = vmul.f32 %v783, %v500
        %v848 = vmul.f32 %v784, %v501
        %v849 = vmul.f32 %v785, %v502
        %v850 = vmul.f32 %v786, %v503
        %v851 = vmul.f32 %v787, %v504
        %v852 = vmul.f32 %v788, %v505
        %v853 = vmul.f32 %v789, %v506
        %v854 = vmul.f32 %v790, %v507
        %v855 = vmul.f32 %v791, %v508
        %v856 = vmul.f32 %v792, %v509
        %v857 = vmul.f32 %v793, %v510
        %v858 = vmul.f32 %v794, %v511
        %v859 = vmul.f32 %v795, %v512
        %v860 = vmul.f32 %v796, %v513
        %v861 = vmul.f32 %v797, %v514
        %v862 = vmul.f32 %v798, %v515
        %v863 = vmul.f32 %v799, %v516
        %v864 = vmul.f32 %v800, %v517
        %v865 = vmul.f32 %v801, %v518
        %v866 = vmul.f32 %v802, %v519
        %v867 = vmul.f32 %v803, %v520
        %v868 = vmul.f32 %v804, %v521
        %v869 = vmul.f32 %v805, %v522
        %v870 = vmul.f32 %v806, %v523
        %v871 = vmul.f32 %v807, %v524
        %v872 = vmul.f32 %v808, %v525
        %v873 = vmul.f32 %v809, %v526
        %v874 = vmul.f32 %v810, %v527
        %v875 = vmul.f32 %v811, %v528
        %v876 = vmul.f32 %v812, %v529
        %v877 = vmul.f32 %v813, %v530
        %v878 = vmul.f32 %v814, %v531
        %v879 = vmul.f32 %v815, %v532
        %v880 = vmul.f32 %v816, %v533
        %v881 = vmul.f32 %v817, %v534
        %v882 = vmul.f32 %v818, %v535
        %v883 = vmul.f32 %v819, %v536
        %v884 = vld [vmem:[%s2] sm:$0x1]
        %v885 = vmul.f32 %v820, %v820
        %v886 = vmul.f32 %v821, %v821
        %v887 = vmul.f32 %v822, %v822
        %v888 = vmul.f32 %v823, %v823
        %v889 = vmul.f32 %v824, %v824
        %v890 = vmul.f32 %v825, %v825
        %v891 = vmul.f32 %v826, %v826
        %v892 = vmul.f32 %v827, %v827
        %v893 = vmul.f32 %v828, %v828
        %v894 = vmul.f32 %v829, %v829
        %v895 = vmul.f32 %v830, %v830
        %v896 = vmul.f32 %v831, %v831
        %v897 = vmul.f32 %v832, %v832
        %v898 = vmul.f32 %v833, %v833
        %v899 = vmul.f32 %v834, %v834
        %v900 = vmul.f32 %v835, %v835
        %v901 = vmul.f32 %v836, %v836
        %v902 = vmul.f32 %v837, %v837
        %v903 = vmul.f32 %v838, %v838
        %v904 = vmul.f32 %v839, %v839
        %v905 = vmul.f32 %v840, %v840
        %v906 = vmul.f32 %v841, %v841
        %v907 = vmul.f32 %v842, %v842
        %v908 = vmul.f32 %v843, %v843
        %v909 = vmul.f32 %v844, %v844
        %v910 = vmul.f32 %v845, %v845
        %v911 = vmul.f32 %v846, %v846
        %v912 = vmul.f32 %v847, %v847
        %v913 = vmul.f32 %v848, %v848
        %v914 = vmul.f32 %v849, %v849
        %v915 = vmul.f32 %v850, %v850
        %v916 = vmul.f32 %v851, %v851
        %v917 = vmul.f32 %v852, %v852
        %v918 = vmul.f32 %v853, %v853
        %v919 = vmul.f32 %v854, %v854
        %v920 = vmul.f32 %v855, %v855
        %v921 = vmul.f32 %v856, %v856
        %v922 = vmul.f32 %v857, %v857
        %v923 = vmul.f32 %v858, %v858
        %v924 = vmul.f32 %v859, %v859
        %v925 = vmul.f32 %v860, %v860
        %v926 = vmul.f32 %v861, %v861
        %v927 = vmul.f32 %v862, %v862
        %v928 = vmul.f32 %v863, %v863
        %v929 = vmul.f32 %v864, %v864
        %v930 = vmul.f32 %v865, %v865
        %v931 = vmul.f32 %v866, %v866
        %v932 = vmul.f32 %v867, %v867
        %v933 = vmul.f32 %v868, %v868
        %v934 = vmul.f32 %v869, %v869
        %v935 = vmul.f32 %v870, %v870
        %v936 = vmul.f32 %v871, %v871
        %v937 = vmul.f32 %v872, %v872
        %v938 = vmul.f32 %v873, %v873
        %v939 = vmul.f32 %v874, %v874
        %v940 = vmul.f32 %v875, %v875
        %v941 = vmul.f32 %v876, %v876
        %v942 = vmul.f32 %v877, %v877
        %v943 = vmul.f32 %v878, %v878
        %v944 = vmul.f32 %v879, %v879
        %v945 = vmul.f32 %v880, %v880
        %v946 = vmul.f32 %v881, %v881
        %v947 = vmul.f32 %v882, %v882
        %v948 = vmul.f32 %v883, %v883
        %vm949 = vcmask 523264
        %v950 = vsel %vm949, %v885, 0.0
        %v951 = vsel %vm949, %v886, 0.0
        %v952 = vadd.f32 %v950, %v951
        %v953 = vsel %vm949, %v887, 0.0
        %v954 = vadd.f32 %v952, %v953
        %v955 = vsel %vm949, %v888, 0.0
        %v956 = vadd.f32 %v954, %v955
        %v957 = vsel %vm949, %v889, 0.0
        %v958 = vadd.f32 %v956, %v957
        %v959 = vsel %vm949, %v890, 0.0
        %v960 = vadd.f32 %v958, %v959
        %v961 = vsel %vm949, %v891, 0.0
        %v962 = vadd.f32 %v960, %v961
        %v963 = vsel %vm949, %v892, 0.0
        %v964 = vadd.f32 %v962, %v963
        %v965 = vsel %vm949, %v893, 0.0
        %v966 = vadd.f32 %v964, %v965
        %v967 = vsel %vm949, %v894, 0.0
        %v968 = vadd.f32 %v966, %v967
        %v969 = vsel %vm949, %v895, 0.0
        %v970 = vadd.f32 %v968, %v969
        %v971 = vsel %vm949, %v896, 0.0
        %v972 = vadd.f32 %v970, %v971
        %v973 = vsel %vm949, %v897, 0.0
        %v974 = vadd.f32 %v972, %v973
        %v975 = vsel %vm949, %v898, 0.0
        %v976 = vadd.f32 %v974, %v975
        %v977 = vsel %vm949, %v899, 0.0
        %v978 = vadd.f32 %v976, %v977
        %v979 = vsel %vm949, %v900, 0.0
        %v980 = vadd.f32 %v978, %v979
        %v981 = vsel %vm949, %v901, 0.0
        %v982 = vadd.f32 %v980, %v981
        %v983 = vsel %vm949, %v902, 0.0
        %v984 = vadd.f32 %v982, %v983
        %v985 = vsel %vm949, %v903, 0.0
        %v986 = vadd.f32 %v984, %v985
        %v987 = vsel %vm949, %v904, 0.0
        %v988 = vadd.f32 %v986, %v987
        %v989 = vsel %vm949, %v905, 0.0
        %v990 = vadd.f32 %v988, %v989
        %v991 = vsel %vm949, %v906, 0.0
        %v992 = vadd.f32 %v990, %v991
        %v993 = vsel %vm949, %v907, 0.0
        %v994 = vadd.f32 %v992, %v993
        %v995 = vsel %vm949, %v908, 0.0
        %v996 = vadd.f32 %v994, %v995
        %v997 = vsel %vm949, %v909, 0.0
        %v998 = vadd.f32 %v996, %v997
        %v999 = vsel %vm949, %v910, 0.0
        %v1000 = vadd.f32 %v998, %v999
        %v1001 = vsel %vm949, %v911, 0.0
        %v1002 = vadd.f32 %v1000, %v1001
        %v1003 = vsel %vm949, %v912, 0.0
        %v1004 = vadd.f32 %v1002, %v1003
        %v1005 = vsel %vm949, %v913, 0.0
        %v1006 = vadd.f32 %v1004, %v1005
        %v1007 = vsel %vm949, %v914, 0.0
        %v1008 = vadd.f32 %v1006, %v1007
        %v1009 = vsel %vm949, %v915, 0.0
        %v1010 = vadd.f32 %v1008, %v1009
        %v1011 = vsel %vm949, %v916, 0.0
        %v1012 = vadd.f32 %v1010, %v1011
        %v1013 = vsel %vm949, %v917, 0.0
        %v1014 = vadd.f32 %v1012, %v1013
        %v1015 = vsel %vm949, %v918, 0.0
        %v1016 = vadd.f32 %v1014, %v1015
        %v1017 = vsel %vm949, %v919, 0.0
        %v1018 = vadd.f32 %v1016, %v1017
        %v1019 = vsel %vm949, %v920, 0.0
        %v1020 = vadd.f32 %v1018, %v1019
        %v1021 = vsel %vm949, %v921, 0.0
        %v1022 = vadd.f32 %v1020, %v1021
        %v1023 = vsel %vm949, %v922, 0.0
        %v1024 = vadd.f32 %v1022, %v1023
        %v1025 = vsel %vm949, %v923, 0.0
        %v1026 = vadd.f32 %v1024, %v1025
        %v1027 = vsel %vm949, %v924, 0.0
        %v1028 = vadd.f32 %v1026, %v1027
        %v1029 = vsel %vm949, %v925, 0.0
        %v1030 = vadd.f32 %v1028, %v1029
        %v1031 = vsel %vm949, %v926, 0.0
        %v1032 = vadd.f32 %v1030, %v1031
        %v1033 = vsel %vm949, %v927, 0.0
        %v1034 = vadd.f32 %v1032, %v1033
        %v1035 = vsel %vm949, %v928, 0.0
        %v1036 = vadd.f32 %v1034, %v1035
        %v1037 = vsel %vm949, %v929, 0.0
        %v1038 = vadd.f32 %v1036, %v1037
        %v1039 = vsel %vm949, %v930, 0.0
        %v1040 = vadd.f32 %v1038, %v1039
        %v1041 = vsel %vm949, %v931, 0.0
        %v1042 = vadd.f32 %v1040, %v1041
        %v1043 = vsel %vm949, %v932, 0.0
        %v1044 = vadd.f32 %v1042, %v1043
        %v1045 = vsel %vm949, %v933, 0.0
        %v1046 = vadd.f32 %v1044, %v1045
        %v1047 = vsel %vm949, %v934, 0.0
        %v1048 = vadd.f32 %v1046, %v1047
        %v1049 = vsel %vm949, %v935, 0.0
        %v1050 = vadd.f32 %v1048, %v1049
        %v1051 = vsel %vm949, %v936, 0.0
        %v1052 = vadd.f32 %v1050, %v1051
        %v1053 = vsel %vm949, %v937, 0.0
        %v1054 = vadd.f32 %v1052, %v1053
        %v1055 = vsel %vm949, %v938, 0.0
        %v1056 = vadd.f32 %v1054, %v1055
        %v1057 = vsel %vm949, %v939, 0.0
        %v1058 = vadd.f32 %v1056, %v1057
        %v1059 = vsel %vm949, %v940, 0.0
        %v1060 = vadd.f32 %v1058, %v1059
        %v1061 = vsel %vm949, %v941, 0.0
        %v1062 = vadd.f32 %v1060, %v1061
        %v1063 = vsel %vm949, %v942, 0.0
        %v1064 = vadd.f32 %v1062, %v1063
        %v1065 = vsel %vm949, %v943, 0.0
        %v1066 = vadd.f32 %v1064, %v1065
        %v1067 = vsel %vm949, %v944, 0.0
        %v1068 = vadd.f32 %v1066, %v1067
        %v1069 = vsel %vm949, %v945, 0.0
        %v1070 = vadd.f32 %v1068, %v1069
        %v1071 = vsel %vm949, %v946, 0.0
        %v1072 = vadd.f32 %v1070, %v1071
        %v1073 = vsel %vm949, %v947, 0.0
        %v1074 = vadd.f32 %v1072, %v1073
        %v1075 = vsel %vm949, %v948, 0.0
        %v1076 = vadd.f32 %v1074, %v1075
        %v1077 = vrot.slane %v1076, 4
        %v1078 = vadd.f32 %v1076, %v1077
        %v1079 = vrot.slane %v1078, 2
        %v1080 = vadd.f32 %v1078, %v1079
        %v1081 = vrot.slane %v1080, 1
        %v1082 = vadd.f32 %v1080, %v1081
        %v1083 = vadd.f32 %v884, %v1082
        %vm1084 = vcmask 516096
        %1085 = vst.msk [vmem:[%s2] sm:$0x1] %vm1084, %v1083
      $region40: #{fwd.11} parent=23 // pred_fallthru
        _
      %p1086 = pnand %p748, %p142
      %p1087 = pneg %p1086
      // Predicated region
      $region41: #{fwd.11} parent=23 // pred_check
        _
      $region42: #{fwd.11} parent=23 // pred_check_branch
        %1089 = sbr.rel (%p1086) target = $region44
      $region43: #{fwd.11} parent=23 // pred_region
        %v1090 = vld [vmem:[%s2] sm:$0x1]
        %v1091 = vmul.f32 %v1090, 0.001953125
        %vm1092 = vcmask 516096
        %1093 = vst.msk [vmem:[%s2] sm:$0x1] %vm1092, %v1091
      $region44: #{fwd.11} parent=23 // pred_fallthru
        _
      // Predicated region
      $region45: #{fwd.11} parent=23 // pred_check
        %p1094 = pneg %p65
      $region46: #{fwd.11} parent=23 // pred_check_branch
        %1096 = sbr.rel (%p1094) target = $region48
      $region47: #{fwd.11} parent=23 // pred_region
        _
      $region48: #{fwd.11} parent=23 // pred_fallthru
        _
      // Predicated region
      $region49: #{fwd.11} parent=23 // pred_check
        %p1097 = pneg %p86
      $region50: #{fwd.11} parent=23 // pred_check_branch
        %1099 = sbr.rel (%p1097) target = $region52
      $region51: #{fwd.11} parent=23 // pred_region
        _
      $region52: #{fwd.11} parent=23 // pred_fallthru
        _
      // Predicated region
      $region53: #{fwd.11} parent=23 // pred_check
        %p1100 = pneg %p65
      $region54: #{fwd.11} parent=23 // pred_check_branch
        %1102 = sbr.rel (%p1100) target = $region56
      $region55: #{fwd.11} parent=23 // pred_region
        _
      $region56: #{fwd.11} parent=23 // pred_fallthru
        _
      // Predicated region
      $region57: #{fwd.11} parent=23 // pred_check
        %p1103 = pneg %p86
      $region58: #{fwd.11} parent=23 // pred_check_branch
        %1105 = sbr.rel (%p1103) target = $region60
      $region59: #{fwd.11} parent=23 // pred_region
        _
      $region60: #{fwd.11} parent=23 // pred_fallthru
        _
    $region24: #{fwd.11} parent=5 // pred_fallthru
      _
    %p1106 = scmp.le.s32.totalorder 2, %s9
    // Predicated region
    $region61: #{fwd.11} parent=5 // pred_check
      %p1107 = pneg %p1106
    $region62: #{fwd.11} parent=5 // pred_check_branch
      %1109 = sbr.rel (%p1107) target = $region64
    $region63: #{fwd.11} parent=5 // pred_region
      %s1110 = ssub.s32 %s9, 2
    $region64: #{fwd.11} parent=5 // pred_fallthru
      _
  $region6: #{fwd.11} parent=0 // loop_footer
    %s13 = sadd.s32 1, %s9
  $region7: #{fwd.11} parent=0 // loop_footer_branch
    %8 = sbr.rel target = $region3
  $region8: #{fwd.11} parent=0 // loop_exit
    _

// kernel: fwd.13
$region0: #{fwd.13}
  #allocation0 [shape = 'u32[]', space=smem, size = 0x4, offset = 0x4, fixed_abs, tag = 'smem constant byte address 0x4 - core index']
  #allocation1 [shape = 'u32[72,128]{1,0:T(1,128)}', space=vmem, size = 0x9000, scoped, tag = 'internal scratch']
  #allocation2 [shape = 'f32[256,64]{1,0:T(8,128)}', space=vmem, size = 0x20000, scoped, tag = 'scratch operand']
  %s0 = inlined_call_operand.vmem [shape: bf16[512,640], index: 0, kind: input, shape index: {}]
  %s1 = inlined_call_operand.vmem [shape: bf16[640,64], index: 1, kind: input, shape index: {}]
  %s2 = inlined_call_operand.vmem [shape: f32[512,64], index: 2, kind: output, shape index: {}]
  %s3 = sld [smem:[#allocation0]]
  $region90: #{fwd.13} parent=0
    _
  %s5 = ssub.s32 1, %s3
  %s6 = scalar_select 0, %s5, %s3
  $region1: #{fwd.13} parent=0
    #allocation3 [shape = 'u8[131072]{0}', space=vmem, size = 0x20000, scoped, tag = 'input window, operand 0']
    loop: start=0, step=1, limit=12
    $region2: #{fwd.13} parent=1 // loop_pre_header
      _
    $region3: #{fwd.13} parent=1 // loop_header
      %s8 = sphi 0, %s12
      %p9 = scmp.ge.s32.totalorder %s8, 12
      %s15 = sphi 0, %s34
      %s16 = sphi 0, %s30
      %s17 = sphi 0, %s26
      %s18 = sphi 0, %s15
      %s19 = sphi 0, %s16
      %s20 = sphi 0, %s17
      %s21 = sphi 0, %s18
      %s22 = sphi 0, %s19
      %s23 = sphi 0, %s20
      %s39 = sphi 0, %s41
      %s42 = sphi 0, %s39
      %s43 = sphi 0, %s42
      %s59 = sphi 0, %s43
      %s67 = sphi 0, %s69
      %s70 = sphi 0, %s67
      %s71 = sphi 0, %s70
      %s87 = sphi 0, %s71
      %s95 = sphi 0, %s97
      %s98 = sphi 0, %s95
      %s99 = sphi 0, %s98
      %s115 = sphi 0, %s99
    $region4: #{fwd.13} parent=1 // loop_header_branch
      %11 = sbr.rel (%p9) target = $region8
    $region5: #{fwd.13} parent=1 // loop_body
      %s13 = ssub.s32 %s8, 1
      %s14 = ssub.s32 %s8, 2
      %s24 = sadd.s32 1, %s17
      %p25 = scmp.ge.s32.totalorder %s24, 5
      %s26 = scalar_select %p25, 0, %s24
      %s27 = sadd.s32 1, %s16
      %s28 = scalar_select %p25, %s27, %s16
      %p29 = scmp.ge.s32.totalorder %s28, 1
      %s30 = scalar_select %p29, 0, %s28
      %s31 = sadd.s32 1, %s15
      %s32 = scalar_select %p29, %s31, %s15
      %p33 = scmp.ge.s32.totalorder %s32, 2
      %s34 = scalar_select %p33, 0, %s32
      %s35 = ssub.s32 %s15, %s34
      %s36 = ssub.s32 %s17, %s26
      %s37 = sor.u32 %s35, %s36
      %p38 = scmp.eq.s32.totalorder %s37, 0
      %s40 = sadd.s32 %s39, 1
      %s41 = scalar_select %p38, %s39, %s40
      %p44 = pneg %p38
      %p45 = scmp.eq.s32.totalorder %s8, 9
      %p46 = por %p44, %p45
      %p47 = scmp.ne.s32.totalorder %s39, %s42
      %p48 = scmp.eq.s32.totalorder %s8, 0
      %p49 = por %p47, %p48
      %p50 = scmp.ne.s32.totalorder %s39, %s42
      %p51 = scmp.eq.s32.totalorder %s13, 9
      %p52 = por %p50, %p51
      %p53 = scmp.ne.s32.totalorder %s42, %s43
      %p54 = scmp.eq.s32.totalorder %s13, 0
      %p55 = por %p53, %p54
      %p56 = scmp.ne.s32.totalorder %s42, %s43
      %p57 = scmp.eq.s32.totalorder %s14, 9
      %p58 = por %p56, %p57
      %p60 = scmp.ne.s32.totalorder %s43, %s59
      %p61 = scmp.eq.s32.totalorder %s14, 0
      %p62 = por %p60, %p61
      %s63 = ssub.s32 %s17, %s26
      %s64 = ssub.s32 %s16, %s30
      %s65 = sor.u32 %s63, %s64
      %p66 = scmp.eq.s32.totalorder %s65, 0
      %s68 = sadd.s32 %s67, 1
      %s69 = scalar_select %p66, %s67, %s68
      %p72 = pneg %p66
      %p73 = scmp.eq.s32.totalorder %s8, 9
      %p74 = por %p72, %p73
      %p75 = scmp.ne.s32.totalorder %s67, %s70
      %p76 = scmp.eq.s32.totalorder %s8, 0
      %p77 = por %p75, %p76
      %p78 = scmp.ne.s32.totalorder %s67, %s70
      %p79 = scmp.eq.s32.totalorder %s13, 9
      %p80 = por %p78, %p79
      %p81 = scmp.ne.s32.totalorder %s70, %s71
      %p82 = scmp.eq.s32.totalorder %s13, 0
      %p83 = por %p81, %p82
      %p84 = scmp.ne.s32.totalorder %s70, %s71
      %p85 = scmp.eq.s32.totalorder %s14, 9
      %p86 = por %p84, %p85
      %p88 = scmp.ne.s32.totalorder %s71, %s87
      %p89 = scmp.eq.s32.totalorder %s14, 0
      %p90 = por %p88, %p89
      %s91 = ssub.s32 %s15, %s34
      %s92 = ssub.s32 %s16, %s30
      %s93 = sor.u32 %s91, %s92
      %p94 = scmp.eq.s32.totalorder %s93, 0
      %s96 = sadd.s32 %s95, 1
      %s97 = scalar_select %p94, %s95, %s96
      %p100 = pneg %p94
      %p101 = scmp.eq.s32.totalorder %s8, 9
      %p102 = por %p100, %p101
      %p103 = scmp.ne.s32.totalorder %s95, %s98
      %p104 = scmp.eq.s32.totalorder %s8, 0
      %p105 = por %p103, %p104
      %p106 = scmp.ne.s32.totalorder %s95, %s98
      %p107 = scmp.eq.s32.totalorder %s13, 9
      %p108 = por %p106, %p107
      %p109 = scmp.ne.s32.totalorder %s98, %s99
      %p110 = scmp.eq.s32.totalorder %s13, 0
      %p111 = por %p109, %p110
      %p112 = scmp.ne.s32.totalorder %s98, %s99
      %p113 = scmp.eq.s32.totalorder %s14, 9
      %p114 = por %p112, %p113
      %p116 = scmp.ne.s32.totalorder %s99, %s115
      %p117 = scmp.eq.s32.totalorder %s14, 0
      %p118 = por %p116, %p117
      %p119 = scmp.le.s32.totalorder 1, %s8
      %p120 = scmp.lt.s32.totalorder %s8, 11
      %p121 = pnand %p119, %p120
      %p122 = pneg %p121
      // Predicated region
      $region9: #{fwd.13} parent=5 // pred_check
        _
      $region10: #{fwd.13} parent=5 // pred_check_branch
        %124 = sbr.rel (%p121) target = $region12
      $region11: #{fwd.13} parent=5 // pred_region
        %s125 = ssub.s32 %s8, 1
      $region12: #{fwd.13} parent=5 // pred_fallthru
        _
      %p126 = scmp.lt.s32.totalorder %s8, 10
      // Predicated region
      $region13: #{fwd.13} parent=5 // pred_check
        %p127 = pneg %p126
      $region14: #{fwd.13} parent=5 // pred_check_branch
        %129 = sbr.rel (%p127) target = $region16
      $region15: #{fwd.13} parent=5 // pred_region
        // Predicated region
        $region17: #{fwd.13} parent=15 // pred_check
          %p130 = pneg %p49
        $region18: #{fwd.13} parent=15 // pred_check_branch
          %132 = sbr.rel (%p130) target = $region20
        $region19: #{fwd.13} parent=15 // pred_region
          %s133 = sand.u32 %s39, 1
          %s134 = sand.u32 %s39, 1
          %s135 = smul.addr %s134, 128
          %s136 = scalar_lea.vmem [#allocation3], %s135
          %s137 = smul.u32 32, %s15
          %s138 = smul.addr %s137, 5
          %s139 = sadd.s32 %s17, %s138
          %s140 = smul.addr %s139, 4
          %s141 = scalar_lea.vmem %s0, %s140
          // Predicated region
          $region21: #{fwd.13} parent=19 // pred_check
            _
          $region22: #{fwd.13} parent=19 // pred_check_branch
            %143 = sbr.rel (0) target = $region24
          $region23: #{fwd.13} parent=19 // pred_region
            // Predicated region
            $region25: #{fwd.13} parent=23 // pred_check
              _
            $region26: #{fwd.13} parent=23 // pred_check_branch
              %145 = sbr.rel target = $region28
            $region27: #{fwd.13} parent=23 // pred_region
              // Predicated region
              $region40: #{fwd.13} parent=27 // pred_check
                _
              $region41: #{fwd.13} parent=27 // pred_check_branch
                %223 = sbr.rel (0) target = $region43
              $region42: #{fwd.13} parent=27 // pred_region
                loop: start=0, step=1, limit=1
                $region44: #{fwd.13} parent=42 // loop_pre_header
                  _
                $region45: #{fwd.13} parent=42 // loop_header
                  %s225 = sphi 0, %s229
                  %p226 = scmp.ge.s32.totalorder %s225, 1
                  %s230 = sphi %s141, %s141
                  %s231 = sphi %s136, %s136
                $region46: #{fwd.13} parent=42 // loop_header_branch
                  %228 = sbr.rel (%p226) target = $region50
                $region47: #{fwd.13} parent=42 // loop_body
                  _
                $region48: #{fwd.13} parent=42 // loop_footer
                  %s229 = sadd.s32 1, %s225
                $region49: #{fwd.13} parent=42 // loop_footer_branch
                  %224 = sbr.rel target = $region45
                $region50: #{fwd.13} parent=42 // loop_exit
                  _
                %s233 = ssub.s32 16, 1
                loop: start=0, step=1, limit=1
                $region51: #{fwd.13} parent=42 // loop_pre_header
                  _
                $region52: #{fwd.13} parent=42 // loop_header
                  %s235 = sphi 0, %s239
                  %p236 = scmp.ge.s32.totalorder %s235, 1
                  %s240 = sphi %s141, %s141
                  %s241 = sphi %s136, %s136
                $region53: #{fwd.13} parent=42 // loop_header_branch
                  %238 = sbr.rel (%p236) target = $region57
                $region54: #{fwd.13} parent=42 // loop_body
                  %v242 = vld [vmem:[%s240] sm:%s233]
                  %243 = vst [vmem:[%s241] sm:%s233] %v242
                  %v244 = vld [vmem:[%s240 + $0x14] sm:%s233]
                  %245 = vst [vmem:[%s241 + $0x4] sm:%s233] %v244
                  %v246 = vld [vmem:[%s240 + $0x28] sm:%s233]
                  %247 = vst [vmem:[%s241 + $0x8] sm:%s233] %v246
                  %v248 = vld [vmem:[%s240 + $0x3c] sm:%s233]
                  %249 = vst [vmem:[%s241 + $0xc] sm:%s233] %v248
                  %v250 = vld [vmem:[%s240 + $0x50] sm:%s233]
                  %251 = vst [vmem:[%s241 + $0x10] sm:%s233] %v250
                  %v252 = vld [vmem:[%s240 + $0x64] sm:%s233]
                  %253 = vst [vmem:[%s241 + $0x14] sm:%s233] %v252
                  %v254 = vld [vmem:[%s240 + $0x78] sm:%s233]
                  %255 = vst [vmem:[%s241 + $0x18] sm:%s233] %v254
                  %v256 = vld [vmem:[%s240 + $0x8c] sm:%s233]
                  %257 = vst [vmem:[%s241 + $0x1c] sm:%s233] %v256
                  %v258 = vld [vmem:[%s240 + $0xa0] sm:%s233]
                  %259 = vst [vmem:[%s241 + $0x20] sm:%s233] %v258
                  %v260 = vld [vmem:[%s240 + $0xb4] sm:%s233]
                  %261 = vst [vmem:[%s241 + $0x24] sm:%s233] %v260
                  %v262 = vld [vmem:[%s240 + $0xc8] sm:%s233]
                  %263 = vst [vmem:[%s241 + $0x28] sm:%s233] %v262
                  %v264 = vld [vmem:[%s240 + $0xdc] sm:%s233]
                  %265 = vst [vmem:[%s241 + $0x2c] sm:%s233] %v264
                  %v266 = vld [vmem:[%s240 + $0xf0] sm:%s233]
                  %267 = vst [vmem:[%s241 + $0x30] sm:%s233] %v266
                  %v268 = vld [vmem:[%s240 + $0x104] sm:%s233]
                  %269 = vst [vmem:[%s241 + $0x34] sm:%s233] %v268
                  %v270 = vld [vmem:[%s240 + $0x118] sm:%s233]
                  %271 = vst [vmem:[%s241 + $0x38] sm:%s233] %v270
                  %v272 = vld [vmem:[%s240 + $0x12c] sm:%s233]
                  %273 = vst [vmem:[%s241 + $0x3c] sm:%s233] %v272
                  %v274 = vld [vmem:[%s240 + $0x140] sm:%s233]
                  %275 = vst [vmem:[%s241 + $0x40] sm:%s233] %v274
                  %v276 = vld [vmem:[%s240 + $0x154] sm:%s233]
                  %277 = vst [vmem:[%s241 + $0x44] sm:%s233] %v276
                  %v278 = vld [vmem:[%s240 + $0x168] sm:%s233]
                  %279 = vst [vmem:[%s241 + $0x48] sm:%s233] %v278
                  %v280 = vld [vmem:[%s240 + $0x17c] sm:%s233]
                  %281 = vst [vmem:[%s241 + $0x4c] sm:%s233] %v280
                  %v282 = vld [vmem:[%s240 + $0x190] sm:%s233]
                  %283 = vst [vmem:[%s241 + $0x50] sm:%s233] %v282
                  %v284 = vld [vmem:[%s240 + $0x1a4] sm:%s233]
                  %285 = vst [vmem:[%s241 + $0x54] sm:%s233] %v284
                  %v286 = vld [vmem:[%s240 + $0x1b8] sm:%s233]
                  %287 = vst [vmem:[%s241 + $0x58] sm:%s233] %v286
                  %v288 = vld [vmem:[%s240 + $0x1cc] sm:%s233]
                  %289 = vst [vmem:[%s241 + $0x5c] sm:%s233] %v288
                  %v290 = vld [vmem:[%s240 + $0x1e0] sm:%s233]
                  %291 = vst [vmem:[%s241 + $0x60] sm:%s233] %v290
                  %v292 = vld [vmem:[%s240 + $0x1f4] sm:%s233]
                  %293 = vst [vmem:[%s241 + $0x64] sm:%s233] %v292
                  %v294 = vld [vmem:[%s240 + $0x208] sm:%s233]
                  %295 = vst [vmem:[%s241 + $0x68] sm:%s233] %v294
                  %v296 = vld [vmem:[%s240 + $0x21c] sm:%s233]
                  %297 = vst [vmem:[%s241 + $0x6c] sm:%s233] %v296
                  %v298 = vld [vmem:[%s240 + $0x230] sm:%s233]
                  %299 = vst [vmem:[%s241 + $0x70] sm:%s233] %v298
                  %v300 = vld [vmem:[%s240 + $0x244] sm:%s233]
                  %301 = vst [vmem:[%s241 + $0x74] sm:%s233] %v300
                  %v302 = vld [vmem:[%s240 + $0x258] sm:%s233]
                  %303 = vst [vmem:[%s241 + $0x78] sm:%s233] %v302
                  %v304 = vld [vmem:[%s240 + $0x26c] sm:%s233]
                  %305 = vst [vmem:[%s241 + $0x7c] sm:%s233] %v304
                $region55: #{fwd.13} parent=42 // loop_footer
                  %s239 = sadd.s32 1, %s235
                $region56: #{fwd.13} parent=42 // loop_footer_branch
                  %234 = sbr.rel target = $region52
                $region57: #{fwd.13} parent=42 // loop_exit
                  _
              $region43: #{fwd.13} parent=27 // pred_fallthru
                _
            $region28: #{fwd.13} parent=23 // pred_fallthru
              _
            // Predicated region
            $region29: #{fwd.13} parent=23 // pred_check
              _
            $region30: #{fwd.13} parent=23 // pred_check_branch
              %147 = sbr.rel (0) target = $region32
            $region31: #{fwd.13} parent=23 // pred_region
              %s149 = ssub.s32 16, 1
              loop: start=0, step=1, limit=1
              $region33: #{fwd.13} parent=31 // loop_pre_header
                _
              $region34: #{fwd.13} parent=31 // loop_header
                %s151 = sphi 0, %s155
                %p152 = scmp.ge.s32.totalorder %s151, 1
                %s156 = sphi %s141, %s141
                %s157 = sphi %s136, %s136
              $region35: #{fwd.13} parent=31 // loop_header_branch
                %154 = sbr.rel (%p152) target = $region39
              $region36: #{fwd.13} parent=31 // loop_body
                %v158 = vld [vmem:[%s156] sm:%s149]
                %159 = vst [vmem:[%s157] sm:%s149] %v158
                %v160 = vld [vmem:[%s156 + $0x14] sm:%s149]
                %161 = vst [vmem:[%s157 + $0x4] sm:%s149] %v160
                %v162 = vld [vmem:[%s156 + $0x28] sm:%s149]
                %163 = vst [vmem:[%s157 + $0x8] sm:%s149] %v162
                %v164 = vld [vmem:[%s156 + $0x3c] sm:%s149]
                %165 = vst [vmem:[%s157 + $0xc] sm:%s149] %v164
                %v166 = vld [vmem:[%s156 + $0x50] sm:%s149]
                %167 = vst [vmem:[%s157 + $0x10] sm:%s149] %v166
                %v168 = vld [vmem:[%s156 + $0x64] sm:%s149]
                %169 = vst [vmem:[%s157 + $0x14] sm:%s149] %v168
                %v170 = vld [vmem:[%s156 + $0x78] sm:%s149]
                %171 = vst [vmem:[%s157 + $0x18] sm:%s149] %v170
                %v172 = vld [vmem:[%s156 + $0x8c] sm:%s149]
                %173 = vst [vmem:[%s157 + $0x1c] sm:%s149] %v172
                %v174 = vld [vmem:[%s156 + $0xa0] sm:%s149]
                %175 = vst [vmem:[%s157 + $0x20] sm:%s149] %v174
                %v176 = vld [vmem:[%s156 + $0xb4] sm:%s149]
                %177 = vst [vmem:[%s157 + $0x24] sm:%s149] %v176
                %v178 = vld [vmem:[%s156 + $0xc8] sm:%s149]
                %179 = vst [vmem:[%s157 + $0x28] sm:%s149] %v178
                %v180 = vld [vmem:[%s156 + $0xdc] sm:%s149]
                %181 = vst [vmem:[%s157 + $0x2c] sm:%s149] %v180
                %v182 = vld [vmem:[%s156 + $0xf0] sm:%s149]
                %183 = vst [vmem:[%s157 + $0x30] sm:%s149] %v182
                %v184 = vld [vmem:[%s156 + $0x104] sm:%s149]
                %185 = vst [vmem:[%s157 + $0x34] sm:%s149] %v184
                %v186 = vld [vmem:[%s156 + $0x118] sm:%s149]
                %187 = vst [vmem:[%s157 + $0x38] sm:%s149] %v186
                %v188 = vld [vmem:[%s156 + $0x12c] sm:%s149]
                %189 = vst [vmem:[%s157 + $0x3c] sm:%s149] %v188
                %v190 = vld [vmem:[%s156 + $0x140] sm:%s149]
                %191 = vst [vmem:[%s157 + $0x40] sm:%s149] %v190
                %v192 = vld [vmem:[%s156 + $0x154] sm:%s149]
                %193 = vst [vmem:[%s157 + $0x44] sm:%s149] %v192
                %v194 = vld [vmem:[%s156 + $0x168] sm:%s149]
                %195 = vst [vmem:[%s157 + $0x48] sm:%s149] %v194
                %v196 = vld [vmem:[%s156 + $0x17c] sm:%s149]
                %197 = vst [vmem:[%s157 + $0x4c] sm:%s149] %v196
                %v198 = vld [vmem:[%s156 + $0x190] sm:%s149]
                %199 = vst [vmem:[%s157 + $0x50] sm:%s149] %v198
                %v200 = vld [vmem:[%s156 + $0x1a4] sm:%s149]
                %201 = vst [vmem:[%s157 + $0x54] sm:%s149] %v200
                %v202 = vld [vmem:[%s156 + $0x1b8] sm:%s149]
                %203 = vst [vmem:[%s157 + $0x58] sm:%s149] %v202
                %v204 = vld [vmem:[%s156 + $0x1cc] sm:%s149]
                %205 = vst [vmem:[%s157 + $0x5c] sm:%s149] %v204
                %v206 = vld [vmem:[%s156 + $0x1e0] sm:%s149]
                %207 = vst [vmem:[%s157 + $0x60] sm:%s149] %v206
                %v208 = vld [vmem:[%s156 + $0x1f4] sm:%s149]
                %209 = vst [vmem:[%s157 + $0x64] sm:%s149] %v208
                %v210 = vld [vmem:[%s156 + $0x208] sm:%s149]
                %211 = vst [vmem:[%s157 + $0x68] sm:%s149] %v210
                %v212 = vld [vmem:[%s156 + $0x21c] sm:%s149]
                %213 = vst [vmem:[%s157 + $0x6c] sm:%s149] %v212
                %v214 = vld [vmem:[%s156 + $0x230] sm:%s149]
                %215 = vst [vmem:[%s157 + $0x70] sm:%s149] %v214
                %v216 = vld [vmem:[%s156 + $0x244] sm:%s149]
                %217 = vst [vmem:[%s157 + $0x74] sm:%s149] %v216
                %v218 = vld [vmem:[%s156 + $0x258] sm:%s149]
                %219 = vst [vmem:[%s157 + $0x78] sm:%s149] %v218
                %v220 = vld [vmem:[%s156 + $0x26c] sm:%s149]
                %221 = vst [vmem:[%s157 + $0x7c] sm:%s149] %v220
              $region37: #{fwd.13} parent=31 // loop_footer
                %s155 = sadd.s32 1, %s151
              $region38: #{fwd.13} parent=31 // loop_footer_branch
                %150 = sbr.rel target = $region34
              $region39: #{fwd.13} parent=31 // loop_exit
                _
            $region32: #{fwd.13} parent=23 // pred_fallthru
              _
          $region24: #{fwd.13} parent=19 // pred_fallthru
            _
          %306 = vnop
        $region20: #{fwd.13} parent=15 // pred_fallthru
          _
        // Predicated region
        $region58: #{fwd.13} parent=15 // pred_check
          %p307 = pneg %p77
        $region59: #{fwd.13} parent=15 // pred_check_branch
          %309 = sbr.rel (%p307) target = $region61
        $region60: #{fwd.13} parent=15 // pred_region
          %s310 = smul.u32 16, %s17
          %p311 = scmp.lt.s32.totalorder %s310, 79
          %s312 = scalar_select %p311, %s310, 79
          %p313 = scmp.lt.s32.totalorder %s16, 0
          %s314 = scalar_select %p313, %s16, 0
          %s315 = sadd.s32 %s314, %s312
          %s316 = smul.addr %s315, 4
          %s317 = scalar_lea.vmem %s1, %s316
          %s318 = smul.u32 16, %s17
        $region61: #{fwd.13} parent=15 // pred_fallthru
          _
      $region16: #{fwd.13} parent=5 // pred_fallthru
        _
      %p319 = scmp.le.s32.totalorder 1, %s8
      %p320 = scmp.lt.s32.totalorder %s8, 11
      %p321 = pnand %p319, %p320
      %p322 = pneg %p321
      // Predicated region
      $region62: #{fwd.13} parent=5 // pred_check
        _
      $region63: #{fwd.13} parent=5 // pred_check_branch
        %324 = sbr.rel (%p321) target = $region65
      $region64: #{fwd.13} parent=5 // pred_region
        %s325 = ssub.s32 %s8, 1
        %s326 = sand.u32 %s42, 1
        %s327 = sand.u32 %s42, 1
        %s328 = smul.addr %s327, 128
        %s329 = scalar_lea.vmem [#allocation3], %s328
        // Predicated region
        $region66: #{fwd.13} parent=64 // pred_check
          %p330 = pneg %p55
        $region67: #{fwd.13} parent=64 // pred_check_branch
          %332 = sbr.rel (%p330) target = $region69
        $region68: #{fwd.13} parent=64 // pred_region
          _
        $region69: #{fwd.13} parent=64 // pred_fallthru
          _
        %s333 = sand.u32 %s42, 1
        %s334 = sand.u32 %s42, 1
        %s335 = smul.addr %s334, 128
        %s336 = scalar_lea.vmem [#allocation3], %s335
        %p337 = pneg %p55
        %p338 = pneg %p52
        %s339 = smul.u32 16, %s20
        %p340 = scmp.lt.s32.totalorder %s339, 79
        %s341 = scalar_select %p340, %s339, 79
        %p342 = scmp.lt.s32.totalorder %s19, 0
        %s343 = scalar_select %p342, %s19, 0
        %s344 = sadd.s32 %s343, %s341
        %s345 = smul.addr %s344, 4
        %s346 = scalar_lea.vmem %s1, %s345
        %p347 = pneg %p83
        %p348 = pneg %p80
        %p349 = pneg %p111
        %p350 = pneg %p108
        %s351 = smul.u32 32, %s18
        %p352 = scmp.lt.s32.totalorder %s351, 63
        %s353 = scalar_select %p352, %s351, 63
        %p354 = scmp.lt.s32.totalorder %s19, 0
        %s355 = scalar_select %p354, %s19, 0
        %s356 = sadd.s32 %s355, %s353
        %s357 = smul.addr %s356, 8
        %s358 = scalar_lea.vmem %s2, %s357
        %s359 = smul.u32 32, %s18
        %s360 = smul.u32 16, %s20
        %p361 = scmp.lt.s32.totalorder %s360, 79
        %s362 = scalar_select %p361, %s360, 79
        %p363 = scmp.lt.s32.totalorder %s19, 0
        %s364 = scalar_select %p363, %s19, 0
        %s365 = sadd.s32 %s364, %s362
        %s366 = smul.addr %s365, 4
        %s367 = scalar_lea.vmem %s1, %s366
        %s368 = smul.u32 16, %s20
        %s369 = smul.u32 32, %s18
        %p370 = scmp.lt.s32.totalorder %s369, 63
        %s371 = scalar_select %p370, %s369, 63
        %p372 = scmp.lt.s32.totalorder %s19, 0
        %s373 = scalar_select %p372, %s19, 0
        %s374 = sadd.s32 %s373, %s371
        %s375 = smul.addr %s374, 8
        %s376 = scalar_lea.vmem %s2, %s375
        %s377 = smul.u32 32, %s18
        %p378 = scmp.eq.s32.totalorder %s20, 0
        // Predicated region
        $region70: #{fwd.13} parent=64 // pred_check
          %p379 = pneg %p378
        $region71: #{fwd.13} parent=64 // pred_check_branch
          %381 = sbr.rel (%p379) target = $region73
        $region72: #{fwd.13} parent=64 // pred_region
          %vm382 = vcmask 523264
          %383 = vst.msk [vmem:[#allocation2] sm:$0xff] %vm382, 0.0
          %384 = vst.msk [vmem:[#allocation2 + $0x8] sm:$0xff] %vm382, 0.0
          %385 = vst.msk [vmem:[#allocation2 + $0x10] sm:$0xff] %vm382, 0.0
          %386 = vst.msk [vmem:[#allocation2 + $0x18] sm:$0xff] %vm382, 0.0
          %387 = vst.msk [vmem:[#allocation2 + $0x20] sm:$0xff] %vm382, 0.0
          %388 = vst.msk [vmem:[#allocation2 + $0x28] sm:$0xff] %vm382, 0.0
          %389 = vst.msk [vmem:[#allocation2 + $0x30] sm:$0xff] %vm382, 0.0
          %390 = vst.msk [vmem:[#allocation2 + $0x38] sm:$0xff] %vm382, 0.0
          %391 = vst.msk [vmem:[#allocation2 + $0x40] sm:$0xff] %vm382, 0.0
          %392 = vst.msk [vmem:[#allocation2 + $0x48] sm:$0xff] %vm382, 0.0
          %393 = vst.msk [vmem:[#allocation2 + $0x50] sm:$0xff] %vm382, 0.0
          %394 = vst.msk [vmem:[#allocation2 + $0x58] sm:$0xff] %vm382, 0.0
          %395 = vst.msk [vmem:[#allocation2 + $0x60] sm:$0xff] %vm382, 0.0
          %396 = vst.msk [vmem:[#allocation2 + $0x68] sm:$0xff] %vm382, 0.0
          %397 = vst.msk [vmem:[#allocation2 + $0x70] sm:$0xff] %vm382, 0.0
          %398 = vst.msk [vmem:[#allocation2 + $0x78] sm:$0xff] %vm382, 0.0
          %399 = vst.msk [vmem:[#allocation2 + $0x80] sm:$0xff] %vm382, 0.0
          %400 = vst.msk [vmem:[#allocation2 + $0x88] sm:$0xff] %vm382, 0.0
          %401 = vst.msk [vmem:[#allocation2 + $0x90] sm:$0xff] %vm382, 0.0
          %402 = vst.msk [vmem:[#allocation2 + $0x98] sm:$0xff] %vm382, 0.0
          %403 = vst.msk [vmem:[#allocation2 + $0xa0] sm:$0xff] %vm382, 0.0
          %404 = vst.msk [vmem:[#allocation2 + $0xa8] sm:$0xff] %vm382, 0.0
          %405 = vst.msk [vmem:[#allocation2 + $0xb0] sm:$0xff] %vm382, 0.0
          %406 = vst.msk [vmem:[#allocation2 + $0xb8] sm:$0xff] %vm382, 0.0
          %407 = vst.msk [vmem:[#allocation2 + $0xc0] sm:$0xff] %vm382, 0.0
          %408 = vst.msk [vmem:[#allocation2 + $0xc8] sm:$0xff] %vm382, 0.0
          %409 = vst.msk [vmem:[#allocation2 + $0xd0] sm:$0xff] %vm382, 0.0
          %410 = vst.msk [vmem:[#allocation2 + $0xd8] sm:$0xff] %vm382, 0.0
          %411 = vst.msk [vmem:[#allocation2 + $0xe0] sm:$0xff] %vm382, 0.0
          %412 = vst.msk [vmem:[#allocation2 + $0xe8] sm:$0xff] %vm382, 0.0
          %413 = vst.msk [vmem:[#allocation2 + $0xf0] sm:$0xff] %vm382, 0.0
          %414 = vst.msk [vmem:[#allocation2 + $0xf8] sm:$0xff] %vm382, 0.0
        $region73: #{fwd.13} parent=64 // pred_fallthru
          _
        %v415 = vld [vmem:[#allocation2] sm:$0xff]
        %v416 = vld [vmem:[#allocation2 + $0x8] sm:$0xff]
        %v417 = vld [vmem:[#allocation2 + $0x10] sm:$0xff]
        %v418 = vld [vmem:[#allocation2 + $0x18] sm:$0xff]
        %v419 = vld [vmem:[#allocation2 + $0x20] sm:$0xff]
        %v420 = vld [vmem:[#allocation2 + $0x28] sm:$0xff]
        %v421 = vld [vmem:[#allocation2 + $0x30] sm:$0xff]
        %v422 = vld [vmem:[#allocation2 + $0x38] sm:$0xff]
        %v423 = vld [vmem:[#allocation2 + $0x40] sm:$0xff]
        %v424 = vld [vmem:[#allocation2 + $0x48] sm:$0xff]
        %v425 = vld [vmem:[#allocation2 + $0x50] sm:$0xff]
        %v426 = vld [vmem:[#allocation2 + $0x58] sm:$0xff]
        %v427 = vld [vmem:[#allocation2 + $0x60] sm:$0xff]
        %v428 = vld [vmem:[#allocation2 + $0x68] sm:$0xff]
        %v429 = vld [vmem:[#allocation2 + $0x70] sm:$0xff]
        %v430 = vld [vmem:[#allocation2 + $0x78] sm:$0xff]
        %v431 = vld [vmem:[#allocation2 + $0x80] sm:$0xff]
        %v432 = vld [vmem:[#allocation2 + $0x88] sm:$0xff]
        %v433 = vld [vmem:[#allocation2 + $0x90] sm:$0xff]
        %v434 = vld [vmem:[#allocation2 + $0x98] sm:$0xff]
        %v435 = vld [vmem:[#allocation2 + $0xa0] sm:$0xff]
        %v436 = vld [vmem:[#allocation2 + $0xa8] sm:$0xff]
        %v437 = vld [vmem:[#allocation2 + $0xb0] sm:$0xff]
        %v438 = vld [vmem:[#allocation2 + $0xb8] sm:$0xff]
        %v439 = vld [vmem:[#allocation2 + $0xc0] sm:$0xff]
        %v440 = vld [vmem:[#allocation2 + $0xc8] sm:$0xff]
        %v441 = vld [vmem:[#allocation2 + $0xd0] sm:$0xff]
        %v442 = vld [vmem:[#allocation2 + $0xd8] sm:$0xff]
        %v443 = vld [vmem:[#allocation2 + $0xe0] sm:$0xff]
        %v444 = vld [vmem:[#allocation2 + $0xe8] sm:$0xff]
        %v445 = vld [vmem:[#allocation2 + $0xf0] sm:$0xff]
        %v446 = vld [vmem:[#allocation2 + $0xf8] sm:$0xff]
        %v447 = vld [vmem:[%s329] sm:$0xf]
        %v448 = vld [vmem:[%s329 + $0x4] sm:$0xf]
        %v449 = vld [vmem:[%s329 + $0x8] sm:$0xf]
        %v450 = vld [vmem:[%s329 + $0xc] sm:$0xf]
        %v451 = vld [vmem:[%s329 + $0x10] sm:$0xf]
        %v452 = vld [vmem:[%s329 + $0x14] sm:$0xf]
        %v453 = vld [vmem:[%s329 + $0x18] sm:$0xf]
        %v454 = vld [vmem:[%s329 + $0x1c] sm:$0xf]
        %v455 = vld [vmem:[%s329 + $0x20] sm:$0xf]
        %v456 = vld [vmem:[%s329 + $0x24] sm:$0xf]
        %v457 = vld [vmem:[%s329 + $0x28] sm:$0xf]
        %v458 = vld [vmem:[%s329 + $0x2c] sm:$0xf]
        %v459 = vld [vmem:[%s329 + $0x30] sm:$0xf]
        %v460 = vld [vmem:[%s329 + $0x34] sm:$0xf]
        %v461 = vld [vmem:[%s329 + $0x38] sm:$0xf]
        %v462 = vld [vmem:[%s329 + $0x3c] sm:$0xf]
        %v463 = vld [vmem:[%s329 + $0x40] sm:$0xf]
        %v464 = vld [vmem:[%s329 + $0x44] sm:$0xf]
        %v465 = vld [vmem:[%s329 + $0x48] sm:$0xf]
        %v466 = vld [vmem:[%s329 + $0x4c] sm:$0xf]
        %v467 = vld [vmem:[%s329 + $0x50] sm:$0xf]
        %v468 = vld [vmem:[%s329 + $0x54] sm:$0xf]
        %v469 = vld [vmem:[%s329 + $0x58] sm:$0xf]
        %v470 = vld [vmem:[%s329 + $0x5c] sm:$0xf]
        %v471 = vld [vmem:[%s329 + $0x60] sm:$0xf]
        %v472 = vld [vmem:[%s329 + $0x64] sm:$0xf]
        %v473 = vld [vmem:[%s329 + $0x68] sm:$0xf]
        %v474 = vld [vmem:[%s329 + $0x6c] sm:$0xf]
        %v475 = vld [vmem:[%s329 + $0x70] sm:$0xf]
        %v476 = vld [vmem:[%s329 + $0x74] sm:$0xf]
        %v477 = vld [vmem:[%s329 + $0x78] sm:$0xf]
        %v478 = vld [vmem:[%s329 + $0x7c] sm:$0xf]
        %v479 = vld [vmem:[%s367] sm:$0xf]
        %v480 = vld [vmem:[%s367 + $0x4] sm:$0xf]
        %v481 = vld [vmem:[%s367 + $0x8] sm:$0xf]
        %v482 = vld [vmem:[%s367 + $0xc] sm:$0xf]
        %v483 = vld [vmem:[%s367 + $0x10] sm:$0xf]
        %v484 = vld [vmem:[%s367 + $0x14] sm:$0xf]
        %v485 = vld [vmem:[%s367 + $0x18] sm:$0xf]
        %v486 = vld [vmem:[%s367 + $0x1c] sm:$0xf]
        %v487 = vld [vmem:[%s367 + $0x20] sm:$0xf]
        %v488 = vld [vmem:[%s367 + $0x24] sm:$0xf]
        %v489 = vld [vmem:[%s367 + $0x28] sm:$0xf]
        %v490 = vld [vmem:[%s367 + $0x2c] sm:$0xf]
        %v491 = vld [vmem:[%s367 + $0x30] sm:$0xf]
        %v492 = vld [vmem:[%s367 + $0x34] sm:$0xf]
        %v493 = vld [vmem:[%s367 + $0x38] sm:$0xf]
        %v494 = vld [vmem:[%s367 + $0x3c] sm:$0xf]
        %v527 = vunpack.c.l.b16 %v447
        %v528 = vunpack.c.l.b16 %v448
        %v529 = vunpack.c.l.b16 %v449
        %v530 = vunpack.c.l.b16 %v450
        %v531 = vunpack.c.l.b16 %v451
        %v532 = vunpack.c.l.b16 %v452
        %v533 = vunpack.c.l.b16 %v453
        %v534 = vunpack.c.l.b16 %v454
        %v535 = vunpack.c.l.b16 %v455
        %v536 = vunpack.c.l.b16 %v456
        %v537 = vunpack.c.l.b16 %v457
        %v538 = vunpack.c.l.b16 %v458
        %v539 = vunpack.c.l.b16 %v459
        %v540 = vunpack.c.l.b16 %v460
        %v541 = vunpack.c.l.b16 %v461
        %v542 = vunpack.c.l.b16 %v462
        %v543 = vunpack.c.l.b16 %v463
        %v544 = vunpack.c.l.b16 %v464
        %v545 = vunpack.c.l.b16 %v465
        %v546 = vunpack.c.l.b16 %v466
        %v547 = vunpack.c.l.b16 %v467
        %v548 = vunpack.c.l.b16 %v468
        %v549 = vunpack.c.l.b16 %v469
        %v550 = vunpack.c.l.b16 %v470
        %v551 = vunpack.c.l.b16 %v471
        %v552 = vunpack.c.l.b16 %v472
        %v553 = vunpack.c.l.b16 %v473
        %v554 = vunpack.c.l.b16 %v474
        %v555 = vunpack.c.l.b16 %v475
        %v556 = vunpack.c.l.b16 %v476
        %v557 = vunpack.c.l.b16 %v477
        %v558 = vunpack.c.l.b16 %v478
        %v559 = vpack.c.b16 %v528, %v527
        %v560 = vpack.c.b16 %v530, %v529
        %v561 = vpack.c.b16 %v532, %v531
        %v562 = vpack.c.b16 %v534, %v533
        %v563 = vpack.c.b16 %v536, %v535
        %v564 = vpack.c.b16 %v538, %v537
        %v565 = vpack.c.b16 %v540, %v539
        %v566 = vpack.c.b16 %v542, %v541
        %v567 = vpack.c.b16 %v544, %v543
        %v568 = vpack.c.b16 %v546, %v545
        %v569 = vpack.c.b16 %v548, %v547
        %v570 = vpack.c.b16 %v550, %v549
        %v571 = vpack.c.b16 %v552, %v551
        %v572 = vpack.c.b16 %v554, %v553
        %v573 = vpack.c.b16 %v556, %v555
        %v574 = vpack.c.b16 %v558, %v557
        %v607 = vunpack.c.l.b16 %v479
        %v608 = vunpack.c.l.b16 %v480
        %v609 = vunpack.c.l.b16 %v481
        %v610 = vunpack.c.l.b16 %v482
        %v611 = vunpack.c.l.b16 %v483
        %v612 = vunpack.c.l.b16 %v484
        %v613 = vunpack.c.l.b16 %v485
        %v614 = vunpack.c.l.b16 %v486
        %v615 = vunpack.c.l.b16 %v487
        %v616 = vunpack.c.l.b16 %v488
        %v617 = vunpack.c.l.b16 %v489
        %v618 = vunpack.c.l.b16 %v490
        %v619 = vunpack.c.l.b16 %v491
        %v620 = vunpack.c.l.b16 %v492
        %v621 = vunpack.c.l.b16 %v493
        %v622 = vunpack.c.l.b16 %v494
        %v623 = vpack.c.b16 %v608, %v607
        %v624 = vpack.c.b16 %v610, %v609
        %v625 = vpack.c.b16 %v612, %v611
        %v626 = vpack.c.b16 %v614, %v613
        %v627 = vpack.c.b16 %v616, %v615
        %v628 = vpack.c.b16 %v618, %v617
        %v629 = vpack.c.b16 %v620, %v619
        %v630 = vpack.c.b16 %v622, %v621
        %639 = vmatpush.bf16.msra.mxu0 %v630
        %640 = vmatpush.bf16.msra.mxu0 %v629
        %641 = vmatpush.bf16.msra.mxu0 %v628
        %642 = vmatpush.bf16.msra.mxu0 %v627
        %643 = vmatpush.bf16.msra.mxu0 %v626
        %644 = vmatpush.bf16.msra.mxu0 %v625
        %645 = vmatpush.bf16.msra.mxu0 %v624
        %646 = vmatpush.bf16.msra.mxu0 %v623
        %647 = vmatmul.bf16.gmra.mxu0 %v559
        %v648 = vpop.f32.mrf.mxu0
        %v649 = vadd.f32 0.0, %v648
        %v650 = vpop.f32.mrf.mxu0
        %v651 = vadd.f32 0.0, %v650
        %652 = vmatmul.bf16.gmra.mxu0 %v560
        %v653 = vpop.f32.mrf.mxu0
        %v654 = vadd.f32 0.0, %v653
        %v655 = vpop.f32.mrf.mxu0
        %v656 = vadd.f32 0.0, %v655
        %657 = vmatmul.bf16.gmra.mxu0 %v561
        %v658 = vpop.f32.mrf.mxu0
        %v659 = vadd.f32 0.0, %v658
        %v660 = vpop.f32.mrf.mxu0
        %v661 = vadd.f32 0.0, %v660
        %662 = vmatmul.bf16.gmra.mxu0 %v562
        %v663 = vpop.f32.mrf.mxu0
        %v664 = vadd.f32 0.0, %v663
        %v665 = vpop.f32.mrf.mxu0
        %v666 = vadd.f32 0.0, %v665
        %667 = vmatmul.bf16.gmra.mxu0 %v563
        %v668 = vpop.f32.mrf.mxu0
        %v669 = vadd.f32 0.0, %v668
        %v670 = vpop.f32.mrf.mxu0
        %v671 = vadd.f32 0.0, %v670
        %672 = vmatmul.bf16.gmra.mxu0 %v564
        %v673 = vpop.f32.mrf.mxu0
        %v674 = vadd.f32 0.0, %v673
        %v675 = vpop.f32.mrf.mxu0
        %v676 = vadd.f32 0.0, %v675
        %677 = vmatmul.bf16.gmra.mxu0 %v565
        %v678 = vpop.f32.mrf.mxu0
        %v679 = vadd.f32 0.0, %v678
        %v680 = vpop.f32.mrf.mxu0
        %v681 = vadd.f32 0.0, %v680
        %682 = vmatmul.bf16.gmra.mxu0 %v566
        %v683 = vpop.f32.mrf.mxu0
        %v684 = vadd.f32 0.0, %v683
        %v685 = vpop.f32.mrf.mxu0
        %v686 = vadd.f32 0.0, %v685
        %687 = vmatmul.bf16.gmra.mxu0 %v567
        %v688 = vpop.f32.mrf.mxu0
        %v689 = vadd.f32 0.0, %v688
        %v690 = vpop.f32.mrf.mxu0
        %v691 = vadd.f32 0.0, %v690
        %692 = vmatmul.bf16.gmra.mxu0 %v568
        %v693 = vpop.f32.mrf.mxu0
        %v694 = vadd.f32 0.0, %v693
        %v695 = vpop.f32.mrf.mxu0
        %v696 = vadd.f32 0.0, %v695
        %697 = vmatmul.bf16.gmra.mxu0 %v569
        %v698 = vpop.f32.mrf.mxu0
        %v699 = vadd.f32 0.0, %v698
        %v700 = vpop.f32.mrf.mxu0
        %v701 = vadd.f32 0.0, %v700
        %702 = vmatmul.bf16.gmra.mxu0 %v570
        %v703 = vpop.f32.mrf.mxu0
        %v704 = vadd.f32 0.0, %v703
        %v705 = vpop.f32.mrf.mxu0
        %v706 = vadd.f32 0.0, %v705
        %707 = vmatmul.bf16.gmra.mxu0 %v571
        %v708 = vpop.f32.mrf.mxu0
        %v709 = vadd.f32 0.0, %v708
        %v710 = vpop.f32.mrf.mxu0
        %v711 = vadd.f32 0.0, %v710
        %712 = vmatmul.bf16.gmra.mxu0 %v572
        %v713 = vpop.f32.mrf.mxu0
        %v714 = vadd.f32 0.0, %v713
        %v715 = vpop.f32.mrf.mxu0
        %v716 = vadd.f32 0.0, %v715
        %717 = vmatmul.bf16.gmra.mxu0 %v573
        %v718 = vpop.f32.mrf.mxu0
        %v719 = vadd.f32 0.0, %v718
        %v720 = vpop.f32.mrf.mxu0
        %v721 = vadd.f32 0.0, %v720
        %722 = vmatmul.bf16.gmra.mxu0 %v574
        %v723 = vpop.f32.mrf.mxu0
        %v724 = vadd.f32 0.0, %v723
        %v725 = vpop.f32.mrf.mxu0
        %v726 = vadd.f32 0.0, %v725
        %727 = vdwg.mxu0
        %v728 = vadd.f32 %v415, %v649
        %v729 = vadd.f32 %v416, %v651
        %v730 = vadd.f32 %v417, %v654
        %v731 = vadd.f32 %v418, %v656
        %v732 = vadd.f32 %v419, %v659
        %v733 = vadd.f32 %v420, %v661
        %v734 = vadd.f32 %v421, %v664
        %v735 = vadd.f32 %v422, %v666
        %v736 = vadd.f32 %v423, %v669
        %v737 = vadd.f32 %v424, %v671
        %v738 = vadd.f32 %v425, %v674
        %v739 = vadd.f32 %v426, %v676
        %v740 = vadd.f32 %v427, %v679
        %v741 = vadd.f32 %v428, %v681
        %v742 = vadd.f32 %v429, %v684
        %v743 = vadd.f32 %v430, %v686
        %v744 = vadd.f32 %v431, %v689
        %v745 = vadd.f32 %v432, %v691
        %v746 = vadd.f32 %v433, %v694
        %v747 = vadd.f32 %v434, %v696
        %v748 = vadd.f32 %v435, %v699
        %v749 = vadd.f32 %v436, %v701
        %v750 = vadd.f32 %v437, %v704
        %v751 = vadd.f32 %v438, %v706
        %v752 = vadd.f32 %v439, %v709
        %v753 = vadd.f32 %v440, %v711
        %v754 = vadd.f32 %v441, %v714
        %v755 = vadd.f32 %v442, %v716
        %v756 = vadd.f32 %v443, %v719
        %v757 = vadd.f32 %v444, %v721
        %v758 = vadd.f32 %v445, %v724
        %v759 = vadd.f32 %v446, %v726
        %vm760 = vcmask 523264
        %761 = vst.msk [vmem:[#allocation2] sm:$0xff] %vm760, %v728
        %762 = vst.msk [vmem:[#allocation2 + $0x8] sm:$0xff] %vm760, %v729
        %763 = vst.msk [vmem:[#allocation2 + $0x10] sm:$0xff] %vm760, %v730
        %764 = vst.msk [vmem:[#allocation2 + $0x18] sm:$0xff] %vm760, %v731
        %765 = vst.msk [vmem:[#allocation2 + $0x20] sm:$0xff] %vm760, %v732
        %766 = vst.msk [vmem:[#allocation2 + $0x28] sm:$0xff] %vm760, %v733
        %767 = vst.msk [vmem:[#allocation2 + $0x30] sm:$0xff] %vm760, %v734
        %768 = vst.msk [vmem:[#allocation2 + $0x38] sm:$0xff] %vm760, %v735
        %769 = vst.msk [vmem:[#allocation2 + $0x40] sm:$0xff] %vm760, %v736
        %770 = vst.msk [vmem:[#allocation2 + $0x48] sm:$0xff] %vm760, %v737
        %771 = vst.msk [vmem:[#allocation2 + $0x50] sm:$0xff] %vm760, %v738
        %772 = vst.msk [vmem:[#allocation2 + $0x58] sm:$0xff] %vm760, %v739
        %773 = vst.msk [vmem:[#allocation2 + $0x60] sm:$0xff] %vm760, %v740
        %774 = vst.msk [vmem:[#allocation2 + $0x68] sm:$0xff] %vm760, %v741
        %775 = vst.msk [vmem:[#allocation2 + $0x70] sm:$0xff] %vm760, %v742
        %776 = vst.msk [vmem:[#allocation2 + $0x78] sm:$0xff] %vm760, %v743
        %777 = vst.msk [vmem:[#allocation2 + $0x80] sm:$0xff] %vm760, %v744
        %778 = vst.msk [vmem:[#allocation2 + $0x88] sm:$0xff] %vm760, %v745
        %779 = vst.msk [vmem:[#allocation2 + $0x90] sm:$0xff] %vm760, %v746
        %780 = vst.msk [vmem:[#allocation2 + $0x98] sm:$0xff] %vm760, %v747
        %781 = vst.msk [vmem:[#allocation2 + $0xa0] sm:$0xff] %vm760, %v748
        %782 = vst.msk [vmem:[#allocation2 + $0xa8] sm:$0xff] %vm760, %v749
        %783 = vst.msk [vmem:[#allocation2 + $0xb0] sm:$0xff] %vm760, %v750
        %784 = vst.msk [vmem:[#allocation2 + $0xb8] sm:$0xff] %vm760, %v751
        %785 = vst.msk [vmem:[#allocation2 + $0xc0] sm:$0xff] %vm760, %v752
        %786 = vst.msk [vmem:[#allocation2 + $0xc8] sm:$0xff] %vm760, %v753
        %787 = vst.msk [vmem:[#allocation2 + $0xd0] sm:$0xff] %vm760, %v754
        %788 = vst.msk [vmem:[#allocation2 + $0xd8] sm:$0xff] %vm760, %v755
        %789 = vst.msk [vmem:[#allocation2 + $0xe0] sm:$0xff] %vm760, %v756
        %790 = vst.msk [vmem:[#allocation2 + $0xe8] sm:$0xff] %vm760, %v757
        %791 = vst.msk [vmem:[#allocation2 + $0xf0] sm:$0xff] %vm760, %v758
        %792 = vst.msk [vmem:[#allocation2 + $0xf8] sm:$0xff] %vm760, %v759
        %p793 = scmp.eq.s32.totalorder %s20, 4
        // Predicated region
        $region74: #{fwd.13} parent=64 // pred_check
          %p794 = pneg %p793
        $region75: #{fwd.13} parent=64 // pred_check_branch
          %796 = sbr.rel (%p794) target = $region77
        $region76: #{fwd.13} parent=64 // pred_region
          %v797 = vld [vmem:[#allocation2] sm:$0xff]
          %v798 = vld [vmem:[#allocation2 + $0x8] sm:$0xff]
          %v799 = vld [vmem:[#allocation2 + $0x10] sm:$0xff]
          %v800 = vld [vmem:[#allocation2 + $0x18] sm:$0xff]
          %v801 = vld [vmem:[#allocation2 + $0x20] sm:$0xff]
          %v802 = vld [vmem:[#allocation2 + $0x28] sm:$0xff]
          %v803 = vld [vmem:[#allocation2 + $0x30] sm:$0xff]
          %v804 = vld [vmem:[#allocation2 + $0x38] sm:$0xff]
          %v805 = vld [vmem:[#allocation2 + $0x40] sm:$0xff]
          %v806 = vld [vmem:[#allocation2 + $0x48] sm:$0xff]
          %v807 = vld [vmem:[#allocation2 + $0x50] sm:$0xff]
          %v808 = vld [vmem:[#allocation2 + $0x58] sm:$0xff]
          %v809 = vld [vmem:[#allocation2 + $0x60] sm:$0xff]
          %v810 = vld [vmem:[#allocation2 + $0x68] sm:$0xff]
          %v811 = vld [vmem:[#allocation2 + $0x70] sm:$0xff]
          %v812 = vld [vmem:[#allocation2 + $0x78] sm:$0xff]
          %v813 = vld [vmem:[#allocation2 + $0x80] sm:$0xff]
          %v814 = vld [vmem:[#allocation2 + $0x88] sm:$0xff]
          %v815 = vld [vmem:[#allocation2 + $0x90] sm:$0xff]
          %v816 = vld [vmem:[#allocation2 + $0x98] sm:$0xff]
          %v817 = vld [vmem:[#allocation2 + $0xa0] sm:$0xff]
          %v818 = vld [vmem:[#allocation2 + $0xa8] sm:$0xff]
          %v819 = vld [vmem:[#allocation2 + $0xb0] sm:$0xff]
          %v820 = vld [vmem:[#allocation2 + $0xb8] sm:$0xff]
          %v821 = vld [vmem:[#allocation2 + $0xc0] sm:$0xff]
          %v822 = vld [vmem:[#allocation2 + $0xc8] sm:$0xff]
          %v823 = vld [vmem:[#allocation2 + $0xd0] sm:$0xff]
          %v824 = vld [vmem:[#allocation2 + $0xd8] sm:$0xff]
          %v825 = vld [vmem:[#allocation2 + $0xe0] sm:$0xff]
          %v826 = vld [vmem:[#allocation2 + $0xe8] sm:$0xff]
          %v827 = vld [vmem:[#allocation2 + $0xf0] sm:$0xff]
          %v828 = vld [vmem:[#allocation2 + $0xf8] sm:$0xff]
          %829 = vst.msk [vmem:[%s376] sm:$0xff] %vm760, %v797
          %830 = vst.msk [vmem:[%s376 + $0x8] sm:$0xff] %vm760, %v798
          %831 = vst.msk [vmem:[%s376 + $0x10] sm:$0xff] %vm760, %v799
          %832 = vst.msk [vmem:[%s376 + $0x18] sm:$0xff] %vm760, %v800
          %833 = vst.msk [vmem:[%s376 + $0x20] sm:$0xff] %vm760, %v801
          %834 = vst.msk [vmem:[%s376 + $0x28] sm:$0xff] %vm760, %v802
          %835 = vst.msk [vmem:[%s376 + $0x30] sm:$0xff] %vm760, %v803
          %836 = vst.msk [vmem:[%s376 + $0x38] sm:$0xff] %vm760, %v804
          %837 = vst.msk [vmem:[%s376 + $0x40] sm:$0xff] %vm760, %v805
          %838 = vst.msk [vmem:[%s376 + $0x48] sm:$0xff] %vm760, %v806
          %839 = vst.msk [vmem:[%s376 + $0x50] sm:$0xff] %vm760, %v807
          %840 = vst.msk [vmem:[%s376 + $0x58] sm:$0xff] %vm760, %v808
          %841 = vst.msk [vmem:[%s376 + $0x60] sm:$0xff] %vm760, %v809
          %842 = vst.msk [vmem:[%s376 + $0x68] sm:$0xff] %vm760, %v810
          %843 = vst.msk [vmem:[%s376 + $0x70] sm:$0xff] %vm760, %v811
          %844 = vst.msk [vmem:[%s376 + $0x78] sm:$0xff] %vm760, %v812
          %845 = vst.msk [vmem:[%s376 + $0x80] sm:$0xff] %vm760, %v813
          %846 = vst.msk [vmem:[%s376 + $0x88] sm:$0xff] %vm760, %v814
          %847 = vst.msk [vmem:[%s376 + $0x90] sm:$0xff] %vm760, %v815
          %848 = vst.msk [vmem:[%s376 + $0x98] sm:$0xff] %vm760, %v816
          %849 = vst.msk [vmem:[%s376 + $0xa0] sm:$0xff] %vm760, %v817
          %850 = vst.msk [vmem:[%s376 + $0xa8] sm:$0xff] %vm760, %v818
          %851 = vst.msk [vmem:[%s376 + $0xb0] sm:$0xff] %vm760, %v819
          %852 = vst.msk [vmem:[%s376 + $0xb8] sm:$0xff] %vm760, %v820
          %853 = vst.msk [vmem:[%s376 + $0xc0] sm:$0xff] %vm760, %v821
          %854 = vst.msk [vmem:[%s376 + $0xc8] sm:$0xff] %vm760, %v822
          %855 = vst.msk [vmem:[%s376 + $0xd0] sm:$0xff] %vm760, %v823
          %856 = vst.msk [vmem:[%s376 + $0xd8] sm:$0xff] %vm760, %v824
          %857 = vst.msk [vmem:[%s376 + $0xe0] sm:$0xff] %vm760, %v825
          %858 = vst.msk [vmem:[%s376 + $0xe8] sm:$0xff] %vm760, %v826
          %859 = vst.msk [vmem:[%s376 + $0xf0] sm:$0xff] %vm760, %v827
          %860 = vst.msk [vmem:[%s376 + $0xf8] sm:$0xff] %vm760, %v828
        $region77: #{fwd.13} parent=64 // pred_fallthru
          _
        %s861 = smul.u32 32, %s18
        %p862 = scmp.lt.s32.totalorder %s861, 63
        %s863 = scalar_select %p862, %s861, 63
        %p864 = scmp.lt.s32.totalorder %s19, 0
        %s865 = scalar_select %p864, %s19, 0
        %s866 = sadd.s32 %s865, %s863
        %s867 = smul.addr %s866, 8
        %s868 = scalar_lea.vmem %s2, %s867
        // Predicated region
        $region78: #{fwd.13} parent=64 // pred_check
          %p869 = pneg %p108
        $region79: #{fwd.13} parent=64 // pred_check_branch
          %871 = sbr.rel (%p869) target = $region81
        $region80: #{fwd.13} parent=64 // pred_region
          %s872 = smul.u32 32, %s18
        $region81: #{fwd.13} parent=64 // pred_fallthru
          _
      $region65: #{fwd.13} parent=5 // pred_fallthru
        _
      %p873 = scmp.le.s32.totalorder 2, %s8
      // Predicated region
      $region82: #{fwd.13} parent=5 // pred_check
        %p874 = pneg %p873
      $region83: #{fwd.13} parent=5 // pred_check_branch
        %876 = sbr.rel (%p874) target = $region85
      $region84: #{fwd.13} parent=5 // pred_region
        %s877 = ssub.s32 %s8, 2
        // Predicated region
        $region86: #{fwd.13} parent=84 // pred_check
          %p878 = pneg %p114
        $region87: #{fwd.13} parent=84 // pred_check_branch
          %880 = sbr.rel (%p878) target = $region89
        $region88: #{fwd.13} parent=84 // pred_region
          %s881 = smul.u32 32, %s21
          %p882 = scmp.lt.s32.totalorder %s881, 63
          %s883 = scalar_select %p882, %s881, 63
          %p884 = scmp.lt.s32.totalorder %s22, 0
          %s885 = scalar_select %p884, %s22, 0
          %s886 = sadd.s32 %s885, %s883
          %s887 = smul.addr %s886, 8
          %s888 = scalar_lea.vmem %s2, %s887
        $region89: #{fwd.13} parent=84 // pred_fallthru
          _
      $region85: #{fwd.13} parent=5 // pred_fallthru
        _
    $region6: #{fwd.13} parent=1 // loop_footer
      %s12 = sadd.s32 1, %s8
    $region7: #{fwd.13} parent=1 // loop_footer_branch
      %7 = sbr.rel target = $region3
    $region8: #{fwd.13} parent=1 // loop_exit
      _

// kernel: fwd.15
$region0: #{fwd.15}
  #allocation0 [shape = 'u32[]', space=smem, size = 0x4, offset = 0x4, fixed_abs, tag = 'smem constant byte address 0x4 - core index']
  #allocation1 [shape = 'u32[72,128]{1,0:T(1,128)}', space=vmem, size = 0x9000, scoped, tag = 'internal scratch']
  %s0 = inlined_call_operand.vmem [shape: f32[512,64], index: 0, kind: input, shape index: {}]
  %s1 = inlined_call_operand.vmem [shape: f32[1,64], index: 1, kind: input, shape index: {}]
  %s2 = inlined_call_operand.vmem [shape: f32[1,64], index: 2, kind: input, shape index: {}]
  %s3 = inlined_call_operand.vmem [shape: f32[512,64], index: 3, kind: input, shape index: {}]
  %s4 = inlined_call_operand.vmem [shape: f32[1,64], index: 4, kind: input, shape index: {}]
  %s5 = inlined_call_operand.vmem [shape: f32[1,64], index: 5, kind: input, shape index: {}]
  %s6 = inlined_call_operand.vmem [shape: f32[512,64], index: 6, kind: output, shape index: {}]
  %s7 = sld [smem:[#allocation0]]
  $region34: #{fwd.15} parent=0
    _
  %s9 = ssub.s32 1, %s7
  %s10 = scalar_select 0, %s9, %s7
  // Predicated region
  $region2: #{fwd.15} parent=0 // pred_check
    _
  $region3: #{fwd.15} parent=0 // pred_check_branch
    %12 = sbr.rel (0) target = $region5
  $region4: #{fwd.15} parent=0 // pred_region
    _
  $region5: #{fwd.15} parent=0 // pred_fallthru
    _
  // Predicated region
  $region6: #{fwd.15} parent=0 // pred_check
    _
  $region7: #{fwd.15} parent=0 // pred_check_branch
    %14 = sbr.rel (0) target = $region9
  $region8: #{fwd.15} parent=0 // pred_region
    _
  $region9: #{fwd.15} parent=0 // pred_fallthru
    _
  // Predicated region
  $region10: #{fwd.15} parent=0 // pred_check
    _
  $region11: #{fwd.15} parent=0 // pred_check_branch
    %16 = sbr.rel (0) target = $region13
  $region12: #{fwd.15} parent=0 // pred_region
    _
  $region13: #{fwd.15} parent=0 // pred_fallthru
    _
  // Predicated region
  $region14: #{fwd.15} parent=0 // pred_check
    _
  $region15: #{fwd.15} parent=0 // pred_check_branch
    %18 = sbr.rel (0) target = $region17
  $region16: #{fwd.15} parent=0 // pred_region
    _
  $region17: #{fwd.15} parent=0 // pred_fallthru
    _
  // Predicated region
  $region18: #{fwd.15} parent=0 // pred_check
    _
  $region19: #{fwd.15} parent=0 // pred_check_branch
    %20 = sbr.rel (0) target = $region21
  $region20: #{fwd.15} parent=0 // pred_region
    _
  $region21: #{fwd.15} parent=0 // pred_fallthru
    _
  // Predicated region
  $region22: #{fwd.15} parent=0 // pred_check
    _
  $region23: #{fwd.15} parent=0 // pred_check_branch
    %22 = sbr.rel (0) target = $region25
  $region24: #{fwd.15} parent=0 // pred_region
    _
  $region25: #{fwd.15} parent=0 // pred_fallthru
    _
  %v23 = vld [vmem:[%s0] sm:$0xff]
  %v24 = vld [vmem:[%s0 + $0x8] sm:$0xff]
  %v25 = vld [vmem:[%s0 + $0x10] sm:$0xff]
  %v26 = vld [vmem:[%s0 + $0x18] sm:$0xff]
  %v27 = vld [vmem:[%s0 + $0x20] sm:$0xff]
  %v28 = vld [vmem:[%s0 + $0x28] sm:$0xff]
  %v29 = vld [vmem:[%s0 + $0x30] sm:$0xff]
  %v30 = vld [vmem:[%s0 + $0x38] sm:$0xff]
  %v31 = vld [vmem:[%s0 + $0x40] sm:$0xff]
  %v32 = vld [vmem:[%s0 + $0x48] sm:$0xff]
  %v33 = vld [vmem:[%s0 + $0x50] sm:$0xff]
  %v34 = vld [vmem:[%s0 + $0x58] sm:$0xff]
  %v35 = vld [vmem:[%s0 + $0x60] sm:$0xff]
  %v36 = vld [vmem:[%s0 + $0x68] sm:$0xff]
  %v37 = vld [vmem:[%s0 + $0x70] sm:$0xff]
  %v38 = vld [vmem:[%s0 + $0x78] sm:$0xff]
  %v39 = vld [vmem:[%s0 + $0x80] sm:$0xff]
  %v40 = vld [vmem:[%s0 + $0x88] sm:$0xff]
  %v41 = vld [vmem:[%s0 + $0x90] sm:$0xff]
  %v42 = vld [vmem:[%s0 + $0x98] sm:$0xff]
  %v43 = vld [vmem:[%s0 + $0xa0] sm:$0xff]
  %v44 = vld [vmem:[%s0 + $0xa8] sm:$0xff]
  %v45 = vld [vmem:[%s0 + $0xb0] sm:$0xff]
  %v46 = vld [vmem:[%s0 + $0xb8] sm:$0xff]
  %v47 = vld [vmem:[%s0 + $0xc0] sm:$0xff]
  %v48 = vld [vmem:[%s0 + $0xc8] sm:$0xff]
  %v49 = vld [vmem:[%s0 + $0xd0] sm:$0xff]
  %v50 = vld [vmem:[%s0 + $0xd8] sm:$0xff]
  %v51 = vld [vmem:[%s0 + $0xe0] sm:$0xff]
  %v52 = vld [vmem:[%s0 + $0xe8] sm:$0xff]
  %v53 = vld [vmem:[%s0 + $0xf0] sm:$0xff]
  %v54 = vld [vmem:[%s0 + $0xf8] sm:$0xff]
  %v55 = vld [vmem:[%s0 + $0x100] sm:$0xff]
  %v56 = vld [vmem:[%s0 + $0x108] sm:$0xff]
  %v57 = vld [vmem:[%s0 + $0x110] sm:$0xff]
  %v58 = vld [vmem:[%s0 + $0x118] sm:$0xff]
  %v59 = vld [vmem:[%s0 + $0x120] sm:$0xff]
  %v60 = vld [vmem:[%s0 + $0x128] sm:$0xff]
  %v61 = vld [vmem:[%s0 + $0x130] sm:$0xff]
  %v62 = vld [vmem:[%s0 + $0x138] sm:$0xff]
  %v63 = vld [vmem:[%s0 + $0x140] sm:$0xff]
  %v64 = vld [vmem:[%s0 + $0x148] sm:$0xff]
  %v65 = vld [vmem:[%s0 + $0x150] sm:$0xff]
  %v66 = vld [vmem:[%s0 + $0x158] sm:$0xff]
  %v67 = vld [vmem:[%s0 + $0x160] sm:$0xff]
  %v68 = vld [vmem:[%s0 + $0x168] sm:$0xff]
  %v69 = vld [vmem:[%s0 + $0x170] sm:$0xff]
  %v70 = vld [vmem:[%s0 + $0x178] sm:$0xff]
  %v71 = vld [vmem:[%s0 + $0x180] sm:$0xff]
  %v72 = vld [vmem:[%s0 + $0x188] sm:$0xff]
  %v73 = vld [vmem:[%s0 + $0x190] sm:$0xff]
  %v74 = vld [vmem:[%s0 + $0x198] sm:$0xff]
  %v75 = vld [vmem:[%s0 + $0x1a0] sm:$0xff]
  %v76 = vld [vmem:[%s0 + $0x1a8] sm:$0xff]
  %v77 = vld [vmem:[%s0 + $0x1b0] sm:$0xff]
  %v78 = vld [vmem:[%s0 + $0x1b8] sm:$0xff]
  %v79 = vld [vmem:[%s0 + $0x1c0] sm:$0xff]
  %v80 = vld [vmem:[%s0 + $0x1c8] sm:$0xff]
  %v81 = vld [vmem:[%s0 + $0x1d0] sm:$0xff]
  %v82 = vld [vmem:[%s0 + $0x1d8] sm:$0xff]
  %v83 = vld [vmem:[%s0 + $0x1e0] sm:$0xff]
  %v84 = vld [vmem:[%s0 + $0x1e8] sm:$0xff]
  %v85 = vld [vmem:[%s0 + $0x1f0] sm:$0xff]
  %v86 = vld [vmem:[%s0 + $0x1f8] sm:$0xff]
  %v87 = vld [vmem:[%s1] sm:$0x1]
  %v89 = vperm.slane %v87, 0
  %v91 = vmul.f32 %v23, %v89
  %v92 = vmul.f32 %v24, %v89
  %v93 = vmul.f32 %v25, %v89
  %v94 = vmul.f32 %v26, %v89
  %v95 = vmul.f32 %v27, %v89
  %v96 = vmul.f32 %v28, %v89
  %v97 = vmul.f32 %v29, %v89
  %v98 = vmul.f32 %v30, %v89
  %v99 = vmul.f32 %v31, %v89
  %v100 = vmul.f32 %v32, %v89
  %v101 = vmul.f32 %v33, %v89
  %v102 = vmul.f32 %v34, %v89
  %v103 = vmul.f32 %v35, %v89
  %v104 = vmul.f32 %v36, %v89
  %v105 = vmul.f32 %v37, %v89
  %v106 = vmul.f32 %v38, %v89
  %v107 = vmul.f32 %v39, %v89
  %v108 = vmul.f32 %v40, %v89
  %v109 = vmul.f32 %v41, %v89
  %v110 = vmul.f32 %v42, %v89
  %v111 = vmul.f32 %v43, %v89
  %v112 = vmul.f32 %v44, %v89
  %v113 = vmul.f32 %v45, %v89
  %v114 = vmul.f32 %v46, %v89
  %v115 = vmul.f32 %v47, %v89
  %v116 = vmul.f32 %v48, %v89
  %v117 = vmul.f32 %v49, %v89
  %v118 = vmul.f32 %v50, %v89
  %v119 = vmul.f32 %v51, %v89
  %v120 = vmul.f32 %v52, %v89
  %v121 = vmul.f32 %v53, %v89
  %v122 = vmul.f32 %v54, %v89
  %v123 = vmul.f32 %v55, %v89
  %v124 = vmul.f32 %v56, %v89
  %v125 = vmul.f32 %v57, %v89
  %v126 = vmul.f32 %v58, %v89
  %v127 = vmul.f32 %v59, %v89
  %v128 = vmul.f32 %v60, %v89
  %v129 = vmul.f32 %v61, %v89
  %v130 = vmul.f32 %v62, %v89
  %v131 = vmul.f32 %v63, %v89
  %v132 = vmul.f32 %v64, %v89
  %v133 = vmul.f32 %v65, %v89
  %v134 = vmul.f32 %v66, %v89
  %v135 = vmul.f32 %v67, %v89
  %v136 = vmul.f32 %v68, %v89
  %v137 = vmul.f32 %v69, %v89
  %v138 = vmul.f32 %v70, %v89
  %v139 = vmul.f32 %v71, %v89
  %v140 = vmul.f32 %v72, %v89
  %v141 = vmul.f32 %v73, %v89
  %v142 = vmul.f32 %v74, %v89
  %v143 = vmul.f32 %v75, %v89
  %v144 = vmul.f32 %v76, %v89
  %v145 = vmul.f32 %v77, %v89
  %v146 = vmul.f32 %v78, %v89
  %v147 = vmul.f32 %v79, %v89
  %v148 = vmul.f32 %v80, %v89
  %v149 = vmul.f32 %v81, %v89
  %v150 = vmul.f32 %v82, %v89
  %v151 = vmul.f32 %v83, %v89
  %v152 = vmul.f32 %v84, %v89
  %v153 = vmul.f32 %v85, %v89
  %v154 = vmul.f32 %v86, %v89
  %v155 = vld [vmem:[%s2] sm:$0x1]
  %v157 = vperm.slane %v155, 0
  %v159 = vadd.f32 %v91, %v157
  %v160 = vadd.f32 %v92, %v157
  %v161 = vadd.f32 %v93, %v157
  %v162 = vadd.f32 %v94, %v157
  %v163 = vadd.f32 %v95, %v157
  %v164 = vadd.f32 %v96, %v157
  %v165 = vadd.f32 %v97, %v157
  %v166 = vadd.f32 %v98, %v157
  %v167 = vadd.f32 %v99, %v157
  %v168 = vadd.f32 %v100, %v157
  %v169 = vadd.f32 %v101, %v157
  %v170 = vadd.f32 %v102, %v157
  %v171 = vadd.f32 %v103, %v157
  %v172 = vadd.f32 %v104, %v157
  %v173 = vadd.f32 %v105, %v157
  %v174 = vadd.f32 %v106, %v157
  %v175 = vadd.f32 %v107, %v157
  %v176 = vadd.f32 %v108, %v157
  %v177 = vadd.f32 %v109, %v157
  %v178 = vadd.f32 %v110, %v157
  %v179 = vadd.f32 %v111, %v157
  %v180 = vadd.f32 %v112, %v157
  %v181 = vadd.f32 %v113, %v157
  %v182 = vadd.f32 %v114, %v157
  %v183 = vadd.f32 %v115, %v157
  %v184 = vadd.f32 %v116, %v157
  %v185 = vadd.f32 %v117, %v157
  %v186 = vadd.f32 %v118, %v157
  %v187 = vadd.f32 %v119, %v157
  %v188 = vadd.f32 %v120, %v157
  %v189 = vadd.f32 %v121, %v157
  %v190 = vadd.f32 %v122, %v157
  %v191 = vadd.f32 %v123, %v157
  %v192 = vadd.f32 %v124, %v157
  %v193 = vadd.f32 %v125, %v157
  %v194 = vadd.f32 %v126, %v157
  %v195 = vadd.f32 %v127, %v157
  %v196 = vadd.f32 %v128, %v157
  %v197 = vadd.f32 %v129, %v157
  %v198 = vadd.f32 %v130, %v157
  %v199 = vadd.f32 %v131, %v157
  %v200 = vadd.f32 %v132, %v157
  %v201 = vadd.f32 %v133, %v157
  %v202 = vadd.f32 %v134, %v157
  %v203 = vadd.f32 %v135, %v157
  %v204 = vadd.f32 %v136, %v157
  %v205 = vadd.f32 %v137, %v157
  %v206 = vadd.f32 %v138, %v157
  %v207 = vadd.f32 %v139, %v157
  %v208 = vadd.f32 %v140, %v157
  %v209 = vadd.f32 %v141, %v157
  %v210 = vadd.f32 %v142, %v157
  %v211 = vadd.f32 %v143, %v157
  %v212 = vadd.f32 %v144, %v157
  %v213 = vadd.f32 %v145, %v157
  %v214 = vadd.f32 %v146, %v157
  %v215 = vadd.f32 %v147, %v157
  %v216 = vadd.f32 %v148, %v157
  %v217 = vadd.f32 %v149, %v157
  %v218 = vadd.f32 %v150, %v157
  %v219 = vadd.f32 %v151, %v157
  %v220 = vadd.f32 %v152, %v157
  %v221 = vadd.f32 %v153, %v157
  %v222 = vadd.f32 %v154, %v157
  %v223 = vmax.f32 %v159, 0.0
  %v224 = vmax.f32 %v160, 0.0
  %v225 = vmax.f32 %v161, 0.0
  %v226 = vmax.f32 %v162, 0.0
  %v227 = vmax.f32 %v163, 0.0
  %v228 = vmax.f32 %v164, 0.0
  %v229 = vmax.f32 %v165, 0.0
  %v230 = vmax.f32 %v166, 0.0
  %v231 = vmax.f32 %v167, 0.0
  %v232 = vmax.f32 %v168, 0.0
  %v233 = vmax.f32 %v169, 0.0
  %v234 = vmax.f32 %v170, 0.0
  %v235 = vmax.f32 %v171, 0.0
  %v236 = vmax.f32 %v172, 0.0
  %v237 = vmax.f32 %v173, 0.0
  %v238 = vmax.f32 %v174, 0.0
  %v239 = vmax.f32 %v175, 0.0
  %v240 = vmax.f32 %v176, 0.0
  %v241 = vmax.f32 %v177, 0.0
  %v242 = vmax.f32 %v178, 0.0
  %v243 = vmax.f32 %v179, 0.0
  %v244 = vmax.f32 %v180, 0.0
  %v245 = vmax.f32 %v181, 0.0
  %v246 = vmax.f32 %v182, 0.0
  %v247 = vmax.f32 %v183, 0.0
  %v248 = vmax.f32 %v184, 0.0
  %v249 = vmax.f32 %v185, 0.0
  %v250 = vmax.f32 %v186, 0.0
  %v251 = vmax.f32 %v187, 0.0
  %v252 = vmax.f32 %v188, 0.0
  %v253 = vmax.f32 %v189, 0.0
  %v254 = vmax.f32 %v190, 0.0
  %v255 = vmax.f32 %v191, 0.0
  %v256 = vmax.f32 %v192, 0.0
  %v257 = vmax.f32 %v193, 0.0
  %v258 = vmax.f32 %v194, 0.0
  %v259 = vmax.f32 %v195, 0.0
  %v260 = vmax.f32 %v196, 0.0
  %v261 = vmax.f32 %v197, 0.0
  %v262 = vmax.f32 %v198, 0.0
  %v263 = vmax.f32 %v199, 0.0
  %v264 = vmax.f32 %v200, 0.0
  %v265 = vmax.f32 %v201, 0.0
  %v266 = vmax.f32 %v202, 0.0
  %v267 = vmax.f32 %v203, 0.0
  %v268 = vmax.f32 %v204, 0.0
  %v269 = vmax.f32 %v205, 0.0
  %v270 = vmax.f32 %v206, 0.0
  %v271 = vmax.f32 %v207, 0.0
  %v272 = vmax.f32 %v208, 0.0
  %v273 = vmax.f32 %v209, 0.0
  %v274 = vmax.f32 %v210, 0.0
  %v275 = vmax.f32 %v211, 0.0
  %v276 = vmax.f32 %v212, 0.0
  %v277 = vmax.f32 %v213, 0.0
  %v278 = vmax.f32 %v214, 0.0
  %v279 = vmax.f32 %v215, 0.0
  %v280 = vmax.f32 %v216, 0.0
  %v281 = vmax.f32 %v217, 0.0
  %v282 = vmax.f32 %v218, 0.0
  %v283 = vmax.f32 %v219, 0.0
  %v284 = vmax.f32 %v220, 0.0
  %v285 = vmax.f32 %v221, 0.0
  %v286 = vmax.f32 %v222, 0.0
  %v287 = vld [vmem:[%s3] sm:$0xff]
  %v288 = vld [vmem:[%s3 + $0x8] sm:$0xff]
  %v289 = vld [vmem:[%s3 + $0x10] sm:$0xff]
  %v290 = vld [vmem:[%s3 + $0x18] sm:$0xff]
  %v291 = vld [vmem:[%s3 + $0x20] sm:$0xff]
  %v292 = vld [vmem:[%s3 + $0x28] sm:$0xff]
  %v293 = vld [vmem:[%s3 + $0x30] sm:$0xff]
  %v294 = vld [vmem:[%s3 + $0x38] sm:$0xff]
  %v295 = vld [vmem:[%s3 + $0x40] sm:$0xff]
  %v296 = vld [vmem:[%s3 + $0x48] sm:$0xff]
  %v297 = vld [vmem:[%s3 + $0x50] sm:$0xff]
  %v298 = vld [vmem:[%s3 + $0x58] sm:$0xff]
  %v299 = vld [vmem:[%s3 + $0x60] sm:$0xff]
  %v300 = vld [vmem:[%s3 + $0x68] sm:$0xff]
  %v301 = vld [vmem:[%s3 + $0x70] sm:$0xff]
  %v302 = vld [vmem:[%s3 + $0x78] sm:$0xff]
  %v303 = vld [vmem:[%s3 + $0x80] sm:$0xff]
  %v304 = vld [vmem:[%s3 + $0x88] sm:$0xff]
  %v305 = vld [vmem:[%s3 + $0x90] sm:$0xff]
  %v306 = vld [vmem:[%s3 + $0x98] sm:$0xff]
  %v307 = vld [vmem:[%s3 + $0xa0] sm:$0xff]
  %v308 = vld [vmem:[%s3 + $0xa8] sm:$0xff]
  %v309 = vld [vmem:[%s3 + $0xb0] sm:$0xff]
  %v310 = vld [vmem:[%s3 + $0xb8] sm:$0xff]
  %v311 = vld [vmem:[%s3 + $0xc0] sm:$0xff]
  %v312 = vld [vmem:[%s3 + $0xc8] sm:$0xff]
  %v313 = vld [vmem:[%s3 + $0xd0] sm:$0xff]
  %v314 = vld [vmem:[%s3 + $0xd8] sm:$0xff]
  %v315 = vld [vmem:[%s3 + $0xe0] sm:$0xff]
  %v316 = vld [vmem:[%s3 + $0xe8] sm:$0xff]
  %v317 = vld [vmem:[%s3 + $0xf0] sm:$0xff]
  %v318 = vld [vmem:[%s3 + $0xf8] sm:$0xff]
  %v319 = vld [vmem:[%s3 + $0x100] sm:$0xff]
  %v320 = vld [vmem:[%s3 + $0x108] sm:$0xff]
  %v321 = vld [vmem:[%s3 + $0x110] sm:$0xff]
  %v322 = vld [vmem:[%s3 + $0x118] sm:$0xff]
  %v323 = vld [vmem:[%s3 + $0x120] sm:$0xff]
  %v324 = vld [vmem:[%s3 + $0x128] sm:$0xff]
  %v325 = vld [vmem:[%s3 + $0x130] sm:$0xff]
  %v326 = vld [vmem:[%s3 + $0x138] sm:$0xff]
  %v327 = vld [vmem:[%s3 + $0x140] sm:$0xff]
  %v328 = vld [vmem:[%s3 + $0x148] sm:$0xff]
  %v329 = vld [vmem:[%s3 + $0x150] sm:$0xff]
  %v330 = vld [vmem:[%s3 + $0x158] sm:$0xff]
  %v331 = vld [vmem:[%s3 + $0x160] sm:$0xff]
  %v332 = vld [vmem:[%s3 + $0x168] sm:$0xff]
  %v333 = vld [vmem:[%s3 + $0x170] sm:$0xff]
  %v334 = vld [vmem:[%s3 + $0x178] sm:$0xff]
  %v335 = vld [vmem:[%s3 + $0x180] sm:$0xff]
  %v336 = vld [vmem:[%s3 + $0x188] sm:$0xff]
  %v337 = vld [vmem:[%s3 + $0x190] sm:$0xff]
  %v338 = vld [vmem:[%s3 + $0x198] sm:$0xff]
  %v339 = vld [vmem:[%s3 + $0x1a0] sm:$0xff]
  %v340 = vld [vmem:[%s3 + $0x1a8] sm:$0xff]
  %v341 = vld [vmem:[%s3 + $0x1b0] sm:$0xff]
  %v342 = vld [vmem:[%s3 + $0x1b8] sm:$0xff]
  %v343 = vld [vmem:[%s3 + $0x1c0] sm:$0xff]
  %v344 = vld [vmem:[%s3 + $0x1c8] sm:$0xff]
  %v345 = vld [vmem:[%s3 + $0x1d0] sm:$0xff]
  %v346 = vld [vmem:[%s3 + $0x1d8] sm:$0xff]
  %v347 = vld [vmem:[%s3 + $0x1e0] sm:$0xff]
  %v348 = vld [vmem:[%s3 + $0x1e8] sm:$0xff]
  %v349 = vld [vmem:[%s3 + $0x1f0] sm:$0xff]
  %v350 = vld [vmem:[%s3 + $0x1f8] sm:$0xff]
  %v351 = vld [vmem:[%s4] sm:$0x1]
  %v353 = vperm.slane %v351, 0
  %v355 = vmul.f32 %v287, %v353
  %v356 = vmul.f32 %v288, %v353
  %v357 = vmul.f32 %v289, %v353
  %v358 = vmul.f32 %v290, %v353
  %v359 = vmul.f32 %v291, %v353
  %v360 = vmul.f32 %v292, %v353
  %v361 = vmul.f32 %v293, %v353
  %v362 = vmul.f32 %v294, %v353
  %v363 = vmul.f32 %v295, %v353
  %v364 = vmul.f32 %v296, %v353
  %v365 = vmul.f32 %v297, %v353
  %v366 = vmul.f32 %v298, %v353
  %v367 = vmul.f32 %v299, %v353
  %v368 = vmul.f32 %v300, %v353
  %v369 = vmul.f32 %v301, %v353
  %v370 = vmul.f32 %v302, %v353
  %v371 = vmul.f32 %v303, %v353
  %v372 = vmul.f32 %v304, %v353
  %v373 = vmul.f32 %v305, %v353
  %v374 = vmul.f32 %v306, %v353
  %v375 = vmul.f32 %v307, %v353
  %v376 = vmul.f32 %v308, %v353
  %v377 = vmul.f32 %v309, %v353
  %v378 = vmul.f32 %v310, %v353
  %v379 = vmul.f32 %v311, %v353
  %v380 = vmul.f32 %v312, %v353
  %v381 = vmul.f32 %v313, %v353
  %v382 = vmul.f32 %v314, %v353
  %v383 = vmul.f32 %v315, %v353
  %v384 = vmul.f32 %v316, %v353
  %v385 = vmul.f32 %v317, %v353
  %v386 = vmul.f32 %v318, %v353
  %v387 = vmul.f32 %v319, %v353
  %v388 = vmul.f32 %v320, %v353
  %v389 = vmul.f32 %v321, %v353
  %v390 = vmul.f32 %v322, %v353
  %v391 = vmul.f32 %v323, %v353
  %v392 = vmul.f32 %v324, %v353
  %v393 = vmul.f32 %v325, %v353
  %v394 = vmul.f32 %v326, %v353
  %v395 = vmul.f32 %v327, %v353
  %v396 = vmul.f32 %v328, %v353
  %v397 = vmul.f32 %v329, %v353
  %v398 = vmul.f32 %v330, %v353
  %v399 = vmul.f32 %v331, %v353
  %v400 = vmul.f32 %v332, %v353
  %v401 = vmul.f32 %v333, %v353
  %v402 = vmul.f32 %v334, %v353
  %v403 = vmul.f32 %v335, %v353
  %v404 = vmul.f32 %v336, %v353
  %v405 = vmul.f32 %v337, %v353
  %v406 = vmul.f32 %v338, %v353
  %v407 = vmul.f32 %v339, %v353
  %v408 = vmul.f32 %v340, %v353
  %v409 = vmul.f32 %v341, %v353
  %v410 = vmul.f32 %v342, %v353
  %v411 = vmul.f32 %v343, %v353
  %v412 = vmul.f32 %v344, %v353
  %v413 = vmul.f32 %v345, %v353
  %v414 = vmul.f32 %v346, %v353
  %v415 = vmul.f32 %v347, %v353
  %v416 = vmul.f32 %v348, %v353
  %v417 = vmul.f32 %v349, %v353
  %v418 = vmul.f32 %v350, %v353
  %v419 = vld [vmem:[%s5] sm:$0x1]
  %v421 = vperm.slane %v419, 0
  %v423 = vadd.f32 %v355, %v421
  %v424 = vadd.f32 %v356, %v421
  %v425 = vadd.f32 %v357, %v421
  %v426 = vadd.f32 %v358, %v421
  %v427 = vadd.f32 %v359, %v421
  %v428 = vadd.f32 %v360, %v421
  %v429 = vadd.f32 %v361, %v421
  %v430 = vadd.f32 %v362, %v421
  %v431 = vadd.f32 %v363, %v421
  %v432 = vadd.f32 %v364, %v421
  %v433 = vadd.f32 %v365, %v421
  %v434 = vadd.f32 %v366, %v421
  %v435 = vadd.f32 %v367, %v421
  %v436 = vadd.f32 %v368, %v421
  %v437 = vadd.f32 %v369, %v421
  %v438 = vadd.f32 %v370, %v421
  %v439 = vadd.f32 %v371, %v421
  %v440 = vadd.f32 %v372, %v421
  %v441 = vadd.f32 %v373, %v421
  %v442 = vadd.f32 %v374, %v421
  %v443 = vadd.f32 %v375, %v421
  %v444 = vadd.f32 %v376, %v421
  %v445 = vadd.f32 %v377, %v421
  %v446 = vadd.f32 %v378, %v421
  %v447 = vadd.f32 %v379, %v421
  %v448 = vadd.f32 %v380, %v421
  %v449 = vadd.f32 %v381, %v421
  %v450 = vadd.f32 %v382, %v421
  %v451 = vadd.f32 %v383, %v421
  %v452 = vadd.f32 %v384, %v421
  %v453 = vadd.f32 %v385, %v421
  %v454 = vadd.f32 %v386, %v421
  %v455 = vadd.f32 %v387, %v421
  %v456 = vadd.f32 %v388, %v421
  %v457 = vadd.f32 %v389, %v421
  %v458 = vadd.f32 %v390, %v421
  %v459 = vadd.f32 %v391, %v421
  %v460 = vadd.f32 %v392, %v421
  %v461 = vadd.f32 %v393, %v421
  %v462 = vadd.f32 %v394, %v421
  %v463 = vadd.f32 %v395, %v421
  %v464 = vadd.f32 %v396, %v421
  %v465 = vadd.f32 %v397, %v421
  %v466 = vadd.f32 %v398, %v421
  %v467 = vadd.f32 %v399, %v421
  %v468 = vadd.f32 %v400, %v421
  %v469 = vadd.f32 %v401, %v421
  %v470 = vadd.f32 %v402, %v421
  %v471 = vadd.f32 %v403, %v421
  %v472 = vadd.f32 %v404, %v421
  %v473 = vadd.f32 %v405, %v421
  %v474 = vadd.f32 %v406, %v421
  %v475 = vadd.f32 %v407, %v421
  %v476 = vadd.f32 %v408, %v421
  %v477 = vadd.f32 %v409, %v421
  %v478 = vadd.f32 %v410, %v421
  %v479 = vadd.f32 %v411, %v421
  %v480 = vadd.f32 %v412, %v421
  %v481 = vadd.f32 %v413, %v421
  %v482 = vadd.f32 %v414, %v421
  %v483 = vadd.f32 %v415, %v421
  %v484 = vadd.f32 %v416, %v421
  %v485 = vadd.f32 %v417, %v421
  %v486 = vadd.f32 %v418, %v421
  %v487 = vadd.f32 %v223, %v423
  %v488 = vadd.f32 %v224, %v424
  %v489 = vadd.f32 %v225, %v425
  %v490 = vadd.f32 %v226, %v426
  %v491 = vadd.f32 %v227, %v427
  %v492 = vadd.f32 %v228, %v428
  %v493 = vadd.f32 %v229, %v429
  %v494 = vadd.f32 %v230, %v430
  %v495 = vadd.f32 %v231, %v431
  %v496 = vadd.f32 %v232, %v432
  %v497 = vadd.f32 %v233, %v433
  %v498 = vadd.f32 %v234, %v434
  %v499 = vadd.f32 %v235, %v435
  %v500 = vadd.f32 %v236, %v436
  %v501 = vadd.f32 %v237, %v437
  %v502 = vadd.f32 %v238, %v438
  %v503 = vadd.f32 %v239, %v439
  %v504 = vadd.f32 %v240, %v440
  %v505 = vadd.f32 %v241, %v441
  %v506 = vadd.f32 %v242, %v442
  %v507 = vadd.f32 %v243, %v443
  %v508 = vadd.f32 %v244, %v444
  %v509 = vadd.f32 %v245, %v445
  %v510 = vadd.f32 %v246, %v446
  %v511 = vadd.f32 %v247, %v447
  %v512 = vadd.f32 %v248, %v448
  %v513 = vadd.f32 %v249, %v449
  %v514 = vadd.f32 %v250, %v450
  %v515 = vadd.f32 %v251, %v451
  %v516 = vadd.f32 %v252, %v452
  %v517 = vadd.f32 %v253, %v453
  %v518 = vadd.f32 %v254, %v454
  %v519 = vadd.f32 %v255, %v455
  %v520 = vadd.f32 %v256, %v456
  %v521 = vadd.f32 %v257, %v457
  %v522 = vadd.f32 %v258, %v458
  %v523 = vadd.f32 %v259, %v459
  %v524 = vadd.f32 %v260, %v460
  %v525 = vadd.f32 %v261, %v461
  %v526 = vadd.f32 %v262, %v462
  %v527 = vadd.f32 %v263, %v463
  %v528 = vadd.f32 %v264, %v464
  %v529 = vadd.f32 %v265, %v465
  %v530 = vadd.f32 %v266, %v466
  %v531 = vadd.f32 %v267, %v467
  %v532 = vadd.f32 %v268, %v468
  %v533 = vadd.f32 %v269, %v469
  %v534 = vadd.f32 %v270, %v470
  %v535 = vadd.f32 %v271, %v471
  %v536 = vadd.f32 %v272, %v472
  %v537 = vadd.f32 %v273, %v473
  %v538 = vadd.f32 %v274, %v474
  %v539 = vadd.f32 %v275, %v475
  %v540 = vadd.f32 %v276, %v476
  %v541 = vadd.f32 %v277, %v477
  %v542 = vadd.f32 %v278, %v478
  %v543 = vadd.f32 %v279, %v479
  %v544 = vadd.f32 %v280, %v480
  %v545 = vadd.f32 %v281, %v481
  %v546 = vadd.f32 %v282, %v482
  %v547 = vadd.f32 %v283, %v483
  %v548 = vadd.f32 %v284, %v484
  %v549 = vadd.f32 %v285, %v485
  %v550 = vadd.f32 %v286, %v486
  %vm551 = vcmask 523264
  %552 = vst.msk [vmem:[%s6] sm:$0xff] %vm551, %v487
  %553 = vst.msk [vmem:[%s6 + $0x8] sm:$0xff] %vm551, %v488
  %554 = vst.msk [vmem:[%s6 + $0x10] sm:$0xff] %vm551, %v489
  %555 = vst.msk [vmem:[%s6 + $0x18] sm:$0xff] %vm551, %v490
  %556 = vst.msk [vmem:[%s6 + $0x20] sm:$0xff] %vm551, %v491
  %557 = vst.msk [vmem:[%s6 + $0x28] sm:$0xff] %vm551, %v492
  %558 = vst.msk [vmem:[%s6 + $0x30] sm:$0xff] %vm551, %v493
  %559 = vst.msk [vmem:[%s6 + $0x38] sm:$0xff] %vm551, %v494
  %560 = vst.msk [vmem:[%s6 + $0x40] sm:$0xff] %vm551, %v495
  %561 = vst.msk [vmem:[%s6 + $0x48] sm:$0xff] %vm551, %v496
  %562 = vst.msk [vmem:[%s6 + $0x50] sm:$0xff] %vm551, %v497
  %563 = vst.msk [vmem:[%s6 + $0x58] sm:$0xff] %vm551, %v498
  %564 = vst.msk [vmem:[%s6 + $0x60] sm:$0xff] %vm551, %v499
  %565 = vst.msk [vmem:[%s6 + $0x68] sm:$0xff] %vm551, %v500
  %566 = vst.msk [vmem:[%s6 + $0x70] sm:$0xff] %vm551, %v501
  %567 = vst.msk [vmem:[%s6 + $0x78] sm:$0xff] %vm551, %v502
  %568 = vst.msk [vmem:[%s6 + $0x80] sm:$0xff] %vm551, %v503
  %569 = vst.msk [vmem:[%s6 + $0x88] sm:$0xff] %vm551, %v504
  %570 = vst.msk [vmem:[%s6 + $0x90] sm:$0xff] %vm551, %v505
  %571 = vst.msk [vmem:[%s6 + $0x98] sm:$0xff] %vm551, %v506
  %572 = vst.msk [vmem:[%s6 + $0xa0] sm:$0xff] %vm551, %v507
  %573 = vst.msk [vmem:[%s6 + $0xa8] sm:$0xff] %vm551, %v508
  %574 = vst.msk [vmem:[%s6 + $0xb0] sm:$0xff] %vm551, %v509
  %575 = vst.msk [vmem:[%s6 + $0xb8] sm:$0xff] %vm551, %v510
  %576 = vst.msk [vmem:[%s6 + $0xc0] sm:$0xff] %vm551, %v511
  %577 = vst.msk [vmem:[%s6 + $0xc8] sm:$0xff] %vm551, %v512
  %578 = vst.msk [vmem:[%s6 + $0xd0] sm:$0xff] %vm551, %v513
  %579 = vst.msk [vmem:[%s6 + $0xd8] sm:$0xff] %vm551, %v514
  %580 = vst.msk [vmem:[%s6 + $0xe0] sm:$0xff] %vm551, %v515
  %581 = vst.msk [vmem:[%s6 + $0xe8] sm:$0xff] %vm551, %v516
  %582 = vst.msk [vmem:[%s6 + $0xf0] sm:$0xff] %vm551, %v517
  %583 = vst.msk [vmem:[%s6 + $0xf8] sm:$0xff] %vm551, %v518
  %584 = vst.msk [vmem:[%s6 + $0x100] sm:$0xff] %vm551, %v519
  %585 = vst.msk [vmem:[%s6 + $0x108] sm:$0xff] %vm551, %v520
  %586 = vst.msk [vmem:[%s6 + $0x110] sm:$0xff] %vm551, %v521
  %587 = vst.msk [vmem:[%s6 + $0x118] sm:$0xff] %vm551, %v522
  %588 = vst.msk [vmem:[%s6 + $0x120] sm:$0xff] %vm551, %v523
  %589 = vst.msk [vmem:[%s6 + $0x128] sm:$0xff] %vm551, %v524
  %590 = vst.msk [vmem:[%s6 + $0x130] sm:$0xff] %vm551, %v525
  %591 = vst.msk [vmem:[%s6 + $0x138] sm:$0xff] %vm551, %v526
  %592 = vst.msk [vmem:[%s6 + $0x140] sm:$0xff] %vm551, %v527
  %593 = vst.msk [vmem:[%s6 + $0x148] sm:$0xff] %vm551, %v528
  %594 = vst.msk [vmem:[%s6 + $0x150] sm:$0xff] %vm551, %v529
  %595 = vst.msk [vmem:[%s6 + $0x158] sm:$0xff] %vm551, %v530
  %596 = vst.msk [vmem:[%s6 + $0x160] sm:$0xff] %vm551, %v531
  %597 = vst.msk [vmem:[%s6 + $0x168] sm:$0xff] %vm551, %v532
  %598 = vst.msk [vmem:[%s6 + $0x170] sm:$0xff] %vm551, %v533
  %599 = vst.msk [vmem:[%s6 + $0x178] sm:$0xff] %vm551, %v534
  %600 = vst.msk [vmem:[%s6 + $0x180] sm:$0xff] %vm551, %v535
  %601 = vst.msk [vmem:[%s6 + $0x188] sm:$0xff] %vm551, %v536
  %602 = vst.msk [vmem:[%s6 + $0x190] sm:$0xff] %vm551, %v537
  %603 = vst.msk [vmem:[%s6 + $0x198] sm:$0xff] %vm551, %v538
  %604 = vst.msk [vmem:[%s6 + $0x1a0] sm:$0xff] %vm551, %v539
  %605 = vst.msk [vmem:[%s6 + $0x1a8] sm:$0xff] %vm551, %v540
  %606 = vst.msk [vmem:[%s6 + $0x1b0] sm:$0xff] %vm551, %v541
  %607 = vst.msk [vmem:[%s6 + $0x1b8] sm:$0xff] %vm551, %v542
  %608 = vst.msk [vmem:[%s6 + $0x1c0] sm:$0xff] %vm551, %v543
  %609 = vst.msk [vmem:[%s6 + $0x1c8] sm:$0xff] %vm551, %v544
  %610 = vst.msk [vmem:[%s6 + $0x1d0] sm:$0xff] %vm551, %v545
  %611 = vst.msk [vmem:[%s6 + $0x1d8] sm:$0xff] %vm551, %v546
  %612 = vst.msk [vmem:[%s6 + $0x1e0] sm:$0xff] %vm551, %v547
  %613 = vst.msk [vmem:[%s6 + $0x1e8] sm:$0xff] %vm551, %v548
  %614 = vst.msk [vmem:[%s6 + $0x1f0] sm:$0xff] %vm551, %v549
  %615 = vst.msk [vmem:[%s6 + $0x1f8] sm:$0xff] %vm551, %v550
  // Predicated region
  $region26: #{fwd.15} parent=0 // pred_check
    _
  $region27: #{fwd.15} parent=0 // pred_check_branch
    %617 = sbr.rel (0) target = $region29
  $region28: #{fwd.15} parent=0 // pred_region
    _
  $region29: #{fwd.15} parent=0 // pred_fallthru
    _
  // Predicated region
  $region30: #{fwd.15} parent=0 // pred_check
    _
  $region31: #{fwd.15} parent=0 // pred_check_branch
    %619 = sbr.rel (0) target = $region33
  $region32: #{fwd.15} parent=0 // pred_region
    _
  $region33: #{fwd.15} parent=0 // pred_fallthru
    _

</llo_original>
